<compile_context>
chip_gen: v7x
topology: tpu7x:2x2x1
jax: 0.10.0
libtpu: 0.0.40
codegen_flags: <defaults>
</compile_context>

<pallas_src>
import functools
import math

import jax
import jax.numpy as jnp
from jax.experimental import pallas as pl
from jax.experimental.pallas import tpu as pltpu


# ----------------------------------------------------------------------------
# Packed aux-slab layout (rows).  Shared by the wrapper packer and the kernel.
#   row 0            : bias_1 (f/i/o columns pre-halved), width 4H+1
#   row 1            : bias_2 (f/i/o columns pre-halved), width 4H+1
#   row 2            : fused head bias [beat0_b, beat1_b] in lanes 0:2
#   rows 8 : 8+2H    : fused head weight (2H, 2)  (rows 0:H -> h1, H:2H -> h2)
#   rows g : g+T     : LayerNorm gamma (T, E)     (g = 8 + 2H)
#   rows b : b+T     : LayerNorm beta  (T, E)     (b = g + T)
# ----------------------------------------------------------------------------
def _aux_layout(hidden_size, time_steps):
    row_hw = 8
    row_gamma = row_hw + 2 * hidden_size
    row_beta = row_gamma + time_steps
    n_rows = row_beta + time_steps
    return row_hw, row_gamma, row_beta, n_rows


# ----------------------------------------------------------------------------
# Fused HM_Net forward kernel (LayerNorm + HM-LSTM recurrence + beat heads).
# Layout: batch on sublanes, hidden/embed on lanes (transpose of torch (H,B)).
# ----------------------------------------------------------------------------
def _hm_net_kernel(x_ref, w_ref, aux_ref,          # packed inputs
                   bd_ref, state_ref,              # packed outputs
                   xproj_ref, hcat_ref,            # scratch
                   *, a, T, B, H, E, eps):
    f32 = jnp.float32
    G4 = 4 * H
    row_hw, row_gamma, row_beta, _ = _aux_layout(H, T)

    # ---- LayerNorm([dict_size, embed_size]) fused into the prologue --------
    x = x_ref[...]                                             # (B, T, E)
    gamma = aux_ref[row_gamma:row_gamma + T, 0:E]              # (T, E)
    beta = aux_ref[row_beta:row_beta + T, 0:E]                 # (T, E)
    mu = jnp.mean(jnp.mean(x, axis=2, keepdims=True), axis=1, keepdims=True)
    xc = x - mu
    var = jnp.mean(jnp.mean(xc * xc, axis=2, keepdims=True), axis=1,
                   keepdims=True)
    emb = xc * jax.lax.rsqrt(var + eps) * gamma + beta         # (B, T, E)

    # ---- time-major staging as one value op (row = t*B + b) -----------------
    emb_tm = jnp.concatenate([emb[:, t, :] for t in range(T)], axis=0)

    # ---- hoisted layer-1 input projection (gates + z column, bias folded) ---
    w1 = w_ref[0:E, :]                                         # (E, 4H+1)
    b1 = aux_ref[0:1, :]                                       # (1, 4H+1)
    xproj_ref[...] = jnp.dot(emb_tm, w1, preferred_element_type=f32) + b1

    # ---- fused recurrent weights, loaded once for the whole unrolled loop ---
    r1 = w_ref[E:E + 2 * H, :]            # [U11_1^T ; U21_1^T], (2H, 4H+1)
    r2 = w_ref[E + 2 * H:E + 4 * H, :]    # [W01_2^T ; U11_2^T], (2H, 4H+1)
    b2 = aux_ref[1:2, :]                                       # (1, 4H+1)

    def cell(pre, c_prev, h_prev, z_prev, z_bottom):
        # pre: (B, 4H+1).  f/i/o columns were pre-halved in the wrapper, so a
        # single tanh pass gives sigmoid(f,i,o) via 0.5*tanh(x/2)+0.5 and
        # tanh(g) directly -> one EUP round trip instead of two.
        th = jnp.tanh(pre[:, 0:G4])                            # (B, 4H)
        fio = th[:, 0:3 * H] * 0.5 + 0.5
        f = fio[:, 0:H]
        i = fio[:, H:2 * H]
        o = fio[:, 2 * H:3 * H]
        g = th[:, 3 * H:G4]
        pre_z = pre[:, G4:G4 + 1]                              # (B, 1), unscaled
        if a > 0:
            # bound(hard_sigm(a, s)) forward == (s > 0) for a > 0.
            z_new = (pre_z > 0.0).astype(f32)
        else:
            z_hat = jnp.clip((pre_z * a + 1.0) * 0.5, 0.0, 1.0)
            z_new = (z_hat > 0.5).astype(f32)
        z = z_prev
        ig = i * g
        if z_bottom is None:                                   # z_bottom == 1
            c_new = z * ig + (1.0 - z) * (f * c_prev + ig)
            h_new = o * jnp.tanh(c_new)
        else:
            zb = z_bottom
            c_new = (z * ig + (1.0 - z) * (1.0 - zb) * c_prev
                     + (1.0 - z) * zb * (f * c_prev + ig))
            otc = o * jnp.tanh(c_new)
            h_new = (z * otc + (1.0 - z) * (1.0 - zb) * h_prev
                     + (1.0 - z) * zb * otc)
        return h_new, c_new, z_new

    def step(t, carry):
        h1p, c1p, z1p, h2p, c2p, z2p = carry
        row = t * B

        # layer 1 (not last): bottom-up from x (hoisted), own-h recurrence,
        # z1-gated top-down from h2_prev; z_bottom == 1 (input layer).
        lhs1 = jnp.concatenate([h1p, z1p * h2p], axis=1)       # (B, 2H)
        pre1 = (xproj_ref[pl.ds(row, B), :]
                + jnp.dot(lhs1, r1, preferred_element_type=f32))
        h1n, c1n, z1n = cell(pre1, c1p, h1p, z1p, None)

        # layer 2 (last): bottom-up from NEW h1, z1n-gated own-h recurrence.
        lhs2 = jnp.concatenate([h1n, z1n * h2p], axis=1)       # (B, 2H)
        pre2 = jnp.dot(lhs2, r2, preferred_element_type=f32) + b2
        h2n, c2n, z2n = cell(pre2, c2p, h2p, z2p, z1n)

        hcat_ref[pl.ds(row, B), :] = jnp.concatenate([h1n, h2n], axis=1)
        return (h1n, c1n, z1n, h2n, c2n, z2n)

    zh = jnp.zeros((B, H), f32)
    zz = jnp.zeros((B, 1), f32)
    h1f, c1f, z1f, h2f, c2f, z2f = jax.lax.fori_loop(
        0, T, step, (zh, zh, zz, zh, zh, zz), unroll=True)

    # ---- beat / downbeat heads: one (T*B, 2H) @ (2H, 2) matmul ---------------
    hw = aux_ref[row_hw:row_hw + 2 * H, 0:2]                   # (2H, 2)
    hb = aux_ref[2:3, 0:2]                                     # (1, 2)
    logits = jnp.dot(hcat_ref[...], hw, preferred_element_type=f32) + hb
    bd_ref[...] = jax.nn.sigmoid(logits)

    # ---- packed final recurrent state: h1 | c1 | h2 | c2 | z1 | z2 -----------
    state_ref[...] = jnp.concatenate([h1f, c1f, h2f, c2f, z1f, z2f], axis=1)


# ----------------------------------------------------------------------------
# Wrapper: weight repacking into two lane-dense slabs + the single pallas_call.
# ----------------------------------------------------------------------------
def _pack_inputs(params, H, E, T):
    f32 = jnp.float32
    G4 = 4 * H
    GZ = G4 + 1
    # Pre-halve the f/i/o columns (and bias entries) so the kernel's single
    # tanh pass implements sigmoid via 0.5*tanh(x/2)+0.5.  g and z unscaled.
    col_scale = jnp.concatenate([jnp.full((3 * H,), 0.5, f32),
                                 jnp.ones((H + 1,), f32)])     # (4H+1,)

    def wt(w):   # torch (4H+1, in) -> (in, 4H+1), f/i/o columns pre-halved
        return jnp.transpose(w).astype(f32) * col_scale[None, :]

    w1 = wt(params["w01_1"])                                            # (E, GZ)
    r1 = jnp.concatenate([wt(params["u11_1"]), wt(params["u21_1"])], 0)  # (2H, GZ)
    r2 = jnp.concatenate([wt(params["w01_2"]), wt(params["u11_2"])], 0)  # (2H, GZ)
    w_slab = jnp.concatenate([w1, r1, r2], axis=0)                      # (E+4H, GZ)

    b1 = params["bias_1"].astype(f32) * col_scale
    b2 = params["bias_2"].astype(f32) * col_scale
    hw = jnp.transpose(jnp.concatenate([params["beat0_w"],
                                        params["beat1_w"]], axis=0)).astype(f32)
    hb = jnp.concatenate([params["beat0_b"], params["beat1_b"]]).astype(f32)

    row_hw, row_gamma, row_beta, n_rows = _aux_layout(H, T)
    aux = jnp.zeros((n_rows, GZ), f32)
    aux = aux.at[0, :].set(b1)
    aux = aux.at[1, :].set(b2)
    aux = aux.at[2, 0:2].set(hb)
    aux = aux.at[row_hw:row_hw + 2 * H, 0:2].set(hw)
    aux = aux.at[row_gamma:row_gamma + T, 0:E].set(params["ln_gamma"].astype(f32))
    aux = aux.at[row_beta:row_beta + T, 0:E].set(params["ln_beta"].astype(f32))
    return w_slab, aux


def hm_net_forward(inputs, params, a):
    """inputs: (B, dict_size, embed_size) float32.  Returns (b, d, hidden)
    matching HM_Net.forward with hidden=None and dropout in eval mode; hidden
    is in the PyTorch (H, B) / (1, B) layout."""
    B, T, E = inputs.shape
    H = params["u11_1"].shape[1]          # u11_1 is (4H+1, H)
    G4 = 4 * H
    GZ = G4 + 1
    f32 = jnp.float32

    w_slab, aux = _pack_inputs(params, H, E, T)
    args = (inputs.astype(f32), w_slab, aux)

    def full_spec(shape):
        nd = len(shape)
        return pl.BlockSpec(shape, lambda i, nd=nd: (0,) * nd)

    out_shapes = ((T * B, 2), (B, G4 + 2))
    kernel = functools.partial(_hm_net_kernel, a=float(a), T=T, B=B, H=H, E=E,
                               eps=1e-5)
    bd, state = pl.pallas_call(
        kernel,
        out_shape=tuple(jax.ShapeDtypeStruct(s, f32) for s in out_shapes),
        grid=(1,),
        in_specs=[full_spec(v.shape) for v in args],
        out_specs=tuple(full_spec(s) for s in out_shapes),
        scratch_shapes=[
            pltpu.VMEM((T * B, GZ), f32),      # hoisted layer-1 projection
            pltpu.VMEM((T * B, 2 * H), f32),   # per-step concat(h1, h2)
        ],
        compiler_params=pltpu.CompilerParams(
            dimension_semantics=("arbitrary",)),
    )(*args)

    bd = bd.reshape(T, B, 2)
    b = jnp.transpose(bd[:, :, 0])                       # (B, T)
    d = jnp.transpose(bd[:, :, 1])                       # (B, T)
    h1 = state[:, 0:H].T
    c1 = state[:, H:2 * H].T
    h2 = state[:, 2 * H:3 * H].T
    c2 = state[:, 3 * H:4 * H].T
    z1 = state[:, 4 * H:4 * H + 1].T
    z2 = state[:, 4 * H + 1:4 * H + 2].T
    hidden = (h1, c1, z1, h2, c2, z2)                    # torch layout
    return b, d, hidden


# ----------------------------------------------------------------------------
# Deterministic parameter initialization (mirrors the torch module's shapes).
# ----------------------------------------------------------------------------
def init_params(key, dict_size, embed_size, hidden_size):
    H, E, T = hidden_size, embed_size, dict_size
    G = 4 * H + 1
    stdv = 1.0 / math.sqrt(H)
    stdv_beat = 1.0 / math.sqrt(2 * H)
    keys = jax.random.split(key, 12)

    def u(k, shape, s):
        return jax.random.uniform(k, shape, jnp.float32, minval=-s, maxval=s)

    params = {
        # LayerNorm([dict_size, embed_size]) — torch defaults (ones / zeros)
        "ln_gamma": jnp.ones((T, E), jnp.float32),
        "ln_beta": jnp.zeros((T, E), jnp.float32),
        # cell_1: bottom=E, hidden=H, top=H, not last
        "u11_1": u(keys[0], (G, H), stdv),
        "u21_1": u(keys[1], (G, H), stdv),
        "w01_1": u(keys[2], (G, E), stdv),
        "bias_1": u(keys[3], (G,), stdv),
        # cell_2: bottom=H, hidden=H, last layer (no U_21)
        "u11_2": u(keys[4], (G, H), stdv),
        "w01_2": u(keys[5], (G, H), stdv),
        "bias_2": u(keys[6], (G,), stdv),
        # beat heads: Linear(2H, 1)
        "beat0_w": u(keys[7], (1, 2 * H), stdv_beat),
        "beat0_b": u(keys[8], (1,), stdv_beat),
        "beat1_w": u(keys[9], (1, 2 * H), stdv_beat),
        "beat1_b": u(keys[10], (1,), stdv_beat),
    }
    return params


if __name__ == "__main__":
    # Small, forward-consistent shapes: batch=2, dict_size (time)=8, embed=16,
    # hidden=32, slope a=1.0
    B, T, E, H = 2, 8, 16, 32
    a_slope = 1.0

    root = jax.random.PRNGKey(0)
    k_param, k_x = jax.random.split(root)
    params = init_params(k_param, dict_size=T, embed_size=E, hidden_size=H)
    x = jax.random.normal(k_x, (B, T, E), dtype=jnp.float32)

    fwd = jax.jit(functools.partial(hm_net_forward, a=a_slope))
    b, d, hidden = fwd(x, params)
    jax.block_until_ready((b, d, hidden))

    assert b.shape == (B, T) and d.shape == (B, T)
    assert hidden[0].shape == (H, B) and hidden[2].shape == (1, B)
    assert bool(jnp.all(jnp.isfinite(b))) and bool(jnp.all(jnp.isfinite(d)))
    assert all(bool(jnp.all(jnp.isfinite(hx))) for hx in hidden)

    print("KERNEL_OK")
</pallas_src>

<mosaic_0001>
module attributes {stable_mosaic.version = 11 : i64} {
  func.func @_hm_net_kernel(%arg0: i32, %arg1: memref<2x8x16xf32, #tpu.memory_space<vmem>>, %arg2: memref<144x129xf32, #tpu.memory_space<vmem>>, %arg3: memref<88x129xf32, #tpu.memory_space<vmem>>, %arg4: memref<16x2xf32, #tpu.memory_space<vmem>>, %arg5: memref<2x130xf32, #tpu.memory_space<vmem>>, %arg6: memref<16x129xf32, #tpu.memory_space<vmem>>, %arg7: memref<16x64xf32, #tpu.memory_space<vmem>>) attributes {dimension_semantics = [#tpu.dimension_semantics<arbitrary>], iteration_bounds = array<i64: 1>, scalar_prefetch = 0 : i64, scratch_operands = 2 : i64, tpu.core_type = #tpu.core_type<tc>, window_params = [{pipeline_mode = #tpu.pipeline_mode<synchronous>, transform_indices = @transform_0, window_bounds = array<i64: 2, 8, 16>}, {pipeline_mode = #tpu.pipeline_mode<synchronous>, transform_indices = @transform_1, window_bounds = array<i64: 144, 129>}, {pipeline_mode = #tpu.pipeline_mode<synchronous>, transform_indices = @transform_2, window_bounds = array<i64: 88, 129>}, {pipeline_mode = #tpu.pipeline_mode<synchronous>, transform_indices = @transform_3, window_bounds = array<i64: 16, 2>}, {pipeline_mode = #tpu.pipeline_mode<synchronous>, transform_indices = @transform_4, window_bounds = array<i64: 2, 130>}]} {
    %c0 = arith.constant 0 : index
    %c0_0 = arith.constant 0 : index
    %c0_1 = arith.constant 0 : index
    %0 = vector.load %arg1[%c0, %c0_0, %c0_1] : memref<2x8x16xf32, #tpu.memory_space<vmem>>, vector<2x8x16xf32>
    %c72 = arith.constant 72 : index
    %c0_2 = arith.constant 0 : index
    %1 = vector.load %arg3[%c72, %c0_2] : memref<88x129xf32, #tpu.memory_space<vmem>>, vector<8x16xf32>
    %c80 = arith.constant 80 : index
    %c0_3 = arith.constant 0 : index
    %2 = vector.load %arg3[%c80, %c0_3] : memref<88x129xf32, #tpu.memory_space<vmem>>, vector<8x16xf32>
    %cst = arith.constant dense<0.000000e+00> : vector<2x8xf32>
    %3 = vector.multi_reduction <add>, %0, %cst [2] : vector<2x8x16xf32> to vector<2x8xf32>
    %4 = vector.shape_cast %3 : vector<2x8xf32> to vector<2x8x1xf32>
    %cst_4 = arith.constant 1.600000e+01 : f32
    %5 = vector.broadcast %cst_4 : f32 to vector<2x8x1xf32>
    %6 = arith.divf %4, %5 : vector<2x8x1xf32>
    %cst_5 = arith.constant dense<0.000000e+00> : vector<2x1xf32>
    %7 = vector.multi_reduction <add>, %6, %cst_5 [1] : vector<2x8x1xf32> to vector<2x1xf32>
    %8 = vector.shape_cast %7 : vector<2x1xf32> to vector<2x1x1xf32>
    %cst_6 = arith.constant 8.000000e+00 : f32
    %9 = vector.broadcast %cst_6 : f32 to vector<2x1x1xf32>
    %10 = arith.divf %8, %9 : vector<2x1x1xf32>
    %11 = vector.broadcast %10 : vector<2x1x1xf32> to vector<2x8x16xf32>
    %12 = arith.subf %0, %11 : vector<2x8x16xf32>
    %13 = arith.mulf %12, %12 : vector<2x8x16xf32>
    %cst_7 = arith.constant dense<0.000000e+00> : vector<2x8xf32>
    %14 = vector.multi_reduction <add>, %13, %cst_7 [2] : vector<2x8x16xf32> to vector<2x8xf32>
    %15 = vector.shape_cast %14 : vector<2x8xf32> to vector<2x8x1xf32>
    %cst_8 = arith.constant 1.600000e+01 : f32
    %16 = vector.broadcast %cst_8 : f32 to vector<2x8x1xf32>
    %17 = arith.divf %15, %16 : vector<2x8x1xf32>
    %cst_9 = arith.constant dense<0.000000e+00> : vector<2x1xf32>
    %18 = vector.multi_reduction <add>, %17, %cst_9 [1] : vector<2x8x1xf32> to vector<2x1xf32>
    %19 = vector.shape_cast %18 : vector<2x1xf32> to vector<2x1x1xf32>
    %cst_10 = arith.constant 8.000000e+00 : f32
    %20 = vector.broadcast %cst_10 : f32 to vector<2x1x1xf32>
    %21 = arith.divf %19, %20 : vector<2x1x1xf32>
    %cst_11 = arith.constant 9.99999974E-6 : f32
    %22 = vector.broadcast %cst_11 : f32 to vector<2x1x1xf32>
    %23 = arith.addf %21, %22 : vector<2x1x1xf32>
    %24 = math.rsqrt %23 : vector<2x1x1xf32>
    %25 = vector.broadcast %24 : vector<2x1x1xf32> to vector<2x8x16xf32>
    %26 = arith.mulf %12, %25 : vector<2x8x16xf32>
    %27 = vector.shape_cast %1 : vector<8x16xf32> to vector<1x8x16xf32>
    %28 = vector.broadcast %27 : vector<1x8x16xf32> to vector<2x8x16xf32>
    %29 = arith.mulf %26, %28 : vector<2x8x16xf32>
    %30 = vector.shape_cast %2 : vector<8x16xf32> to vector<1x8x16xf32>
    %31 = vector.broadcast %30 : vector<1x8x16xf32> to vector<2x8x16xf32>
    %32 = arith.addf %29, %31 : vector<2x8x16xf32>
    %33 = vector.extract_strided_slice %32 {offsets = [0, 0, 0], sizes = [2, 1, 16], strides = [1, 1, 1]} : vector<2x8x16xf32> to vector<2x1x16xf32>
    %34 = vector.shape_cast %33 : vector<2x1x16xf32> to vector<2x16xf32>
    %35 = vector.extract_strided_slice %32 {offsets = [0, 1, 0], sizes = [2, 1, 16], strides = [1, 1, 1]} : vector<2x8x16xf32> to vector<2x1x16xf32>
    %36 = vector.shape_cast %35 : vector<2x1x16xf32> to vector<2x16xf32>
    %37 = vector.extract_strided_slice %32 {offsets = [0, 2, 0], sizes = [2, 1, 16], strides = [1, 1, 1]} : vector<2x8x16xf32> to vector<2x1x16xf32>
    %38 = vector.shape_cast %37 : vector<2x1x16xf32> to vector<2x16xf32>
    %39 = vector.extract_strided_slice %32 {offsets = [0, 3, 0], sizes = [2, 1, 16], strides = [1, 1, 1]} : vector<2x8x16xf32> to vector<2x1x16xf32>
    %40 = vector.shape_cast %39 : vector<2x1x16xf32> to vector<2x16xf32>
    %41 = vector.extract_strided_slice %32 {offsets = [0, 4, 0], sizes = [2, 1, 16], strides = [1, 1, 1]} : vector<2x8x16xf32> to vector<2x1x16xf32>
    %42 = vector.shape_cast %41 : vector<2x1x16xf32> to vector<2x16xf32>
    %43 = vector.extract_strided_slice %32 {offsets = [0, 5, 0], sizes = [2, 1, 16], strides = [1, 1, 1]} : vector<2x8x16xf32> to vector<2x1x16xf32>
    %44 = vector.shape_cast %43 : vector<2x1x16xf32> to vector<2x16xf32>
    %45 = vector.extract_strided_slice %32 {offsets = [0, 6, 0], sizes = [2, 1, 16], strides = [1, 1, 1]} : vector<2x8x16xf32> to vector<2x1x16xf32>
    %46 = vector.shape_cast %45 : vector<2x1x16xf32> to vector<2x16xf32>
    %47 = vector.extract_strided_slice %32 {offsets = [0, 7, 0], sizes = [2, 1, 16], strides = [1, 1, 1]} : vector<2x8x16xf32> to vector<2x1x16xf32>
    %48 = vector.shape_cast %47 : vector<2x1x16xf32> to vector<2x16xf32>
    %49 = tpu.concatenate %34, %36, %38, %40, %42, %44, %46, %48 in 0 : vector<2x16xf32>, vector<2x16xf32>, vector<2x16xf32>, vector<2x16xf32>, vector<2x16xf32>, vector<2x16xf32>, vector<2x16xf32>, vector<2x16xf32> -> vector<16x16xf32>
    %c0_12 = arith.constant 0 : index
    %c0_13 = arith.constant 0 : index
    %50 = vector.load %arg2[%c0_12, %c0_13] : memref<144x129xf32, #tpu.memory_space<vmem>>, vector<16x129xf32>
    %c0_14 = arith.constant 0 : index
    %c0_15 = arith.constant 0 : index
    %51 = vector.load %arg3[%c0_14, %c0_15] : memref<88x129xf32, #tpu.memory_space<vmem>>, vector<1x129xf32>
    %cst_16 = arith.constant dense<0.000000e+00> : vector<16x129xf32>
    %52 = tpu.matmul %49, %50, %cst_16 {dimension_numbers = #tpu.dot_dimension_numbers<[1], [0], [0], [1], [0, 0, 1, 1], [], []>} : vector<16x16xf32>, vector<16x129xf32>, vector<16x129xf32> -> vector<16x129xf32>
    %53 = vector.broadcast %51 : vector<1x129xf32> to vector<16x129xf32>
    %54 = arith.addf %52, %53 : vector<16x129xf32>
    %c0_17 = arith.constant 0 : index
    %c0_18 = arith.constant 0 : index
    %55 = vector.load %arg6[%c0_17, %c0_18] : memref<16x129xf32, #tpu.memory_space<vmem>>, vector<16x129xf32>
    tpu.vector_store %arg6[%c0_17, %c0_18], %54 {strides = array<i32>} : memref<16x129xf32, #tpu.memory_space<vmem>>, vector<16x129xf32>,
    %c16 = arith.constant 16 : index
    %c0_19 = arith.constant 0 : index
    %56 = vector.load %arg2[%c16, %c0_19] : memref<144x129xf32, #tpu.memory_space<vmem>>, vector<64x129xf32>
    %c80_20 = arith.constant 80 : index
    %c0_21 = arith.constant 0 : index
    %57 = vector.load %arg2[%c80_20, %c0_21] : memref<144x129xf32, #tpu.memory_space<vmem>>, vector<64x129xf32>
    %c1 = arith.constant 1 : index
    %c0_22 = arith.constant 0 : index
    %58 = vector.load %arg3[%c1, %c0_22] : memref<88x129xf32, #tpu.memory_space<vmem>>, vector<1x129xf32>
    %cst_23 = arith.constant 0.000000e+00 : f32
    %59 = vector.broadcast %cst_23 : f32 to vector<2x32xf32>
    %cst_24 = arith.constant 0.000000e+00 : f32
    %60 = vector.broadcast %cst_24 : f32 to vector<2x1xf32>
    %c0_i32 = arith.constant 0 : i32
    %c2_i32 = arith.constant 2 : i32
    %61 = arith.muli %c0_i32, %c2_i32 : i32
    %62 = vector.broadcast %60 : vector<2x1xf32> to vector<2x32xf32>
    %63 = arith.mulf %62, %59 : vector<2x32xf32>
    %64 = tpu.concatenate %59, %63 in 1 : vector<2x32xf32>, vector<2x32xf32> -> vector<2x64xf32>
    %65 = arith.index_cast %61 : i32 to index
    %c0_25 = arith.constant 0 : index
    %66 = vector.load %arg6[%65, %c0_25] : memref<16x129xf32, #tpu.memory_space<vmem>>, vector<2x129xf32>
    %cst_26 = arith.constant dense<0.000000e+00> : vector<2x129xf32>
    %67 = tpu.matmul %64, %56, %cst_26 {dimension_numbers = #tpu.dot_dimension_numbers<[1], [0], [0], [1], [0, 0, 1, 1], [], []>} : vector<2x64xf32>, vector<64x129xf32>, vector<2x129xf32> -> vector<2x129xf32>
    %68 = arith.addf %66, %67 : vector<2x129xf32>
    %69 = vector.extract_strided_slice %68 {offsets = [0, 0], sizes = [2, 128], strides = [1, 1]} : vector<2x129xf32> to vector<2x128xf32>
    %70 = math.tanh %69 : vector<2x128xf32>
    %71 = vector.extract_strided_slice %70 {offsets = [0, 0], sizes = [2, 96], strides = [1, 1]} : vector<2x128xf32> to vector<2x96xf32>
    %cst_27 = arith.constant 5.000000e-01 : f32
    %72 = vector.broadcast %cst_27 : f32 to vector<2x96xf32>
    %73 = arith.mulf %71, %72 : vector<2x96xf32>
    %cst_28 = arith.constant 5.000000e-01 : f32
    %74 = vector.broadcast %cst_28 : f32 to vector<2x96xf32>
    %75 = arith.addf %73, %74 : vector<2x96xf32>
    %76 = vector.extract_strided_slice %75 {offsets = [0, 0], sizes = [2, 32], strides = [1, 1]} : vector<2x96xf32> to vector<2x32xf32>
    %77 = vector.extract_strided_slice %75 {offsets = [0, 32], sizes = [2, 32], strides = [1, 1]} : vector<2x96xf32> to vector<2x32xf32>
    %78 = vector.extract_strided_slice %75 {offsets = [0, 64], sizes = [2, 32], strides = [1, 1]} : vector<2x96xf32> to vector<2x32xf32>
    %79 = vector.extract_strided_slice %70 {offsets = [0, 96], sizes = [2, 32], strides = [1, 1]} : vector<2x128xf32> to vector<2x32xf32>
    %80 = vector.extract_strided_slice %68 {offsets = [0, 128], sizes = [2, 1], strides = [1, 1]} : vector<2x129xf32> to vector<2x1xf32>
    %cst_29 = arith.constant 0.000000e+00 : f32
    %81 = vector.broadcast %cst_29 : f32 to vector<2x1xf32>
    %82 = arith.cmpf ogt, %80, %81 : vector<2x1xf32>
    %83 = arith.extui %82 : vector<2x1xi1> to vector<2x1xi32>
    %84 = arith.sitofp %83 : vector<2x1xi32> to vector<2x1xf32>
    %85 = arith.mulf %77, %79 : vector<2x32xf32>
    %86 = vector.broadcast %60 : vector<2x1xf32> to vector<2x32xf32>
    %87 = arith.mulf %86, %85 : vector<2x32xf32>
    %cst_30 = arith.constant 1.000000e+00 : f32
    %88 = vector.broadcast %cst_30 : f32 to vector<2x1xf32>
    %89 = arith.subf %88, %60 : vector<2x1xf32>
    %90 = arith.mulf %76, %59 : vector<2x32xf32>
    %91 = arith.addf %90, %85 : vector<2x32xf32>
    %92 = vector.broadcast %89 : vector<2x1xf32> to vector<2x32xf32>
    %93 = arith.mulf %92, %91 : vector<2x32xf32>
    %94 = arith.addf %87, %93 : vector<2x32xf32>
    %95 = math.tanh %94 : vector<2x32xf32>
    %96 = arith.mulf %78, %95 : vector<2x32xf32>
    %97 = vector.broadcast %84 : vector<2x1xf32> to vector<2x32xf32>
    %98 = arith.mulf %97, %59 : vector<2x32xf32>
    %99 = tpu.concatenate %96, %98 in 1 : vector<2x32xf32>, vector<2x32xf32> -> vector<2x64xf32>
    %cst_31 = arith.constant dense<0.000000e+00> : vector<2x129xf32>
    %100 = tpu.matmul %99, %57, %cst_31 {dimension_numbers = #tpu.dot_dimension_numbers<[1], [0], [0], [1], [0, 0, 1, 1], [], []>} : vector<2x64xf32>, vector<64x129xf32>, vector<2x129xf32> -> vector<2x129xf32>
    %101 = vector.broadcast %58 : vector<1x129xf32> to vector<2x129xf32>
    %102 = arith.addf %100, %101 : vector<2x129xf32>
    %103 = vector.extract_strided_slice %102 {offsets = [0, 0], sizes = [2, 128], strides = [1, 1]} : vector<2x129xf32> to vector<2x128xf32>
    %104 = math.tanh %103 : vector<2x128xf32>
    %105 = vector.extract_strided_slice %104 {offsets = [0, 0], sizes = [2, 96], strides = [1, 1]} : vector<2x128xf32> to vector<2x96xf32>
    %cst_32 = arith.constant 5.000000e-01 : f32
    %106 = vector.broadcast %cst_32 : f32 to vector<2x96xf32>
    %107 = arith.mulf %105, %106 : vector<2x96xf32>
    %cst_33 = arith.constant 5.000000e-01 : f32
    %108 = vector.broadcast %cst_33 : f32 to vector<2x96xf32>
    %109 = arith.addf %107, %108 : vector<2x96xf32>
    %110 = vector.extract_strided_slice %109 {offsets = [0, 0], sizes = [2, 32], strides = [1, 1]} : vector<2x96xf32> to vector<2x32xf32>
    %111 = vector.extract_strided_slice %109 {offsets = [0, 32], sizes = [2, 32], strides = [1, 1]} : vector<2x96xf32> to vector<2x32xf32>
    %112 = vector.extract_strided_slice %109 {offsets = [0, 64], sizes = [2, 32], strides = [1, 1]} : vector<2x96xf32> to vector<2x32xf32>
    %113 = vector.extract_strided_slice %104 {offsets = [0, 96], sizes = [2, 32], strides = [1, 1]} : vector<2x128xf32> to vector<2x32xf32>
    %114 = vector.extract_strided_slice %102 {offsets = [0, 128], sizes = [2, 1], strides = [1, 1]} : vector<2x129xf32> to vector<2x1xf32>
    %cst_34 = arith.constant 0.000000e+00 : f32
    %115 = vector.broadcast %cst_34 : f32 to vector<2x1xf32>
    %116 = arith.cmpf ogt, %114, %115 : vector<2x1xf32>
    %117 = arith.extui %116 : vector<2x1xi1> to vector<2x1xi32>
    %118 = arith.sitofp %117 : vector<2x1xi32> to vector<2x1xf32>
    %119 = arith.mulf %111, %113 : vector<2x32xf32>
    %120 = vector.broadcast %60 : vector<2x1xf32> to vector<2x32xf32>
    %121 = arith.mulf %120, %119 : vector<2x32xf32>
    %cst_35 = arith.constant 1.000000e+00 : f32
    %122 = vector.broadcast %cst_35 : f32 to vector<2x1xf32>
    %123 = arith.subf %122, %60 : vector<2x1xf32>
    %cst_36 = arith.constant 1.000000e+00 : f32
    %124 = vector.broadcast %cst_36 : f32 to vector<2x1xf32>
    %125 = arith.subf %124, %84 : vector<2x1xf32>
    %126 = arith.mulf %123, %125 : vector<2x1xf32>
    %127 = vector.broadcast %126 : vector<2x1xf32> to vector<2x32xf32>
    %128 = arith.mulf %127, %59 : vector<2x32xf32>
    %129 = arith.addf %121, %128 : vector<2x32xf32>
    %cst_37 = arith.constant 1.000000e+00 : f32
    %130 = vector.broadcast %cst_37 : f32 to vector<2x1xf32>
    %131 = arith.subf %130, %60 : vector<2x1xf32>
    %132 = arith.mulf %131, %84 : vector<2x1xf32>
    %133 = arith.mulf %110, %59 : vector<2x32xf32>
    %134 = arith.addf %133, %119 : vector<2x32xf32>
    %135 = vector.broadcast %132 : vector<2x1xf32> to vector<2x32xf32>
    %136 = arith.mulf %135, %134 : vector<2x32xf32>
    %137 = arith.addf %129, %136 : vector<2x32xf32>
    %138 = math.tanh %137 : vector<2x32xf32>
    %139 = arith.mulf %112, %138 : vector<2x32xf32>
    %140 = vector.broadcast %60 : vector<2x1xf32> to vector<2x32xf32>
    %141 = arith.mulf %140, %139 : vector<2x32xf32>
    %cst_38 = arith.constant 1.000000e+00 : f32
    %142 = vector.broadcast %cst_38 : f32 to vector<2x1xf32>
    %143 = arith.subf %142, %60 : vector<2x1xf32>
    %cst_39 = arith.constant 1.000000e+00 : f32
    %144 = vector.broadcast %cst_39 : f32 to vector<2x1xf32>
    %145 = arith.subf %144, %84 : vector<2x1xf32>
    %146 = arith.mulf %143, %145 : vector<2x1xf32>
    %147 = vector.broadcast %146 : vector<2x1xf32> to vector<2x32xf32>
    %148 = arith.mulf %147, %59 : vector<2x32xf32>
    %149 = arith.addf %141, %148 : vector<2x32xf32>
    %cst_40 = arith.constant 1.000000e+00 : f32
    %150 = vector.broadcast %cst_40 : f32 to vector<2x1xf32>
    %151 = arith.subf %150, %60 : vector<2x1xf32>
    %152 = arith.mulf %151, %84 : vector<2x1xf32>
    %153 = vector.broadcast %152 : vector<2x1xf32> to vector<2x32xf32>
    %154 = arith.mulf %153, %139 : vector<2x32xf32>
    %155 = arith.addf %149, %154 : vector<2x32xf32>
    %156 = tpu.concatenate %96, %155 in 1 : vector<2x32xf32>, vector<2x32xf32> -> vector<2x64xf32>
    %157 = arith.index_cast %61 : i32 to index
    %c0_41 = arith.constant 0 : index
    %158 = vector.load %arg7[%157, %c0_41] : memref<16x64xf32, #tpu.memory_space<vmem>>, vector<2x64xf32>
    tpu.vector_store %arg7[%157, %c0_41], %156 {strides = array<i32>} : memref<16x64xf32, #tpu.memory_space<vmem>>, vector<2x64xf32>,
    %c1_i32 = arith.constant 1 : i32
    %c2_i32_42 = arith.constant 2 : i32
    %159 = arith.muli %c1_i32, %c2_i32_42 : i32
    %160 = vector.broadcast %84 : vector<2x1xf32> to vector<2x32xf32>
    %161 = arith.mulf %160, %155 : vector<2x32xf32>
    %162 = tpu.concatenate %96, %161 in 1 : vector<2x32xf32>, vector<2x32xf32> -> vector<2x64xf32>
    %163 = arith.index_cast %159 : i32 to index
    %c0_43 = arith.constant 0 : index
    %164 = vector.load %arg6[%163, %c0_43] : memref<16x129xf32, #tpu.memory_space<vmem>>, vector<2x129xf32>
    %cst_44 = arith.constant dense<0.000000e+00> : vector<2x129xf32>
    %165 = tpu.matmul %162, %56, %cst_44 {dimension_numbers = #tpu.dot_dimension_numbers<[1], [0], [0], [1], [0, 0, 1, 1], [], []>} : vector<2x64xf32>, vector<64x129xf32>, vector<2x129xf32> -> vector<2x129xf32>
    %166 = arith.addf %164, %165 : vector<2x129xf32>
    %167 = vector.extract_strided_slice %166 {offsets = [0, 0], sizes = [2, 128], strides = [1, 1]} : vector<2x129xf32> to vector<2x128xf32>
    %168 = math.tanh %167 : vector<2x128xf32>
    %169 = vector.extract_strided_slice %168 {offsets = [0, 0], sizes = [2, 96], strides = [1, 1]} : vector<2x128xf32> to vector<2x96xf32>
    %cst_45 = arith.constant 5.000000e-01 : f32
    %170 = vector.broadcast %cst_45 : f32 to vector<2x96xf32>
    %171 = arith.mulf %169, %170 : vector<2x96xf32>
    %cst_46 = arith.constant 5.000000e-01 : f32
    %172 = vector.broadcast %cst_46 : f32 to vector<2x96xf32>
    %173 = arith.addf %171, %172 : vector<2x96xf32>
    %174 = vector.extract_strided_slice %173 {offsets = [0, 0], sizes = [2, 32], strides = [1, 1]} : vector<2x96xf32> to vector<2x32xf32>
    %175 = vector.extract_strided_slice %173 {offsets = [0, 32], sizes = [2, 32], strides = [1, 1]} : vector<2x96xf32> to vector<2x32xf32>
    %176 = vector.extract_strided_slice %173 {offsets = [0, 64], sizes = [2, 32], strides = [1, 1]} : vector<2x96xf32> to vector<2x32xf32>
    %177 = vector.extract_strided_slice %168 {offsets = [0, 96], sizes = [2, 32], strides = [1, 1]} : vector<2x128xf32> to vector<2x32xf32>
    %178 = vector.extract_strided_slice %166 {offsets = [0, 128], sizes = [2, 1], strides = [1, 1]} : vector<2x129xf32> to vector<2x1xf32>
    %cst_47 = arith.constant 0.000000e+00 : f32
    %179 = vector.broadcast %cst_47 : f32 to vector<2x1xf32>
    %180 = arith.cmpf ogt, %178, %179 : vector<2x1xf32>
    %181 = arith.extui %180 : vector<2x1xi1> to vector<2x1xi32>
    %182 = arith.sitofp %181 : vector<2x1xi32> to vector<2x1xf32>
    %183 = arith.mulf %175, %177 : vector<2x32xf32>
    %184 = vector.broadcast %84 : vector<2x1xf32> to vector<2x32xf32>
    %185 = arith.mulf %184, %183 : vector<2x32xf32>
    %cst_48 = arith.constant 1.000000e+00 : f32
    %186 = vector.broadcast %cst_48 : f32 to vector<2x1xf32>
    %187 = arith.subf %186, %84 : vector<2x1xf32>
    %188 = arith.mulf %174, %94 : vector<2x32xf32>
    %189 = arith.addf %188, %183 : vector<2x32xf32>
    %190 = vector.broadcast %187 : vector<2x1xf32> to vector<2x32xf32>
    %191 = arith.mulf %190, %189 : vector<2x32xf32>
    %192 = arith.addf %185, %191 : vector<2x32xf32>
    %193 = math.tanh %192 : vector<2x32xf32>
    %194 = arith.mulf %176, %193 : vector<2x32xf32>
    %195 = vector.broadcast %182 : vector<2x1xf32> to vector<2x32xf32>
    %196 = arith.mulf %195, %155 : vector<2x32xf32>
    %197 = tpu.concatenate %194, %196 in 1 : vector<2x32xf32>, vector<2x32xf32> -> vector<2x64xf32>
    %cst_49 = arith.constant dense<0.000000e+00> : vector<2x129xf32>
    %198 = tpu.matmul %197, %57, %cst_49 {dimension_numbers = #tpu.dot_dimension_numbers<[1], [0], [0], [1], [0, 0, 1, 1], [], []>} : vector<2x64xf32>, vector<64x129xf32>, vector<2x129xf32> -> vector<2x129xf32>
    %199 = vector.broadcast %58 : vector<1x129xf32> to vector<2x129xf32>
    %200 = arith.addf %198, %199 : vector<2x129xf32>
    %201 = vector.extract_strided_slice %200 {offsets = [0, 0], sizes = [2, 128], strides = [1, 1]} : vector<2x129xf32> to vector<2x128xf32>
    %202 = math.tanh %201 : vector<2x128xf32>
    %203 = vector.extract_strided_slice %202 {offsets = [0, 0], sizes = [2, 96], strides = [1, 1]} : vector<2x128xf32> to vector<2x96xf32>
    %cst_50 = arith.constant 5.000000e-01 : f32
    %204 = vector.broadcast %cst_50 : f32 to vector<2x96xf32>
    %205 = arith.mulf %203, %204 : vector<2x96xf32>
    %cst_51 = arith.constant 5.000000e-01 : f32
    %206 = vector.broadcast %cst_51 : f32 to vector<2x96xf32>
    %207 = arith.addf %205, %206 : vector<2x96xf32>
    %208 = vector.extract_strided_slice %207 {offsets = [0, 0], sizes = [2, 32], strides = [1, 1]} : vector<2x96xf32> to vector<2x32xf32>
    %209 = vector.extract_strided_slice %207 {offsets = [0, 32], sizes = [2, 32], strides = [1, 1]} : vector<2x96xf32> to vector<2x32xf32>
    %210 = vector.extract_strided_slice %207 {offsets = [0, 64], sizes = [2, 32], strides = [1, 1]} : vector<2x96xf32> to vector<2x32xf32>
    %211 = vector.extract_strided_slice %202 {offsets = [0, 96], sizes = [2, 32], strides = [1, 1]} : vector<2x128xf32> to vector<2x32xf32>
    %212 = vector.extract_strided_slice %200 {offsets = [0, 128], sizes = [2, 1], strides = [1, 1]} : vector<2x129xf32> to vector<2x1xf32>
    %cst_52 = arith.constant 0.000000e+00 : f32
    %213 = vector.broadcast %cst_52 : f32 to vector<2x1xf32>
    %214 = arith.cmpf ogt, %212, %213 : vector<2x1xf32>
    %215 = arith.extui %214 : vector<2x1xi1> to vector<2x1xi32>
    %216 = arith.sitofp %215 : vector<2x1xi32> to vector<2x1xf32>
    %217 = arith.mulf %209, %211 : vector<2x32xf32>
    %218 = vector.broadcast %118 : vector<2x1xf32> to vector<2x32xf32>
    %219 = arith.mulf %218, %217 : vector<2x32xf32>
    %cst_53 = arith.constant 1.000000e+00 : f32
    %220 = vector.broadcast %cst_53 : f32 to vector<2x1xf32>
    %221 = arith.subf %220, %118 : vector<2x1xf32>
    %cst_54 = arith.constant 1.000000e+00 : f32
    %222 = vector.broadcast %cst_54 : f32 to vector<2x1xf32>
    %223 = arith.subf %222, %182 : vector<2x1xf32>
    %224 = arith.mulf %221, %223 : vector<2x1xf32>
    %225 = vector.broadcast %224 : vector<2x1xf32> to vector<2x32xf32>
    %226 = arith.mulf %225, %137 : vector<2x32xf32>
    %227 = arith.addf %219, %226 : vector<2x32xf32>
    %cst_55 = arith.constant 1.000000e+00 : f32
    %228 = vector.broadcast %cst_55 : f32 to vector<2x1xf32>
    %229 = arith.subf %228, %118 : vector<2x1xf32>
    %230 = arith.mulf %229, %182 : vector<2x1xf32>
    %231 = arith.mulf %208, %137 : vector<2x32xf32>
    %232 = arith.addf %231, %217 : vector<2x32xf32>
    %233 = vector.broadcast %230 : vector<2x1xf32> to vector<2x32xf32>
    %234 = arith.mulf %233, %232 : vector<2x32xf32>
    %235 = arith.addf %227, %234 : vector<2x32xf32>
    %236 = math.tanh %235 : vector<2x32xf32>
    %237 = arith.mulf %210, %236 : vector<2x32xf32>
    %238 = vector.broadcast %118 : vector<2x1xf32> to vector<2x32xf32>
    %239 = arith.mulf %238, %237 : vector<2x32xf32>
    %cst_56 = arith.constant 1.000000e+00 : f32
    %240 = vector.broadcast %cst_56 : f32 to vector<2x1xf32>
    %241 = arith.subf %240, %118 : vector<2x1xf32>
    %cst_57 = arith.constant 1.000000e+00 : f32
    %242 = vector.broadcast %cst_57 : f32 to vector<2x1xf32>
    %243 = arith.subf %242, %182 : vector<2x1xf32>
    %244 = arith.mulf %241, %243 : vector<2x1xf32>
    %245 = vector.broadcast %244 : vector<2x1xf32> to vector<2x32xf32>
    %246 = arith.mulf %245, %155 : vector<2x32xf32>
    %247 = arith.addf %239, %246 : vector<2x32xf32>
    %cst_58 = arith.constant 1.000000e+00 : f32
    %248 = vector.broadcast %cst_58 : f32 to vector<2x1xf32>
    %249 = arith.subf %248, %118 : vector<2x1xf32>
    %250 = arith.mulf %249, %182 : vector<2x1xf32>
    %251 = vector.broadcast %250 : vector<2x1xf32> to vector<2x32xf32>
    %252 = arith.mulf %251, %237 : vector<2x32xf32>
    %253 = arith.addf %247, %252 : vector<2x32xf32>
    %254 = tpu.concatenate %194, %253 in 1 : vector<2x32xf32>, vector<2x32xf32> -> vector<2x64xf32>
    %255 = arith.index_cast %159 : i32 to index
    %c0_59 = arith.constant 0 : index
    %256 = vector.load %arg7[%255, %c0_59] : memref<16x64xf32, #tpu.memory_space<vmem>>, vector<2x64xf32>
    tpu.vector_store %arg7[%255, %c0_59], %254 {strides = array<i32>} : memref<16x64xf32, #tpu.memory_space<vmem>>, vector<2x64xf32>,
    %c2_i32_60 = arith.constant 2 : i32
    %c2_i32_61 = arith.constant 2 : i32
    %257 = arith.muli %c2_i32_60, %c2_i32_61 : i32
    %258 = vector.broadcast %182 : vector<2x1xf32> to vector<2x32xf32>
    %259 = arith.mulf %258, %253 : vector<2x32xf32>
    %260 = tpu.concatenate %194, %259 in 1 : vector<2x32xf32>, vector<2x32xf32> -> vector<2x64xf32>
    %261 = arith.index_cast %257 : i32 to index
    %c0_62 = arith.constant 0 : index
    %262 = vector.load %arg6[%261, %c0_62] : memref<16x129xf32, #tpu.memory_space<vmem>>, vector<2x129xf32>
    %cst_63 = arith.constant dense<0.000000e+00> : vector<2x129xf32>
    %263 = tpu.matmul %260, %56, %cst_63 {dimension_numbers = #tpu.dot_dimension_numbers<[1], [0], [0], [1], [0, 0, 1, 1], [], []>} : vector<2x64xf32>, vector<64x129xf32>, vector<2x129xf32> -> vector<2x129xf32>
    %264 = arith.addf %262, %263 : vector<2x129xf32>
    %265 = vector.extract_strided_slice %264 {offsets = [0, 0], sizes = [2, 128], strides = [1, 1]} : vector<2x129xf32> to vector<2x128xf32>
    %266 = math.tanh %265 : vector<2x128xf32>
    %267 = vector.extract_strided_slice %266 {offsets = [0, 0], sizes = [2, 96], strides = [1, 1]} : vector<2x128xf32> to vector<2x96xf32>
    %cst_64 = arith.constant 5.000000e-01 : f32
    %268 = vector.broadcast %cst_64 : f32 to vector<2x96xf32>
    %269 = arith.mulf %267, %268 : vector<2x96xf32>
    %cst_65 = arith.constant 5.000000e-01 : f32
    %270 = vector.broadcast %cst_65 : f32 to vector<2x96xf32>
    %271 = arith.addf %269, %270 : vector<2x96xf32>
    %272 = vector.extract_strided_slice %271 {offsets = [0, 0], sizes = [2, 32], strides = [1, 1]} : vector<2x96xf32> to vector<2x32xf32>
    %273 = vector.extract_strided_slice %271 {offsets = [0, 32], sizes = [2, 32], strides = [1, 1]} : vector<2x96xf32> to vector<2x32xf32>
    %274 = vector.extract_strided_slice %271 {offsets = [0, 64], sizes = [2, 32], strides = [1, 1]} : vector<2x96xf32> to vector<2x32xf32>
    %275 = vector.extract_strided_slice %266 {offsets = [0, 96], sizes = [2, 32], strides = [1, 1]} : vector<2x128xf32> to vector<2x32xf32>
    %276 = vector.extract_strided_slice %264 {offsets = [0, 128], sizes = [2, 1], strides = [1, 1]} : vector<2x129xf32> to vector<2x1xf32>
    %cst_66 = arith.constant 0.000000e+00 : f32
    %277 = vector.broadcast %cst_66 : f32 to vector<2x1xf32>
    %278 = arith.cmpf ogt, %276, %277 : vector<2x1xf32>
    %279 = arith.extui %278 : vector<2x1xi1> to vector<2x1xi32>
    %280 = arith.sitofp %279 : vector<2x1xi32> to vector<2x1xf32>
    %281 = arith.mulf %273, %275 : vector<2x32xf32>
    %282 = vector.broadcast %182 : vector<2x1xf32> to vector<2x32xf32>
    %283 = arith.mulf %282, %281 : vector<2x32xf32>
    %cst_67 = arith.constant 1.000000e+00 : f32
    %284 = vector.broadcast %cst_67 : f32 to vector<2x1xf32>
    %285 = arith.subf %284, %182 : vector<2x1xf32>
    %286 = arith.mulf %272, %192 : vector<2x32xf32>
    %287 = arith.addf %286, %281 : vector<2x32xf32>
    %288 = vector.broadcast %285 : vector<2x1xf32> to vector<2x32xf32>
    %289 = arith.mulf %288, %287 : vector<2x32xf32>
    %290 = arith.addf %283, %289 : vector<2x32xf32>
    %291 = math.tanh %290 : vector<2x32xf32>
    %292 = arith.mulf %274, %291 : vector<2x32xf32>
    %293 = vector.broadcast %280 : vector<2x1xf32> to vector<2x32xf32>
    %294 = arith.mulf %293, %253 : vector<2x32xf32>
    %295 = tpu.concatenate %292, %294 in 1 : vector<2x32xf32>, vector<2x32xf32> -> vector<2x64xf32>
    %cst_68 = arith.constant dense<0.000000e+00> : vector<2x129xf32>
    %296 = tpu.matmul %295, %57, %cst_68 {dimension_numbers = #tpu.dot_dimension_numbers<[1], [0], [0], [1], [0, 0, 1, 1], [], []>} : vector<2x64xf32>, vector<64x129xf32>, vector<2x129xf32> -> vector<2x129xf32>
    %297 = vector.broadcast %58 : vector<1x129xf32> to vector<2x129xf32>
    %298 = arith.addf %296, %297 : vector<2x129xf32>
    %299 = vector.extract_strided_slice %298 {offsets = [0, 0], sizes = [2, 128], strides = [1, 1]} : vector<2x129xf32> to vector<2x128xf32>
    %300 = math.tanh %299 : vector<2x128xf32>
    %301 = vector.extract_strided_slice %300 {offsets = [0, 0], sizes = [2, 96], strides = [1, 1]} : vector<2x128xf32> to vector<2x96xf32>
    %cst_69 = arith.constant 5.000000e-01 : f32
    %302 = vector.broadcast %cst_69 : f32 to vector<2x96xf32>
    %303 = arith.mulf %301, %302 : vector<2x96xf32>
    %cst_70 = arith.constant 5.000000e-01 : f32
    %304 = vector.broadcast %cst_70 : f32 to vector<2x96xf32>
    %305 = arith.addf %303, %304 : vector<2x96xf32>
    %306 = vector.extract_strided_slice %305 {offsets = [0, 0], sizes = [2, 32], strides = [1, 1]} : vector<2x96xf32> to vector<2x32xf32>
    %307 = vector.extract_strided_slice %305 {offsets = [0, 32], sizes = [2, 32], strides = [1, 1]} : vector<2x96xf32> to vector<2x32xf32>
    %308 = vector.extract_strided_slice %305 {offsets = [0, 64], sizes = [2, 32], strides = [1, 1]} : vector<2x96xf32> to vector<2x32xf32>
    %309 = vector.extract_strided_slice %300 {offsets = [0, 96], sizes = [2, 32], strides = [1, 1]} : vector<2x128xf32> to vector<2x32xf32>
    %310 = vector.extract_strided_slice %298 {offsets = [0, 128], sizes = [2, 1], strides = [1, 1]} : vector<2x129xf32> to vector<2x1xf32>
    %cst_71 = arith.constant 0.000000e+00 : f32
    %311 = vector.broadcast %cst_71 : f32 to vector<2x1xf32>
    %312 = arith.cmpf ogt, %310, %311 : vector<2x1xf32>
    %313 = arith.extui %312 : vector<2x1xi1> to vector<2x1xi32>
    %314 = arith.sitofp %313 : vector<2x1xi32> to vector<2x1xf32>
    %315 = arith.mulf %307, %309 : vector<2x32xf32>
    %316 = vector.broadcast %216 : vector<2x1xf32> to vector<2x32xf32>
    %317 = arith.mulf %316, %315 : vector<2x32xf32>
    %cst_72 = arith.constant 1.000000e+00 : f32
    %318 = vector.broadcast %cst_72 : f32 to vector<2x1xf32>
    %319 = arith.subf %318, %216 : vector<2x1xf32>
    %cst_73 = arith.constant 1.000000e+00 : f32
    %320 = vector.broadcast %cst_73 : f32 to vector<2x1xf32>
    %321 = arith.subf %320, %280 : vector<2x1xf32>
    %322 = arith.mulf %319, %321 : vector<2x1xf32>
    %323 = vector.broadcast %322 : vector<2x1xf32> to vector<2x32xf32>
    %324 = arith.mulf %323, %235 : vector<2x32xf32>
    %325 = arith.addf %317, %324 : vector<2x32xf32>
    %cst_74 = arith.constant 1.000000e+00 : f32
    %326 = vector.broadcast %cst_74 : f32 to vector<2x1xf32>
    %327 = arith.subf %326, %216 : vector<2x1xf32>
    %328 = arith.mulf %327, %280 : vector<2x1xf32>
    %329 = arith.mulf %306, %235 : vector<2x32xf32>
    %330 = arith.addf %329, %315 : vector<2x32xf32>
    %331 = vector.broadcast %328 : vector<2x1xf32> to vector<2x32xf32>
    %332 = arith.mulf %331, %330 : vector<2x32xf32>
    %333 = arith.addf %325, %332 : vector<2x32xf32>
    %334 = math.tanh %333 : vector<2x32xf32>
    %335 = arith.mulf %308, %334 : vector<2x32xf32>
    %336 = vector.broadcast %216 : vector<2x1xf32> to vector<2x32xf32>
    %337 = arith.mulf %336, %335 : vector<2x32xf32>
    %cst_75 = arith.constant 1.000000e+00 : f32
    %338 = vector.broadcast %cst_75 : f32 to vector<2x1xf32>
    %339 = arith.subf %338, %216 : vector<2x1xf32>
    %cst_76 = arith.constant 1.000000e+00 : f32
    %340 = vector.broadcast %cst_76 : f32 to vector<2x1xf32>
    %341 = arith.subf %340, %280 : vector<2x1xf32>
    %342 = arith.mulf %339, %341 : vector<2x1xf32>
    %343 = vector.broadcast %342 : vector<2x1xf32> to vector<2x32xf32>
    %344 = arith.mulf %343, %253 : vector<2x32xf32>
    %345 = arith.addf %337, %344 : vector<2x32xf32>
    %cst_77 = arith.constant 1.000000e+00 : f32
    %346 = vector.broadcast %cst_77 : f32 to vector<2x1xf32>
    %347 = arith.subf %346, %216 : vector<2x1xf32>
    %348 = arith.mulf %347, %280 : vector<2x1xf32>
    %349 = vector.broadcast %348 : vector<2x1xf32> to vector<2x32xf32>
    %350 = arith.mulf %349, %335 : vector<2x32xf32>
    %351 = arith.addf %345, %350 : vector<2x32xf32>
    %352 = tpu.concatenate %292, %351 in 1 : vector<2x32xf32>, vector<2x32xf32> -> vector<2x64xf32>
    %353 = arith.index_cast %257 : i32 to index
    %c0_78 = arith.constant 0 : index
    %354 = vector.load %arg7[%353, %c0_78] : memref<16x64xf32, #tpu.memory_space<vmem>>, vector<2x64xf32>
    tpu.vector_store %arg7[%353, %c0_78], %352 {strides = array<i32>} : memref<16x64xf32, #tpu.memory_space<vmem>>, vector<2x64xf32>,
    %c3_i32 = arith.constant 3 : i32
    %c2_i32_79 = arith.constant 2 : i32
    %355 = arith.muli %c3_i32, %c2_i32_79 : i32
    %356 = vector.broadcast %280 : vector<2x1xf32> to vector<2x32xf32>
    %357 = arith.mulf %356, %351 : vector<2x32xf32>
    %358 = tpu.concatenate %292, %357 in 1 : vector<2x32xf32>, vector<2x32xf32> -> vector<2x64xf32>
    %359 = arith.index_cast %355 : i32 to index
    %c0_80 = arith.constant 0 : index
    %360 = vector.load %arg6[%359, %c0_80] : memref<16x129xf32, #tpu.memory_space<vmem>>, vector<2x129xf32>
    %cst_81 = arith.constant dense<0.000000e+00> : vector<2x129xf32>
    %361 = tpu.matmul %358, %56, %cst_81 {dimension_numbers = #tpu.dot_dimension_numbers<[1], [0], [0], [1], [0, 0, 1, 1], [], []>} : vector<2x64xf32>, vector<64x129xf32>, vector<2x129xf32> -> vector<2x129xf32>
    %362 = arith.addf %360, %361 : vector<2x129xf32>
    %363 = vector.extract_strided_slice %362 {offsets = [0, 0], sizes = [2, 128], strides = [1, 1]} : vector<2x129xf32> to vector<2x128xf32>
    %364 = math.tanh %363 : vector<2x128xf32>
    %365 = vector.extract_strided_slice %364 {offsets = [0, 0], sizes = [2, 96], strides = [1, 1]} : vector<2x128xf32> to vector<2x96xf32>
    %cst_82 = arith.constant 5.000000e-01 : f32
    %366 = vector.broadcast %cst_82 : f32 to vector<2x96xf32>
    %367 = arith.mulf %365, %366 : vector<2x96xf32>
    %cst_83 = arith.constant 5.000000e-01 : f32
    %368 = vector.broadcast %cst_83 : f32 to vector<2x96xf32>
    %369 = arith.addf %367, %368 : vector<2x96xf32>
    %370 = vector.extract_strided_slice %369 {offsets = [0, 0], sizes = [2, 32], strides = [1, 1]} : vector<2x96xf32> to vector<2x32xf32>
    %371 = vector.extract_strided_slice %369 {offsets = [0, 32], sizes = [2, 32], strides = [1, 1]} : vector<2x96xf32> to vector<2x32xf32>
    %372 = vector.extract_strided_slice %369 {offsets = [0, 64], sizes = [2, 32], strides = [1, 1]} : vector<2x96xf32> to vector<2x32xf32>
    %373 = vector.extract_strided_slice %364 {offsets = [0, 96], sizes = [2, 32], strides = [1, 1]} : vector<2x128xf32> to vector<2x32xf32>
    %374 = vector.extract_strided_slice %362 {offsets = [0, 128], sizes = [2, 1], strides = [1, 1]} : vector<2x129xf32> to vector<2x1xf32>
    %cst_84 = arith.constant 0.000000e+00 : f32
    %375 = vector.broadcast %cst_84 : f32 to vector<2x1xf32>
    %376 = arith.cmpf ogt, %374, %375 : vector<2x1xf32>
    %377 = arith.extui %376 : vector<2x1xi1> to vector<2x1xi32>
    %378 = arith.sitofp %377 : vector<2x1xi32> to vector<2x1xf32>
    %379 = arith.mulf %371, %373 : vector<2x32xf32>
    %380 = vector.broadcast %280 : vector<2x1xf32> to vector<2x32xf32>
    %381 = arith.mulf %380, %379 : vector<2x32xf32>
    %cst_85 = arith.constant 1.000000e+00 : f32
    %382 = vector.broadcast %cst_85 : f32 to vector<2x1xf32>
    %383 = arith.subf %382, %280 : vector<2x1xf32>
    %384 = arith.mulf %370, %290 : vector<2x32xf32>
    %385 = arith.addf %384, %379 : vector<2x32xf32>
    %386 = vector.broadcast %383 : vector<2x1xf32> to vector<2x32xf32>
    %387 = arith.mulf %386, %385 : vector<2x32xf32>
    %388 = arith.addf %381, %387 : vector<2x32xf32>
    %389 = math.tanh %388 : vector<2x32xf32>
    %390 = arith.mulf %372, %389 : vector<2x32xf32>
    %391 = vector.broadcast %378 : vector<2x1xf32> to vector<2x32xf32>
    %392 = arith.mulf %391, %351 : vector<2x32xf32>
    %393 = tpu.concatenate %390, %392 in 1 : vector<2x32xf32>, vector<2x32xf32> -> vector<2x64xf32>
    %cst_86 = arith.constant dense<0.000000e+00> : vector<2x129xf32>
    %394 = tpu.matmul %393, %57, %cst_86 {dimension_numbers = #tpu.dot_dimension_numbers<[1], [0], [0], [1], [0, 0, 1, 1], [], []>} : vector<2x64xf32>, vector<64x129xf32>, vector<2x129xf32> -> vector<2x129xf32>
    %395 = vector.broadcast %58 : vector<1x129xf32> to vector<2x129xf32>
    %396 = arith.addf %394, %395 : vector<2x129xf32>
    %397 = vector.extract_strided_slice %396 {offsets = [0, 0], sizes = [2, 128], strides = [1, 1]} : vector<2x129xf32> to vector<2x128xf32>
    %398 = math.tanh %397 : vector<2x128xf32>
    %399 = vector.extract_strided_slice %398 {offsets = [0, 0], sizes = [2, 96], strides = [1, 1]} : vector<2x128xf32> to vector<2x96xf32>
    %cst_87 = arith.constant 5.000000e-01 : f32
    %400 = vector.broadcast %cst_87 : f32 to vector<2x96xf32>
    %401 = arith.mulf %399, %400 : vector<2x96xf32>
    %cst_88 = arith.constant 5.000000e-01 : f32
    %402 = vector.broadcast %cst_88 : f32 to vector<2x96xf32>
    %403 = arith.addf %401, %402 : vector<2x96xf32>
    %404 = vector.extract_strided_slice %403 {offsets = [0, 0], sizes = [2, 32], strides = [1, 1]} : vector<2x96xf32> to vector<2x32xf32>
    %405 = vector.extract_strided_slice %403 {offsets = [0, 32], sizes = [2, 32], strides = [1, 1]} : vector<2x96xf32> to vector<2x32xf32>
    %406 = vector.extract_strided_slice %403 {offsets = [0, 64], sizes = [2, 32], strides = [1, 1]} : vector<2x96xf32> to vector<2x32xf32>
    %407 = vector.extract_strided_slice %398 {offsets = [0, 96], sizes = [2, 32], strides = [1, 1]} : vector<2x128xf32> to vector<2x32xf32>
    %408 = vector.extract_strided_slice %396 {offsets = [0, 128], sizes = [2, 1], strides = [1, 1]} : vector<2x129xf32> to vector<2x1xf32>
    %cst_89 = arith.constant 0.000000e+00 : f32
    %409 = vector.broadcast %cst_89 : f32 to vector<2x1xf32>
    %410 = arith.cmpf ogt, %408, %409 : vector<2x1xf32>
    %411 = arith.extui %410 : vector<2x1xi1> to vector<2x1xi32>
    %412 = arith.sitofp %411 : vector<2x1xi32> to vector<2x1xf32>
    %413 = arith.mulf %405, %407 : vector<2x32xf32>
    %414 = vector.broadcast %314 : vector<2x1xf32> to vector<2x32xf32>
    %415 = arith.mulf %414, %413 : vector<2x32xf32>
    %cst_90 = arith.constant 1.000000e+00 : f32
    %416 = vector.broadcast %cst_90 : f32 to vector<2x1xf32>
    %417 = arith.subf %416, %314 : vector<2x1xf32>
    %cst_91 = arith.constant 1.000000e+00 : f32
    %418 = vector.broadcast %cst_91 : f32 to vector<2x1xf32>
    %419 = arith.subf %418, %378 : vector<2x1xf32>
    %420 = arith.mulf %417, %419 : vector<2x1xf32>
    %421 = vector.broadcast %420 : vector<2x1xf32> to vector<2x32xf32>
    %422 = arith.mulf %421, %333 : vector<2x32xf32>
    %423 = arith.addf %415, %422 : vector<2x32xf32>
    %cst_92 = arith.constant 1.000000e+00 : f32
    %424 = vector.broadcast %cst_92 : f32 to vector<2x1xf32>
    %425 = arith.subf %424, %314 : vector<2x1xf32>
    %426 = arith.mulf %425, %378 : vector<2x1xf32>
    %427 = arith.mulf %404, %333 : vector<2x32xf32>
    %428 = arith.addf %427, %413 : vector<2x32xf32>
    %429 = vector.broadcast %426 : vector<2x1xf32> to vector<2x32xf32>
    %430 = arith.mulf %429, %428 : vector<2x32xf32>
    %431 = arith.addf %423, %430 : vector<2x32xf32>
    %432 = math.tanh %431 : vector<2x32xf32>
    %433 = arith.mulf %406, %432 : vector<2x32xf32>
    %434 = vector.broadcast %314 : vector<2x1xf32> to vector<2x32xf32>
    %435 = arith.mulf %434, %433 : vector<2x32xf32>
    %cst_93 = arith.constant 1.000000e+00 : f32
    %436 = vector.broadcast %cst_93 : f32 to vector<2x1xf32>
    %437 = arith.subf %436, %314 : vector<2x1xf32>
    %cst_94 = arith.constant 1.000000e+00 : f32
    %438 = vector.broadcast %cst_94 : f32 to vector<2x1xf32>
    %439 = arith.subf %438, %378 : vector<2x1xf32>
    %440 = arith.mulf %437, %439 : vector<2x1xf32>
    %441 = vector.broadcast %440 : vector<2x1xf32> to vector<2x32xf32>
    %442 = arith.mulf %441, %351 : vector<2x32xf32>
    %443 = arith.addf %435, %442 : vector<2x32xf32>
    %cst_95 = arith.constant 1.000000e+00 : f32
    %444 = vector.broadcast %cst_95 : f32 to vector<2x1xf32>
    %445 = arith.subf %444, %314 : vector<2x1xf32>
    %446 = arith.mulf %445, %378 : vector<2x1xf32>
    %447 = vector.broadcast %446 : vector<2x1xf32> to vector<2x32xf32>
    %448 = arith.mulf %447, %433 : vector<2x32xf32>
    %449 = arith.addf %443, %448 : vector<2x32xf32>
    %450 = tpu.concatenate %390, %449 in 1 : vector<2x32xf32>, vector<2x32xf32> -> vector<2x64xf32>
    %451 = arith.index_cast %355 : i32 to index
    %c0_96 = arith.constant 0 : index
    %452 = vector.load %arg7[%451, %c0_96] : memref<16x64xf32, #tpu.memory_space<vmem>>, vector<2x64xf32>
    tpu.vector_store %arg7[%451, %c0_96], %450 {strides = array<i32>} : memref<16x64xf32, #tpu.memory_space<vmem>>, vector<2x64xf32>,
    %c4_i32 = arith.constant 4 : i32
    %c2_i32_97 = arith.constant 2 : i32
    %453 = arith.muli %c4_i32, %c2_i32_97 : i32
    %454 = vector.broadcast %378 : vector<2x1xf32> to vector<2x32xf32>
    %455 = arith.mulf %454, %449 : vector<2x32xf32>
    %456 = tpu.concatenate %390, %455 in 1 : vector<2x32xf32>, vector<2x32xf32> -> vector<2x64xf32>
    %457 = arith.index_cast %453 : i32 to index
    %c0_98 = arith.constant 0 : index
    %458 = vector.load %arg6[%457, %c0_98] : memref<16x129xf32, #tpu.memory_space<vmem>>, vector<2x129xf32>
    %cst_99 = arith.constant dense<0.000000e+00> : vector<2x129xf32>
    %459 = tpu.matmul %456, %56, %cst_99 {dimension_numbers = #tpu.dot_dimension_numbers<[1], [0], [0], [1], [0, 0, 1, 1], [], []>} : vector<2x64xf32>, vector<64x129xf32>, vector<2x129xf32> -> vector<2x129xf32>
    %460 = arith.addf %458, %459 : vector<2x129xf32>
    %461 = vector.extract_strided_slice %460 {offsets = [0, 0], sizes = [2, 128], strides = [1, 1]} : vector<2x129xf32> to vector<2x128xf32>
    %462 = math.tanh %461 : vector<2x128xf32>
    %463 = vector.extract_strided_slice %462 {offsets = [0, 0], sizes = [2, 96], strides = [1, 1]} : vector<2x128xf32> to vector<2x96xf32>
    %cst_100 = arith.constant 5.000000e-01 : f32
    %464 = vector.broadcast %cst_100 : f32 to vector<2x96xf32>
    %465 = arith.mulf %463, %464 : vector<2x96xf32>
    %cst_101 = arith.constant 5.000000e-01 : f32
    %466 = vector.broadcast %cst_101 : f32 to vector<2x96xf32>
    %467 = arith.addf %465, %466 : vector<2x96xf32>
    %468 = vector.extract_strided_slice %467 {offsets = [0, 0], sizes = [2, 32], strides = [1, 1]} : vector<2x96xf32> to vector<2x32xf32>
    %469 = vector.extract_strided_slice %467 {offsets = [0, 32], sizes = [2, 32], strides = [1, 1]} : vector<2x96xf32> to vector<2x32xf32>
    %470 = vector.extract_strided_slice %467 {offsets = [0, 64], sizes = [2, 32], strides = [1, 1]} : vector<2x96xf32> to vector<2x32xf32>
    %471 = vector.extract_strided_slice %462 {offsets = [0, 96], sizes = [2, 32], strides = [1, 1]} : vector<2x128xf32> to vector<2x32xf32>
    %472 = vector.extract_strided_slice %460 {offsets = [0, 128], sizes = [2, 1], strides = [1, 1]} : vector<2x129xf32> to vector<2x1xf32>
    %cst_102 = arith.constant 0.000000e+00 : f32
    %473 = vector.broadcast %cst_102 : f32 to vector<2x1xf32>
    %474 = arith.cmpf ogt, %472, %473 : vector<2x1xf32>
    %475 = arith.extui %474 : vector<2x1xi1> to vector<2x1xi32>
    %476 = arith.sitofp %475 : vector<2x1xi32> to vector<2x1xf32>
    %477 = arith.mulf %469, %471 : vector<2x32xf32>
    %478 = vector.broadcast %378 : vector<2x1xf32> to vector<2x32xf32>
    %479 = arith.mulf %478, %477 : vector<2x32xf32>
    %cst_103 = arith.constant 1.000000e+00 : f32
    %480 = vector.broadcast %cst_103 : f32 to vector<2x1xf32>
    %481 = arith.subf %480, %378 : vector<2x1xf32>
    %482 = arith.mulf %468, %388 : vector<2x32xf32>
    %483 = arith.addf %482, %477 : vector<2x32xf32>
    %484 = vector.broadcast %481 : vector<2x1xf32> to vector<2x32xf32>
    %485 = arith.mulf %484, %483 : vector<2x32xf32>
    %486 = arith.addf %479, %485 : vector<2x32xf32>
    %487 = math.tanh %486 : vector<2x32xf32>
    %488 = arith.mulf %470, %487 : vector<2x32xf32>
    %489 = vector.broadcast %476 : vector<2x1xf32> to vector<2x32xf32>
    %490 = arith.mulf %489, %449 : vector<2x32xf32>
    %491 = tpu.concatenate %488, %490 in 1 : vector<2x32xf32>, vector<2x32xf32> -> vector<2x64xf32>
    %cst_104 = arith.constant dense<0.000000e+00> : vector<2x129xf32>
    %492 = tpu.matmul %491, %57, %cst_104 {dimension_numbers = #tpu.dot_dimension_numbers<[1], [0], [0], [1], [0, 0, 1, 1], [], []>} : vector<2x64xf32>, vector<64x129xf32>, vector<2x129xf32> -> vector<2x129xf32>
    %493 = vector.broadcast %58 : vector<1x129xf32> to vector<2x129xf32>
    %494 = arith.addf %492, %493 : vector<2x129xf32>
    %495 = vector.extract_strided_slice %494 {offsets = [0, 0], sizes = [2, 128], strides = [1, 1]} : vector<2x129xf32> to vector<2x128xf32>
    %496 = math.tanh %495 : vector<2x128xf32>
    %497 = vector.extract_strided_slice %496 {offsets = [0, 0], sizes = [2, 96], strides = [1, 1]} : vector<2x128xf32> to vector<2x96xf32>
    %cst_105 = arith.constant 5.000000e-01 : f32
    %498 = vector.broadcast %cst_105 : f32 to vector<2x96xf32>
    %499 = arith.mulf %497, %498 : vector<2x96xf32>
    %cst_106 = arith.constant 5.000000e-01 : f32
    %500 = vector.broadcast %cst_106 : f32 to vector<2x96xf32>
    %501 = arith.addf %499, %500 : vector<2x96xf32>
    %502 = vector.extract_strided_slice %501 {offsets = [0, 0], sizes = [2, 32], strides = [1, 1]} : vector<2x96xf32> to vector<2x32xf32>
    %503 = vector.extract_strided_slice %501 {offsets = [0, 32], sizes = [2, 32], strides = [1, 1]} : vector<2x96xf32> to vector<2x32xf32>
    %504 = vector.extract_strided_slice %501 {offsets = [0, 64], sizes = [2, 32], strides = [1, 1]} : vector<2x96xf32> to vector<2x32xf32>
    %505 = vector.extract_strided_slice %496 {offsets = [0, 96], sizes = [2, 32], strides = [1, 1]} : vector<2x128xf32> to vector<2x32xf32>
    %506 = vector.extract_strided_slice %494 {offsets = [0, 128], sizes = [2, 1], strides = [1, 1]} : vector<2x129xf32> to vector<2x1xf32>
    %cst_107 = arith.constant 0.000000e+00 : f32
    %507 = vector.broadcast %cst_107 : f32 to vector<2x1xf32>
    %508 = arith.cmpf ogt, %506, %507 : vector<2x1xf32>
    %509 = arith.extui %508 : vector<2x1xi1> to vector<2x1xi32>
    %510 = arith.sitofp %509 : vector<2x1xi32> to vector<2x1xf32>
    %511 = arith.mulf %503, %505 : vector<2x32xf32>
    %512 = vector.broadcast %412 : vector<2x1xf32> to vector<2x32xf32>
    %513 = arith.mulf %512, %511 : vector<2x32xf32>
    %cst_108 = arith.constant 1.000000e+00 : f32
    %514 = vector.broadcast %cst_108 : f32 to vector<2x1xf32>
    %515 = arith.subf %514, %412 : vector<2x1xf32>
    %cst_109 = arith.constant 1.000000e+00 : f32
    %516 = vector.broadcast %cst_109 : f32 to vector<2x1xf32>
    %517 = arith.subf %516, %476 : vector<2x1xf32>
    %518 = arith.mulf %515, %517 : vector<2x1xf32>
    %519 = vector.broadcast %518 : vector<2x1xf32> to vector<2x32xf32>
    %520 = arith.mulf %519, %431 : vector<2x32xf32>
    %521 = arith.addf %513, %520 : vector<2x32xf32>
    %cst_110 = arith.constant 1.000000e+00 : f32
    %522 = vector.broadcast %cst_110 : f32 to vector<2x1xf32>
    %523 = arith.subf %522, %412 : vector<2x1xf32>
    %524 = arith.mulf %523, %476 : vector<2x1xf32>
    %525 = arith.mulf %502, %431 : vector<2x32xf32>
    %526 = arith.addf %525, %511 : vector<2x32xf32>
    %527 = vector.broadcast %524 : vector<2x1xf32> to vector<2x32xf32>
    %528 = arith.mulf %527, %526 : vector<2x32xf32>
    %529 = arith.addf %521, %528 : vector<2x32xf32>
    %530 = math.tanh %529 : vector<2x32xf32>
    %531 = arith.mulf %504, %530 : vector<2x32xf32>
    %532 = vector.broadcast %412 : vector<2x1xf32> to vector<2x32xf32>
    %533 = arith.mulf %532, %531 : vector<2x32xf32>
    %cst_111 = arith.constant 1.000000e+00 : f32
    %534 = vector.broadcast %cst_111 : f32 to vector<2x1xf32>
    %535 = arith.subf %534, %412 : vector<2x1xf32>
    %cst_112 = arith.constant 1.000000e+00 : f32
    %536 = vector.broadcast %cst_112 : f32 to vector<2x1xf32>
    %537 = arith.subf %536, %476 : vector<2x1xf32>
    %538 = arith.mulf %535, %537 : vector<2x1xf32>
    %539 = vector.broadcast %538 : vector<2x1xf32> to vector<2x32xf32>
    %540 = arith.mulf %539, %449 : vector<2x32xf32>
    %541 = arith.addf %533, %540 : vector<2x32xf32>
    %cst_113 = arith.constant 1.000000e+00 : f32
    %542 = vector.broadcast %cst_113 : f32 to vector<2x1xf32>
    %543 = arith.subf %542, %412 : vector<2x1xf32>
    %544 = arith.mulf %543, %476 : vector<2x1xf32>
    %545 = vector.broadcast %544 : vector<2x1xf32> to vector<2x32xf32>
    %546 = arith.mulf %545, %531 : vector<2x32xf32>
    %547 = arith.addf %541, %546 : vector<2x32xf32>
    %548 = tpu.concatenate %488, %547 in 1 : vector<2x32xf32>, vector<2x32xf32> -> vector<2x64xf32>
    %549 = arith.index_cast %453 : i32 to index
    %c0_114 = arith.constant 0 : index
    %550 = vector.load %arg7[%549, %c0_114] : memref<16x64xf32, #tpu.memory_space<vmem>>, vector<2x64xf32>
    tpu.vector_store %arg7[%549, %c0_114], %548 {strides = array<i32>} : memref<16x64xf32, #tpu.memory_space<vmem>>, vector<2x64xf32>,
    %c5_i32 = arith.constant 5 : i32
    %c2_i32_115 = arith.constant 2 : i32
    %551 = arith.muli %c5_i32, %c2_i32_115 : i32
    %552 = vector.broadcast %476 : vector<2x1xf32> to vector<2x32xf32>
    %553 = arith.mulf %552, %547 : vector<2x32xf32>
    %554 = tpu.concatenate %488, %553 in 1 : vector<2x32xf32>, vector<2x32xf32> -> vector<2x64xf32>
    %555 = arith.index_cast %551 : i32 to index
    %c0_116 = arith.constant 0 : index
    %556 = vector.load %arg6[%555, %c0_116] : memref<16x129xf32, #tpu.memory_space<vmem>>, vector<2x129xf32>
    %cst_117 = arith.constant dense<0.000000e+00> : vector<2x129xf32>
    %557 = tpu.matmul %554, %56, %cst_117 {dimension_numbers = #tpu.dot_dimension_numbers<[1], [0], [0], [1], [0, 0, 1, 1], [], []>} : vector<2x64xf32>, vector<64x129xf32>, vector<2x129xf32> -> vector<2x129xf32>
    %558 = arith.addf %556, %557 : vector<2x129xf32>
    %559 = vector.extract_strided_slice %558 {offsets = [0, 0], sizes = [2, 128], strides = [1, 1]} : vector<2x129xf32> to vector<2x128xf32>
    %560 = math.tanh %559 : vector<2x128xf32>
    %561 = vector.extract_strided_slice %560 {offsets = [0, 0], sizes = [2, 96], strides = [1, 1]} : vector<2x128xf32> to vector<2x96xf32>
    %cst_118 = arith.constant 5.000000e-01 : f32
    %562 = vector.broadcast %cst_118 : f32 to vector<2x96xf32>
    %563 = arith.mulf %561, %562 : vector<2x96xf32>
    %cst_119 = arith.constant 5.000000e-01 : f32
    %564 = vector.broadcast %cst_119 : f32 to vector<2x96xf32>
    %565 = arith.addf %563, %564 : vector<2x96xf32>
    %566 = vector.extract_strided_slice %565 {offsets = [0, 0], sizes = [2, 32], strides = [1, 1]} : vector<2x96xf32> to vector<2x32xf32>
    %567 = vector.extract_strided_slice %565 {offsets = [0, 32], sizes = [2, 32], strides = [1, 1]} : vector<2x96xf32> to vector<2x32xf32>
    %568 = vector.extract_strided_slice %565 {offsets = [0, 64], sizes = [2, 32], strides = [1, 1]} : vector<2x96xf32> to vector<2x32xf32>
    %569 = vector.extract_strided_slice %560 {offsets = [0, 96], sizes = [2, 32], strides = [1, 1]} : vector<2x128xf32> to vector<2x32xf32>
    %570 = vector.extract_strided_slice %558 {offsets = [0, 128], sizes = [2, 1], strides = [1, 1]} : vector<2x129xf32> to vector<2x1xf32>
    %cst_120 = arith.constant 0.000000e+00 : f32
    %571 = vector.broadcast %cst_120 : f32 to vector<2x1xf32>
    %572 = arith.cmpf ogt, %570, %571 : vector<2x1xf32>
    %573 = arith.extui %572 : vector<2x1xi1> to vector<2x1xi32>
    %574 = arith.sitofp %573 : vector<2x1xi32> to vector<2x1xf32>
    %575 = arith.mulf %567, %569 : vector<2x32xf32>
    %576 = vector.broadcast %476 : vector<2x1xf32> to vector<2x32xf32>
    %577 = arith.mulf %576, %575 : vector<2x32xf32>
    %cst_121 = arith.constant 1.000000e+00 : f32
    %578 = vector.broadcast %cst_121 : f32 to vector<2x1xf32>
    %579 = arith.subf %578, %476 : vector<2x1xf32>
    %580 = arith.mulf %566, %486 : vector<2x32xf32>
    %581 = arith.addf %580, %575 : vector<2x32xf32>
    %582 = vector.broadcast %579 : vector<2x1xf32> to vector<2x32xf32>
    %583 = arith.mulf %582, %581 : vector<2x32xf32>
    %584 = arith.addf %577, %583 : vector<2x32xf32>
    %585 = math.tanh %584 : vector<2x32xf32>
    %586 = arith.mulf %568, %585 : vector<2x32xf32>
    %587 = vector.broadcast %574 : vector<2x1xf32> to vector<2x32xf32>
    %588 = arith.mulf %587, %547 : vector<2x32xf32>
    %589 = tpu.concatenate %586, %588 in 1 : vector<2x32xf32>, vector<2x32xf32> -> vector<2x64xf32>
    %cst_122 = arith.constant dense<0.000000e+00> : vector<2x129xf32>
    %590 = tpu.matmul %589, %57, %cst_122 {dimension_numbers = #tpu.dot_dimension_numbers<[1], [0], [0], [1], [0, 0, 1, 1], [], []>} : vector<2x64xf32>, vector<64x129xf32>, vector<2x129xf32> -> vector<2x129xf32>
    %591 = vector.broadcast %58 : vector<1x129xf32> to vector<2x129xf32>
    %592 = arith.addf %590, %591 : vector<2x129xf32>
    %593 = vector.extract_strided_slice %592 {offsets = [0, 0], sizes = [2, 128], strides = [1, 1]} : vector<2x129xf32> to vector<2x128xf32>
    %594 = math.tanh %593 : vector<2x128xf32>
    %595 = vector.extract_strided_slice %594 {offsets = [0, 0], sizes = [2, 96], strides = [1, 1]} : vector<2x128xf32> to vector<2x96xf32>
    %cst_123 = arith.constant 5.000000e-01 : f32
    %596 = vector.broadcast %cst_123 : f32 to vector<2x96xf32>
    %597 = arith.mulf %595, %596 : vector<2x96xf32>
    %cst_124 = arith.constant 5.000000e-01 : f32
    %598 = vector.broadcast %cst_124 : f32 to vector<2x96xf32>
    %599 = arith.addf %597, %598 : vector<2x96xf32>
    %600 = vector.extract_strided_slice %599 {offsets = [0, 0], sizes = [2, 32], strides = [1, 1]} : vector<2x96xf32> to vector<2x32xf32>
    %601 = vector.extract_strided_slice %599 {offsets = [0, 32], sizes = [2, 32], strides = [1, 1]} : vector<2x96xf32> to vector<2x32xf32>
    %602 = vector.extract_strided_slice %599 {offsets = [0, 64], sizes = [2, 32], strides = [1, 1]} : vector<2x96xf32> to vector<2x32xf32>
    %603 = vector.extract_strided_slice %594 {offsets = [0, 96], sizes = [2, 32], strides = [1, 1]} : vector<2x128xf32> to vector<2x32xf32>
    %604 = vector.extract_strided_slice %592 {offsets = [0, 128], sizes = [2, 1], strides = [1, 1]} : vector<2x129xf32> to vector<2x1xf32>
    %cst_125 = arith.constant 0.000000e+00 : f32
    %605 = vector.broadcast %cst_125 : f32 to vector<2x1xf32>
    %606 = arith.cmpf ogt, %604, %605 : vector<2x1xf32>
    %607 = arith.extui %606 : vector<2x1xi1> to vector<2x1xi32>
    %608 = arith.sitofp %607 : vector<2x1xi32> to vector<2x1xf32>
    %609 = arith.mulf %601, %603 : vector<2x32xf32>
    %610 = vector.broadcast %510 : vector<2x1xf32> to vector<2x32xf32>
    %611 = arith.mulf %610, %609 : vector<2x32xf32>
    %cst_126 = arith.constant 1.000000e+00 : f32
    %612 = vector.broadcast %cst_126 : f32 to vector<2x1xf32>
    %613 = arith.subf %612, %510 : vector<2x1xf32>
    %cst_127 = arith.constant 1.000000e+00 : f32
    %614 = vector.broadcast %cst_127 : f32 to vector<2x1xf32>
    %615 = arith.subf %614, %574 : vector<2x1xf32>
    %616 = arith.mulf %613, %615 : vector<2x1xf32>
    %617 = vector.broadcast %616 : vector<2x1xf32> to vector<2x32xf32>
    %618 = arith.mulf %617, %529 : vector<2x32xf32>
    %619 = arith.addf %611, %618 : vector<2x32xf32>
    %cst_128 = arith.constant 1.000000e+00 : f32
    %620 = vector.broadcast %cst_128 : f32 to vector<2x1xf32>
    %621 = arith.subf %620, %510 : vector<2x1xf32>
    %622 = arith.mulf %621, %574 : vector<2x1xf32>
    %623 = arith.mulf %600, %529 : vector<2x32xf32>
    %624 = arith.addf %623, %609 : vector<2x32xf32>
    %625 = vector.broadcast %622 : vector<2x1xf32> to vector<2x32xf32>
    %626 = arith.mulf %625, %624 : vector<2x32xf32>
    %627 = arith.addf %619, %626 : vector<2x32xf32>
    %628 = math.tanh %627 : vector<2x32xf32>
    %629 = arith.mulf %602, %628 : vector<2x32xf32>
    %630 = vector.broadcast %510 : vector<2x1xf32> to vector<2x32xf32>
    %631 = arith.mulf %630, %629 : vector<2x32xf32>
    %cst_129 = arith.constant 1.000000e+00 : f32
    %632 = vector.broadcast %cst_129 : f32 to vector<2x1xf32>
    %633 = arith.subf %632, %510 : vector<2x1xf32>
    %cst_130 = arith.constant 1.000000e+00 : f32
    %634 = vector.broadcast %cst_130 : f32 to vector<2x1xf32>
    %635 = arith.subf %634, %574 : vector<2x1xf32>
    %636 = arith.mulf %633, %635 : vector<2x1xf32>
    %637 = vector.broadcast %636 : vector<2x1xf32> to vector<2x32xf32>
    %638 = arith.mulf %637, %547 : vector<2x32xf32>
    %639 = arith.addf %631, %638 : vector<2x32xf32>
    %cst_131 = arith.constant 1.000000e+00 : f32
    %640 = vector.broadcast %cst_131 : f32 to vector<2x1xf32>
    %641 = arith.subf %640, %510 : vector<2x1xf32>
    %642 = arith.mulf %641, %574 : vector<2x1xf32>
    %643 = vector.broadcast %642 : vector<2x1xf32> to vector<2x32xf32>
    %644 = arith.mulf %643, %629 : vector<2x32xf32>
    %645 = arith.addf %639, %644 : vector<2x32xf32>
    %646 = tpu.concatenate %586, %645 in 1 : vector<2x32xf32>, vector<2x32xf32> -> vector<2x64xf32>
    %647 = arith.index_cast %551 : i32 to index
    %c0_132 = arith.constant 0 : index
    %648 = vector.load %arg7[%647, %c0_132] : memref<16x64xf32, #tpu.memory_space<vmem>>, vector<2x64xf32>
    tpu.vector_store %arg7[%647, %c0_132], %646 {strides = array<i32>} : memref<16x64xf32, #tpu.memory_space<vmem>>, vector<2x64xf32>,
    %c6_i32 = arith.constant 6 : i32
    %c2_i32_133 = arith.constant 2 : i32
    %649 = arith.muli %c6_i32, %c2_i32_133 : i32
    %650 = vector.broadcast %574 : vector<2x1xf32> to vector<2x32xf32>
    %651 = arith.mulf %650, %645 : vector<2x32xf32>
    %652 = tpu.concatenate %586, %651 in 1 : vector<2x32xf32>, vector<2x32xf32> -> vector<2x64xf32>
    %653 = arith.index_cast %649 : i32 to index
    %c0_134 = arith.constant 0 : index
    %654 = vector.load %arg6[%653, %c0_134] : memref<16x129xf32, #tpu.memory_space<vmem>>, vector<2x129xf32>
    %cst_135 = arith.constant dense<0.000000e+00> : vector<2x129xf32>
    %655 = tpu.matmul %652, %56, %cst_135 {dimension_numbers = #tpu.dot_dimension_numbers<[1], [0], [0], [1], [0, 0, 1, 1], [], []>} : vector<2x64xf32>, vector<64x129xf32>, vector<2x129xf32> -> vector<2x129xf32>
    %656 = arith.addf %654, %655 : vector<2x129xf32>
    %657 = vector.extract_strided_slice %656 {offsets = [0, 0], sizes = [2, 128], strides = [1, 1]} : vector<2x129xf32> to vector<2x128xf32>
    %658 = math.tanh %657 : vector<2x128xf32>
    %659 = vector.extract_strided_slice %658 {offsets = [0, 0], sizes = [2, 96], strides = [1, 1]} : vector<2x128xf32> to vector<2x96xf32>
    %cst_136 = arith.constant 5.000000e-01 : f32
    %660 = vector.broadcast %cst_136 : f32 to vector<2x96xf32>
    %661 = arith.mulf %659, %660 : vector<2x96xf32>
    %cst_137 = arith.constant 5.000000e-01 : f32
    %662 = vector.broadcast %cst_137 : f32 to vector<2x96xf32>
    %663 = arith.addf %661, %662 : vector<2x96xf32>
    %664 = vector.extract_strided_slice %663 {offsets = [0, 0], sizes = [2, 32], strides = [1, 1]} : vector<2x96xf32> to vector<2x32xf32>
    %665 = vector.extract_strided_slice %663 {offsets = [0, 32], sizes = [2, 32], strides = [1, 1]} : vector<2x96xf32> to vector<2x32xf32>
    %666 = vector.extract_strided_slice %663 {offsets = [0, 64], sizes = [2, 32], strides = [1, 1]} : vector<2x96xf32> to vector<2x32xf32>
    %667 = vector.extract_strided_slice %658 {offsets = [0, 96], sizes = [2, 32], strides = [1, 1]} : vector<2x128xf32> to vector<2x32xf32>
    %668 = vector.extract_strided_slice %656 {offsets = [0, 128], sizes = [2, 1], strides = [1, 1]} : vector<2x129xf32> to vector<2x1xf32>
    %cst_138 = arith.constant 0.000000e+00 : f32
    %669 = vector.broadcast %cst_138 : f32 to vector<2x1xf32>
    %670 = arith.cmpf ogt, %668, %669 : vector<2x1xf32>
    %671 = arith.extui %670 : vector<2x1xi1> to vector<2x1xi32>
    %672 = arith.sitofp %671 : vector<2x1xi32> to vector<2x1xf32>
    %673 = arith.mulf %665, %667 : vector<2x32xf32>
    %674 = vector.broadcast %574 : vector<2x1xf32> to vector<2x32xf32>
    %675 = arith.mulf %674, %673 : vector<2x32xf32>
    %cst_139 = arith.constant 1.000000e+00 : f32
    %676 = vector.broadcast %cst_139 : f32 to vector<2x1xf32>
    %677 = arith.subf %676, %574 : vector<2x1xf32>
    %678 = arith.mulf %664, %584 : vector<2x32xf32>
    %679 = arith.addf %678, %673 : vector<2x32xf32>
    %680 = vector.broadcast %677 : vector<2x1xf32> to vector<2x32xf32>
    %681 = arith.mulf %680, %679 : vector<2x32xf32>
    %682 = arith.addf %675, %681 : vector<2x32xf32>
    %683 = math.tanh %682 : vector<2x32xf32>
    %684 = arith.mulf %666, %683 : vector<2x32xf32>
    %685 = vector.broadcast %672 : vector<2x1xf32> to vector<2x32xf32>
    %686 = arith.mulf %685, %645 : vector<2x32xf32>
    %687 = tpu.concatenate %684, %686 in 1 : vector<2x32xf32>, vector<2x32xf32> -> vector<2x64xf32>
    %cst_140 = arith.constant dense<0.000000e+00> : vector<2x129xf32>
    %688 = tpu.matmul %687, %57, %cst_140 {dimension_numbers = #tpu.dot_dimension_numbers<[1], [0], [0], [1], [0, 0, 1, 1], [], []>} : vector<2x64xf32>, vector<64x129xf32>, vector<2x129xf32> -> vector<2x129xf32>
    %689 = vector.broadcast %58 : vector<1x129xf32> to vector<2x129xf32>
    %690 = arith.addf %688, %689 : vector<2x129xf32>
    %691 = vector.extract_strided_slice %690 {offsets = [0, 0], sizes = [2, 128], strides = [1, 1]} : vector<2x129xf32> to vector<2x128xf32>
    %692 = math.tanh %691 : vector<2x128xf32>
    %693 = vector.extract_strided_slice %692 {offsets = [0, 0], sizes = [2, 96], strides = [1, 1]} : vector<2x128xf32> to vector<2x96xf32>
    %cst_141 = arith.constant 5.000000e-01 : f32
    %694 = vector.broadcast %cst_141 : f32 to vector<2x96xf32>
    %695 = arith.mulf %693, %694 : vector<2x96xf32>
    %cst_142 = arith.constant 5.000000e-01 : f32
    %696 = vector.broadcast %cst_142 : f32 to vector<2x96xf32>
    %697 = arith.addf %695, %696 : vector<2x96xf32>
    %698 = vector.extract_strided_slice %697 {offsets = [0, 0], sizes = [2, 32], strides = [1, 1]} : vector<2x96xf32> to vector<2x32xf32>
    %699 = vector.extract_strided_slice %697 {offsets = [0, 32], sizes = [2, 32], strides = [1, 1]} : vector<2x96xf32> to vector<2x32xf32>
    %700 = vector.extract_strided_slice %697 {offsets = [0, 64], sizes = [2, 32], strides = [1, 1]} : vector<2x96xf32> to vector<2x32xf32>
    %701 = vector.extract_strided_slice %692 {offsets = [0, 96], sizes = [2, 32], strides = [1, 1]} : vector<2x128xf32> to vector<2x32xf32>
    %702 = vector.extract_strided_slice %690 {offsets = [0, 128], sizes = [2, 1], strides = [1, 1]} : vector<2x129xf32> to vector<2x1xf32>
    %cst_143 = arith.constant 0.000000e+00 : f32
    %703 = vector.broadcast %cst_143 : f32 to vector<2x1xf32>
    %704 = arith.cmpf ogt, %702, %703 : vector<2x1xf32>
    %705 = arith.extui %704 : vector<2x1xi1> to vector<2x1xi32>
    %706 = arith.sitofp %705 : vector<2x1xi32> to vector<2x1xf32>
    %707 = arith.mulf %699, %701 : vector<2x32xf32>
    %708 = vector.broadcast %608 : vector<2x1xf32> to vector<2x32xf32>
    %709 = arith.mulf %708, %707 : vector<2x32xf32>
    %cst_144 = arith.constant 1.000000e+00 : f32
    %710 = vector.broadcast %cst_144 : f32 to vector<2x1xf32>
    %711 = arith.subf %710, %608 : vector<2x1xf32>
    %cst_145 = arith.constant 1.000000e+00 : f32
    %712 = vector.broadcast %cst_145 : f32 to vector<2x1xf32>
    %713 = arith.subf %712, %672 : vector<2x1xf32>
    %714 = arith.mulf %711, %713 : vector<2x1xf32>
    %715 = vector.broadcast %714 : vector<2x1xf32> to vector<2x32xf32>
    %716 = arith.mulf %715, %627 : vector<2x32xf32>
    %717 = arith.addf %709, %716 : vector<2x32xf32>
    %cst_146 = arith.constant 1.000000e+00 : f32
    %718 = vector.broadcast %cst_146 : f32 to vector<2x1xf32>
    %719 = arith.subf %718, %608 : vector<2x1xf32>
    %720 = arith.mulf %719, %672 : vector<2x1xf32>
    %721 = arith.mulf %698, %627 : vector<2x32xf32>
    %722 = arith.addf %721, %707 : vector<2x32xf32>
    %723 = vector.broadcast %720 : vector<2x1xf32> to vector<2x32xf32>
    %724 = arith.mulf %723, %722 : vector<2x32xf32>
    %725 = arith.addf %717, %724 : vector<2x32xf32>
    %726 = math.tanh %725 : vector<2x32xf32>
    %727 = arith.mulf %700, %726 : vector<2x32xf32>
    %728 = vector.broadcast %608 : vector<2x1xf32> to vector<2x32xf32>
    %729 = arith.mulf %728, %727 : vector<2x32xf32>
    %cst_147 = arith.constant 1.000000e+00 : f32
    %730 = vector.broadcast %cst_147 : f32 to vector<2x1xf32>
    %731 = arith.subf %730, %608 : vector<2x1xf32>
    %cst_148 = arith.constant 1.000000e+00 : f32
    %732 = vector.broadcast %cst_148 : f32 to vector<2x1xf32>
    %733 = arith.subf %732, %672 : vector<2x1xf32>
    %734 = arith.mulf %731, %733 : vector<2x1xf32>
    %735 = vector.broadcast %734 : vector<2x1xf32> to vector<2x32xf32>
    %736 = arith.mulf %735, %645 : vector<2x32xf32>
    %737 = arith.addf %729, %736 : vector<2x32xf32>
    %cst_149 = arith.constant 1.000000e+00 : f32
    %738 = vector.broadcast %cst_149 : f32 to vector<2x1xf32>
    %739 = arith.subf %738, %608 : vector<2x1xf32>
    %740 = arith.mulf %739, %672 : vector<2x1xf32>
    %741 = vector.broadcast %740 : vector<2x1xf32> to vector<2x32xf32>
    %742 = arith.mulf %741, %727 : vector<2x32xf32>
    %743 = arith.addf %737, %742 : vector<2x32xf32>
    %744 = tpu.concatenate %684, %743 in 1 : vector<2x32xf32>, vector<2x32xf32> -> vector<2x64xf32>
    %745 = arith.index_cast %649 : i32 to index
    %c0_150 = arith.constant 0 : index
    %746 = vector.load %arg7[%745, %c0_150] : memref<16x64xf32, #tpu.memory_space<vmem>>, vector<2x64xf32>
    tpu.vector_store %arg7[%745, %c0_150], %744 {strides = array<i32>} : memref<16x64xf32, #tpu.memory_space<vmem>>, vector<2x64xf32>,
    %c7_i32 = arith.constant 7 : i32
    %c2_i32_151 = arith.constant 2 : i32
    %747 = arith.muli %c7_i32, %c2_i32_151 : i32
    %748 = vector.broadcast %672 : vector<2x1xf32> to vector<2x32xf32>
    %749 = arith.mulf %748, %743 : vector<2x32xf32>
    %750 = tpu.concatenate %684, %749 in 1 : vector<2x32xf32>, vector<2x32xf32> -> vector<2x64xf32>
    %751 = arith.index_cast %747 : i32 to index
    %c0_152 = arith.constant 0 : index
    %752 = vector.load %arg6[%751, %c0_152] : memref<16x129xf32, #tpu.memory_space<vmem>>, vector<2x129xf32>
    %cst_153 = arith.constant dense<0.000000e+00> : vector<2x129xf32>
    %753 = tpu.matmul %750, %56, %cst_153 {dimension_numbers = #tpu.dot_dimension_numbers<[1], [0], [0], [1], [0, 0, 1, 1], [], []>} : vector<2x64xf32>, vector<64x129xf32>, vector<2x129xf32> -> vector<2x129xf32>
    %754 = arith.addf %752, %753 : vector<2x129xf32>
    %755 = vector.extract_strided_slice %754 {offsets = [0, 0], sizes = [2, 128], strides = [1, 1]} : vector<2x129xf32> to vector<2x128xf32>
    %756 = math.tanh %755 : vector<2x128xf32>
    %757 = vector.extract_strided_slice %756 {offsets = [0, 0], sizes = [2, 96], strides = [1, 1]} : vector<2x128xf32> to vector<2x96xf32>
    %cst_154 = arith.constant 5.000000e-01 : f32
    %758 = vector.broadcast %cst_154 : f32 to vector<2x96xf32>
    %759 = arith.mulf %757, %758 : vector<2x96xf32>
    %cst_155 = arith.constant 5.000000e-01 : f32
    %760 = vector.broadcast %cst_155 : f32 to vector<2x96xf32>
    %761 = arith.addf %759, %760 : vector<2x96xf32>
    %762 = vector.extract_strided_slice %761 {offsets = [0, 0], sizes = [2, 32], strides = [1, 1]} : vector<2x96xf32> to vector<2x32xf32>
    %763 = vector.extract_strided_slice %761 {offsets = [0, 32], sizes = [2, 32], strides = [1, 1]} : vector<2x96xf32> to vector<2x32xf32>
    %764 = vector.extract_strided_slice %761 {offsets = [0, 64], sizes = [2, 32], strides = [1, 1]} : vector<2x96xf32> to vector<2x32xf32>
    %765 = vector.extract_strided_slice %756 {offsets = [0, 96], sizes = [2, 32], strides = [1, 1]} : vector<2x128xf32> to vector<2x32xf32>
    %766 = vector.extract_strided_slice %754 {offsets = [0, 128], sizes = [2, 1], strides = [1, 1]} : vector<2x129xf32> to vector<2x1xf32>
    %cst_156 = arith.constant 0.000000e+00 : f32
    %767 = vector.broadcast %cst_156 : f32 to vector<2x1xf32>
    %768 = arith.cmpf ogt, %766, %767 : vector<2x1xf32>
    %769 = arith.extui %768 : vector<2x1xi1> to vector<2x1xi32>
    %770 = arith.sitofp %769 : vector<2x1xi32> to vector<2x1xf32>
    %771 = arith.mulf %763, %765 : vector<2x32xf32>
    %772 = vector.broadcast %672 : vector<2x1xf32> to vector<2x32xf32>
    %773 = arith.mulf %772, %771 : vector<2x32xf32>
    %cst_157 = arith.constant 1.000000e+00 : f32
    %774 = vector.broadcast %cst_157 : f32 to vector<2x1xf32>
    %775 = arith.subf %774, %672 : vector<2x1xf32>
    %776 = arith.mulf %762, %682 : vector<2x32xf32>
    %777 = arith.addf %776, %771 : vector<2x32xf32>
    %778 = vector.broadcast %775 : vector<2x1xf32> to vector<2x32xf32>
    %779 = arith.mulf %778, %777 : vector<2x32xf32>
    %780 = arith.addf %773, %779 : vector<2x32xf32>
    %781 = math.tanh %780 : vector<2x32xf32>
    %782 = arith.mulf %764, %781 : vector<2x32xf32>
    %783 = vector.broadcast %770 : vector<2x1xf32> to vector<2x32xf32>
    %784 = arith.mulf %783, %743 : vector<2x32xf32>
    %785 = tpu.concatenate %782, %784 in 1 : vector<2x32xf32>, vector<2x32xf32> -> vector<2x64xf32>
    %cst_158 = arith.constant dense<0.000000e+00> : vector<2x129xf32>
    %786 = tpu.matmul %785, %57, %cst_158 {dimension_numbers = #tpu.dot_dimension_numbers<[1], [0], [0], [1], [0, 0, 1, 1], [], []>} : vector<2x64xf32>, vector<64x129xf32>, vector<2x129xf32> -> vector<2x129xf32>
    %787 = vector.broadcast %58 : vector<1x129xf32> to vector<2x129xf32>
    %788 = arith.addf %786, %787 : vector<2x129xf32>
    %789 = vector.extract_strided_slice %788 {offsets = [0, 0], sizes = [2, 128], strides = [1, 1]} : vector<2x129xf32> to vector<2x128xf32>
    %790 = math.tanh %789 : vector<2x128xf32>
    %791 = vector.extract_strided_slice %790 {offsets = [0, 0], sizes = [2, 96], strides = [1, 1]} : vector<2x128xf32> to vector<2x96xf32>
    %cst_159 = arith.constant 5.000000e-01 : f32
    %792 = vector.broadcast %cst_159 : f32 to vector<2x96xf32>
    %793 = arith.mulf %791, %792 : vector<2x96xf32>
    %cst_160 = arith.constant 5.000000e-01 : f32
    %794 = vector.broadcast %cst_160 : f32 to vector<2x96xf32>
    %795 = arith.addf %793, %794 : vector<2x96xf32>
    %796 = vector.extract_strided_slice %795 {offsets = [0, 0], sizes = [2, 32], strides = [1, 1]} : vector<2x96xf32> to vector<2x32xf32>
    %797 = vector.extract_strided_slice %795 {offsets = [0, 32], sizes = [2, 32], strides = [1, 1]} : vector<2x96xf32> to vector<2x32xf32>
    %798 = vector.extract_strided_slice %795 {offsets = [0, 64], sizes = [2, 32], strides = [1, 1]} : vector<2x96xf32> to vector<2x32xf32>
    %799 = vector.extract_strided_slice %790 {offsets = [0, 96], sizes = [2, 32], strides = [1, 1]} : vector<2x128xf32> to vector<2x32xf32>
    %800 = vector.extract_strided_slice %788 {offsets = [0, 128], sizes = [2, 1], strides = [1, 1]} : vector<2x129xf32> to vector<2x1xf32>
    %cst_161 = arith.constant 0.000000e+00 : f32
    %801 = vector.broadcast %cst_161 : f32 to vector<2x1xf32>
    %802 = arith.cmpf ogt, %800, %801 : vector<2x1xf32>
    %803 = arith.extui %802 : vector<2x1xi1> to vector<2x1xi32>
    %804 = arith.sitofp %803 : vector<2x1xi32> to vector<2x1xf32>
    %805 = arith.mulf %797, %799 : vector<2x32xf32>
    %806 = vector.broadcast %706 : vector<2x1xf32> to vector<2x32xf32>
    %807 = arith.mulf %806, %805 : vector<2x32xf32>
    %cst_162 = arith.constant 1.000000e+00 : f32
    %808 = vector.broadcast %cst_162 : f32 to vector<2x1xf32>
    %809 = arith.subf %808, %706 : vector<2x1xf32>
    %cst_163 = arith.constant 1.000000e+00 : f32
    %810 = vector.broadcast %cst_163 : f32 to vector<2x1xf32>
    %811 = arith.subf %810, %770 : vector<2x1xf32>
    %812 = arith.mulf %809, %811 : vector<2x1xf32>
    %813 = vector.broadcast %812 : vector<2x1xf32> to vector<2x32xf32>
    %814 = arith.mulf %813, %725 : vector<2x32xf32>
    %815 = arith.addf %807, %814 : vector<2x32xf32>
    %cst_164 = arith.constant 1.000000e+00 : f32
    %816 = vector.broadcast %cst_164 : f32 to vector<2x1xf32>
    %817 = arith.subf %816, %706 : vector<2x1xf32>
    %818 = arith.mulf %817, %770 : vector<2x1xf32>
    %819 = arith.mulf %796, %725 : vector<2x32xf32>
    %820 = arith.addf %819, %805 : vector<2x32xf32>
    %821 = vector.broadcast %818 : vector<2x1xf32> to vector<2x32xf32>
    %822 = arith.mulf %821, %820 : vector<2x32xf32>
    %823 = arith.addf %815, %822 : vector<2x32xf32>
    %824 = math.tanh %823 : vector<2x32xf32>
    %825 = arith.mulf %798, %824 : vector<2x32xf32>
    %826 = vector.broadcast %706 : vector<2x1xf32> to vector<2x32xf32>
    %827 = arith.mulf %826, %825 : vector<2x32xf32>
    %cst_165 = arith.constant 1.000000e+00 : f32
    %828 = vector.broadcast %cst_165 : f32 to vector<2x1xf32>
    %829 = arith.subf %828, %706 : vector<2x1xf32>
    %cst_166 = arith.constant 1.000000e+00 : f32
    %830 = vector.broadcast %cst_166 : f32 to vector<2x1xf32>
    %831 = arith.subf %830, %770 : vector<2x1xf32>
    %832 = arith.mulf %829, %831 : vector<2x1xf32>
    %833 = vector.broadcast %832 : vector<2x1xf32> to vector<2x32xf32>
    %834 = arith.mulf %833, %743 : vector<2x32xf32>
    %835 = arith.addf %827, %834 : vector<2x32xf32>
    %cst_167 = arith.constant 1.000000e+00 : f32
    %836 = vector.broadcast %cst_167 : f32 to vector<2x1xf32>
    %837 = arith.subf %836, %706 : vector<2x1xf32>
    %838 = arith.mulf %837, %770 : vector<2x1xf32>
    %839 = vector.broadcast %838 : vector<2x1xf32> to vector<2x32xf32>
    %840 = arith.mulf %839, %825 : vector<2x32xf32>
    %841 = arith.addf %835, %840 : vector<2x32xf32>
    %842 = tpu.concatenate %782, %841 in 1 : vector<2x32xf32>, vector<2x32xf32> -> vector<2x64xf32>
    %843 = arith.index_cast %747 : i32 to index
    %c0_168 = arith.constant 0 : index
    %844 = vector.load %arg7[%843, %c0_168] : memref<16x64xf32, #tpu.memory_space<vmem>>, vector<2x64xf32>
    tpu.vector_store %arg7[%843, %c0_168], %842 {strides = array<i32>} : memref<16x64xf32, #tpu.memory_space<vmem>>, vector<2x64xf32>,
    %c8_i32 = arith.constant 8 : i32
    %c8 = arith.constant 8 : index
    %c0_169 = arith.constant 0 : index
    %845 = vector.load %arg3[%c8, %c0_169] : memref<88x129xf32, #tpu.memory_space<vmem>>, vector<64x2xf32>
    %c2 = arith.constant 2 : index
    %c0_170 = arith.constant 0 : index
    %846 = vector.load %arg3[%c2, %c0_170] : memref<88x129xf32, #tpu.memory_space<vmem>>, vector<1x2xf32>
    %c0_171 = arith.constant 0 : index
    %c0_172 = arith.constant 0 : index
    %847 = vector.load %arg7[%c0_171, %c0_172] : memref<16x64xf32, #tpu.memory_space<vmem>>, vector<16x64xf32>
    %cst_173 = arith.constant dense<0.000000e+00> : vector<16x2xf32>
    %848 = tpu.matmul %847, %845, %cst_173 {dimension_numbers = #tpu.dot_dimension_numbers<[1], [0], [0], [1], [0, 0, 1, 1], [], []>} : vector<16x64xf32>, vector<64x2xf32>, vector<16x2xf32> -> vector<16x2xf32>
    %849 = vector.broadcast %846 : vector<1x2xf32> to vector<16x2xf32>
    %850 = arith.addf %848, %849 : vector<16x2xf32>
    %851 = arith.negf %850 : vector<16x2xf32>
    %852 = math.exp %851 : vector<16x2xf32>
    %cst_174 = arith.constant 1.000000e+00 : f32
    %853 = vector.broadcast %cst_174 : f32 to vector<16x2xf32>
    %854 = arith.addf %853, %852 : vector<16x2xf32>
    %855 = arith.divf %853, %854 : vector<16x2xf32>
    %c0_175 = arith.constant 0 : index
    %c0_176 = arith.constant 0 : index
    %856 = vector.load %arg4[%c0_175, %c0_176] : memref<16x2xf32, #tpu.memory_space<vmem>>, vector<16x2xf32>
    tpu.vector_store %arg4[%c0_175, %c0_176], %855 {strides = array<i32>} : memref<16x2xf32, #tpu.memory_space<vmem>>, vector<16x2xf32>,
    %857 = tpu.concatenate %782, %780, %841, %823, %770, %804 in 1 : vector<2x32xf32>, vector<2x32xf32>, vector<2x32xf32>, vector<2x32xf32>, vector<2x1xf32>, vector<2x1xf32> -> vector<2x130xf32>
    %c0_177 = arith.constant 0 : index
    %c0_178 = arith.constant 0 : index
    %858 = vector.load %arg5[%c0_177, %c0_178] : memref<2x130xf32, #tpu.memory_space<vmem>>, vector<2x130xf32>
    tpu.vector_store %arg5[%c0_177, %c0_178], %857 {strides = array<i32>} : memref<2x130xf32, #tpu.memory_space<vmem>>, vector<2x130xf32>,
    return
  }
  func.func @transform_0(%arg0: i32) -> (i32, i32, i32) {
    %c0_i32 = arith.constant 0 : i32
    %c0_i32_0 = arith.constant 0 : i32
    %c0_i32_1 = arith.constant 0 : i32
    %c0_i32_2 = arith.constant 0 : i32
    return %c0_i32, %c0_i32_0, %c0_i32_1 : i32, i32, i32
  }
  func.func @transform_1(%arg0: i32) -> (i32, i32) {
    %c0_i32 = arith.constant 0 : i32
    %c0_i32_0 = arith.constant 0 : i32
    %c0_i32_1 = arith.constant 0 : i32
    return %c0_i32, %c0_i32_0 : i32, i32
  }
  func.func @transform_2(%arg0: i32) -> (i32, i32) {
    %c0_i32 = arith.constant 0 : i32
    %c0_i32_0 = arith.constant 0 : i32
    %c0_i32_1 = arith.constant 0 : i32
    return %c0_i32, %c0_i32_0 : i32, i32
  }
  func.func @transform_3(%arg0: i32) -> (i32, i32) {
    %c0_i32 = arith.constant 0 : i32
    %c0_i32_0 = arith.constant 0 : i32
    %c0_i32_1 = arith.constant 0 : i32
    return %c0_i32, %c0_i32_0 : i32, i32
  }
  func.func @transform_4(%arg0: i32) -> (i32, i32) {
    %c0_i32 = arith.constant 0 : i32
    %c0_i32_0 = arith.constant 0 : i32
    %c0_i32_1 = arith.constant 0 : i32
    return %c0_i32, %c0_i32_0 : i32, i32
  }
}

</mosaic_0001>

<llo_original>
// kernel: hm_net_forward.1
$region0: #{hm_net_forward.1}
  #allocation0 [shape = 'u32[]', space=smem, size = 0x4, offset = 0x4, fixed_abs, tag = 'smem constant byte address 0x4 - core index']
  #allocation1 [shape = 'u32[144,128]{1,0:T(1,128)}', space=vmem, size = 0x12000, scoped, tag = 'internal scratch']
  #allocation2 [shape = 'f32[16,129]{1,0:T(8,128)}', space=vmem, size = 0x4000, scoped, tag = 'scratch operand']
  #allocation3 [shape = 'f32[16,64]{1,0:T(8,128)}', space=vmem, size = 0x2000, scoped, tag = 'scratch operand']
  %s0 = inlined_call_operand.vmem [shape: f32[2,8,16], index: 0, kind: input, shape index: {}]
  %s1 = inlined_call_operand.vmem [shape: f32[144,129], index: 1, kind: input, shape index: {}]
  %s2 = inlined_call_operand.vmem [shape: f32[88,129], index: 2, kind: input, shape index: {}]
  %s3 = inlined_call_operand.vmem [shape: f32[16,2], index: 3, kind: output, shape index: {0}]
  %s4 = inlined_call_operand.vmem [shape: f32[2,130], index: 4, kind: output, shape index: {1}]
  %5 = xla_tuple %s3, %s4
  %s6 = sld [smem:[#allocation0]]
  $region30: #{hm_net_forward.1} parent=0
    _
  %s8 = ssub.s32 1, %s6
  %s9 = scalar_select 0, %s8, %s6
  // Predicated region
  $region2: #{hm_net_forward.1} parent=0 // pred_check
    _
  $region3: #{hm_net_forward.1} parent=0 // pred_check_branch
    %11 = sbr.rel (0) target = $region5
  $region4: #{hm_net_forward.1} parent=0 // pred_region
    _
  $region5: #{hm_net_forward.1} parent=0 // pred_fallthru
    _
  // Predicated region
  $region6: #{hm_net_forward.1} parent=0 // pred_check
    _
  $region7: #{hm_net_forward.1} parent=0 // pred_check_branch
    %13 = sbr.rel (0) target = $region9
  $region8: #{hm_net_forward.1} parent=0 // pred_region
    _
  $region9: #{hm_net_forward.1} parent=0 // pred_fallthru
    _
  // Predicated region
  $region10: #{hm_net_forward.1} parent=0 // pred_check
    _
  $region11: #{hm_net_forward.1} parent=0 // pred_check_branch
    %15 = sbr.rel (0) target = $region13
  $region12: #{hm_net_forward.1} parent=0 // pred_region
    _
  $region13: #{hm_net_forward.1} parent=0 // pred_fallthru
    _
  %v16 = vld [vmem:[%s0] sm:$0xff]
  %v17 = vld [vmem:[%s0 + $0x8] sm:$0xff]
  %v18 = vld [vmem:[%s2 + $0x90] sm:$0xff]
  %v19 = vld [vmem:[%s2 + $0xa0] sm:$0xff]
  %vm20 = vcmask 130048
  %v21 = vsel %vm20, %v16, 0.0
  %22 = vadd.xlane.f32.xlu0 %v21
  %v23 = vpop.xlane.xlu0 %22
  %v24 = vsel %vm20, %v17, 0.0
  %25 = vadd.xlane.f32.xlu0 %v24
  %v26 = vpop.xlane.xlu0 %25
  %v27 = vrcp.pop 16.0
  %v28 = vmul.f32 %v23, %v27
  %v29 = vmul.f32 %v26, %v27
  %v30 = vrot.slane %v28, 4
  %v31 = vadd.f32 %v28, %v30
  %v32 = vrot.slane %v31, 2
  %v33 = vadd.f32 %v31, %v32
  %v34 = vrot.slane %v33, 1
  %v35 = vadd.f32 %v33, %v34
  %v36 = vrot.slane %v29, 4
  %v37 = vadd.f32 %v29, %v36
  %v38 = vrot.slane %v37, 2
  %v39 = vadd.f32 %v37, %v38
  %v40 = vrot.slane %v39, 1
  %v41 = vadd.f32 %v39, %v40
  %v42 = vrcp.pop 8.0
  %v43 = vmul.f32 %v35, %v42
  %v44 = vmul.f32 %v41, %v42
  %v45 = vsub.f32 %v16, %v43
  %v46 = vsub.f32 %v17, %v44
  %v47 = vmul.f32 %v45, %v45
  %v48 = vmul.f32 %v46, %v46
  %v49 = vsel %vm20, %v47, 0.0
  %50 = vadd.xlane.f32.xlu0 %v49
  %v51 = vpop.xlane.xlu0 %50
  %v52 = vsel %vm20, %v48, 0.0
  %53 = vadd.xlane.f32.xlu0 %v52
  %v54 = vpop.xlane.xlu0 %53
  %v55 = vmul.f32 %v51, %v27
  %v56 = vmul.f32 %v54, %v27
  %v57 = vrot.slane %v55, 4
  %v58 = vadd.f32 %v55, %v57
  %v59 = vrot.slane %v58, 2
  %v60 = vadd.f32 %v58, %v59
  %v61 = vrot.slane %v60, 1
  %v62 = vadd.f32 %v60, %v61
  %v63 = vrot.slane %v56, 4
  %v64 = vadd.f32 %v56, %v63
  %v65 = vrot.slane %v64, 2
  %v66 = vadd.f32 %v64, %v65
  %v67 = vrot.slane %v66, 1
  %v68 = vadd.f32 %v66, %v67
  %v69 = vmul.f32 %v62, %v42
  %v70 = vmul.f32 %v68, %v42
  %v71 = vadd.f32 %v69, 1e-05
  %v72 = vadd.f32 %v70, 1e-05
  %v73 = vrsqrt.pop %v71
  %v74 = vrsqrt.pop %v72
  %v75 = vmul.f32 %v45, %v73
  %v76 = vmul.f32 %v46, %v74
  %v77 = vmul.f32 %v75, %v18
  %v78 = vmul.f32 %v76, %v18
  %v79 = vadd.f32 %v77, %v19
  %v80 = vadd.f32 %v78, %v19
  %v83 = vrot.slane %v80, 7
  %vm84 = vcmask 1041409
  %v85 = vsel %vm84, %v83, %v79
  %v87 = vrot.slane %v79, 7
  %v88 = vrot.slane %v80, 6
  %vm89 = vcmask 1043459
  %v90 = vsel %vm89, %v88, %v87
  %v92 = vrot.slane %v79, 6
  %v93 = vrot.slane %v80, 5
  %vm94 = vcmask 1045509
  %v95 = vsel %vm94, %v93, %v92
  %v97 = vrot.slane %v79, 5
  %v98 = vrot.slane %v80, 4
  %vm99 = vcmask 1047559
  %v100 = vsel %vm99, %v98, %v97
  %v102 = vrot.slane %v79, 4
  %v103 = vrot.slane %v80, 3
  %v104 = vsel %vm84, %v103, %v102
  %v106 = vrot.slane %v79, 3
  %v107 = vrot.slane %v80, 2
  %v108 = vsel %vm89, %v107, %v106
  %v110 = vrot.slane %v79, 2
  %v111 = vrot.slane %v80, 1
  %v112 = vsel %vm94, %v111, %v110
  %v114 = vrot.slane %v79, 1
  %v115 = vsel %vm99, %v80, %v114
  %vm117 = vcmask 1041408
  %v118 = vsel %vm117, %v85, %v90
  %vm119 = vcmask 1043456
  %v120 = vsel %vm119, %v118, %v95
  %vm121 = vcmask 1045504
  %v122 = vsel %vm121, %v120, %v100
  %v123 = vsel %vm117, %v104, %v108
  %v124 = vsel %vm119, %v123, %v112
  %v125 = vsel %vm121, %v124, %v115
  %v126 = vld [vmem:[%s1] sm:$0xff]
  %v127 = vld [vmem:[%s1 + $0x8] sm:$0xff]
  %v128 = vld [vmem:[%s1 + $0x10] sm:$0xff]
  %v129 = vld [vmem:[%s1 + $0x18] sm:$0xff]
  %v130 = vld [vmem:[%s2] ss:$8 sm:$0x3]
  %v132 = vlaneseq
  %v133 = vshrl.u32 %v132, 7
  %v134 = vsub.s32 0, %v133
  %v135 = vrot.slane %v130, %v134
  %v136 = vlaneseq
  %v137 = vshrl.u32 %v136, 7
  %v138 = vsub.s32 1, %v137
  %v139 = vrot.slane %v130, %v138
  %v143 = vsel %vm20, %v122, 0
  %v146 = vsel %vm20, %v125, 0
  %148 = vmatprep.subr.mxu0 %v127
  %149 = vmatpush1.msra.mxu0 %v126
  %150 = vmatprep.subr.mxu0 %v129
  %151 = vmatpush1.msra.mxu0 %v128
  %152 = vmatprep.subr.mxu0 0.0
  %153 = vmatpush1.msra.mxu0 0.0
  %154 = vmatprep.subr.mxu0 0.0
  %155 = vmatpush1.msra.mxu0 0.0
  %156 = vmatprep.subr.mxu0 0.0
  %157 = vmatpush1.msra.mxu0 0.0
  %158 = vmatprep.subr.mxu0 0.0
  %159 = vmatpush1.msra.mxu0 0.0
  %160 = vmatprep.subr.mxu0 0.0
  %161 = vmatpush1.msra.mxu0 0.0
  %162 = vmatprep.subr.mxu0 0.0
  %163 = vmatpush1.msra.mxu0 0.0
  %164 = vmatprep.subr.mxu0 0.0
  %165 = vmatpush1.msra.mxu0 0.0
  %166 = vmatprep.subr.mxu0 0.0
  %167 = vmatpush1.msra.mxu0 0.0
  %168 = vmatprep.subr.mxu0 0.0
  %169 = vmatpush1.msra.mxu0 0.0
  %170 = vmatprep.subr.mxu0 0.0
  %171 = vmatpush1.msra.mxu0 0.0
  %172 = vmatprep.subr.mxu0 0.0
  %173 = vmatpush1.msra.mxu0 0.0
  %174 = vmatprep.subr.mxu0 0.0
  %175 = vmatpush1.msra.mxu0 0.0
  %176 = vmatprep.subr.mxu0 0.0
  %177 = vmatpush1.msra.mxu0 0.0
  %178 = vmatprep.subr.mxu0 0.0
  %179 = vmatpush1.msra.mxu0 0.0
  %180 = vmatprep.subr.mxu0 0.0
  %181 = vmatpush1.msra.mxu0 0.0
  %182 = vmatprep.subr.mxu0 0.0
  %183 = vmatpush1.msra.mxu0 0.0
  %184 = vmatprep.subr.mxu0 0.0
  %185 = vmatpush1.msra.mxu0 0.0
  %186 = vmatprep.subr.mxu0 0.0
  %187 = vmatpush1.msra.mxu0 0.0
  %188 = vmatprep.subr.mxu0 0.0
  %189 = vmatpush1.msra.mxu0 0.0
  %190 = vmatprep.subr.mxu0 0.0
  %191 = vmatpush1.msra.mxu0 0.0
  %192 = vmatprep.subr.mxu0 0.0
  %193 = vmatpush1.msra.mxu0 0.0
  %194 = vmatprep.subr.mxu0 0.0
  %195 = vmatpush1.msra.mxu0 0.0
  %196 = vmatprep.subr.mxu0 0.0
  %197 = vmatpush1.msra.mxu0 0.0
  %198 = vmatprep.subr.mxu0 0.0
  %199 = vmatpush1.msra.mxu0 0.0
  %200 = vmatprep.subr.mxu0 0.0
  %201 = vmatpush1.msra.mxu0 0.0
  %202 = vmatprep.subr.mxu0 0.0
  %203 = vmatpush1.msra.mxu0 0.0
  %204 = vmatprep.subr.mxu0 0.0
  %205 = vmatpush1.msra.mxu0 0.0
  %206 = vmatprep.subr.mxu0 0.0
  %207 = vmatpush1.msra.mxu0 0.0
  %208 = vmatprep.subr.mxu0 0.0
  %209 = vmatpush1.msra.mxu0 0.0
  %210 = vmatprep.subr.mxu0 0.0
  %211 = vmatpush1.msra.mxu0 0.0
  %212 = vmatprep.mubr.f32.mxu0 0.0
  %213 = vmatmul.mubr.f32.gmra.mrb[0].mxu0 %v143
  %v214 = vpop.f32.mrb[0].mxu0
  %v215 = vadd.f32 %v135, %v214
  %v216 = vpop.f32.mrb[0].mxu0
  %v217 = vadd.f32 %v139, %v216
  %218 = vmatprep.mubr.f32.mxu0 0.0
  %219 = vmatmul.mubr.f32.gmra.mrb[0].mxu0 %v146
  %v220 = vpop.f32.mrb[0].mxu0
  %v221 = vadd.f32 %v135, %v220
  %v222 = vpop.f32.mrb[0].mxu0
  %v223 = vadd.f32 %v139, %v222
  %224 = vdwg.mxu0
  %225 = vst [vmem:[#allocation2] sm:$0xff] %v215
  %vm226 = vcmask 7168
  %227 = vst.msk [vmem:[#allocation2 + $0x8] sm:$0xff] %vm226, %v217
  %228 = vst [vmem:[#allocation2 + $0x10] sm:$0xff] %v221
  %229 = vst.msk [vmem:[#allocation2 + $0x18] sm:$0xff] %vm226, %v223
  %v230 = vld [vmem:[%s1 + $0x20] sm:$0xff]
  %v231 = vld [vmem:[%s1 + $0x28] sm:$0xff]
  %v232 = vld [vmem:[%s1 + $0x30] sm:$0xff]
  %v233 = vld [vmem:[%s1 + $0x38] sm:$0xff]
  %v234 = vld [vmem:[%s1 + $0x40] sm:$0xff]
  %v235 = vld [vmem:[%s1 + $0x48] sm:$0xff]
  %v236 = vld [vmem:[%s1 + $0x50] sm:$0xff]
  %v237 = vld [vmem:[%s1 + $0x58] sm:$0xff]
  %v238 = vld [vmem:[%s1 + $0x60] sm:$0xff]
  %v239 = vld [vmem:[%s1 + $0x68] sm:$0xff]
  %v240 = vld [vmem:[%s1 + $0x70] sm:$0xff]
  %v241 = vld [vmem:[%s1 + $0x78] sm:$0xff]
  %v242 = vld [vmem:[%s1 + $0x80] sm:$0xff]
  %v243 = vld [vmem:[%s1 + $0x88] sm:$0xff]
  %v244 = vld [vmem:[%s1 + $0x90] sm:$0xff]
  %v245 = vld [vmem:[%s1 + $0x98] sm:$0xff]
  %v246 = vld [vmem:[%s1 + $0xa0] sm:$0xff]
  %v247 = vld [vmem:[%s1 + $0xa8] sm:$0xff]
  %v248 = vld [vmem:[%s1 + $0xb0] sm:$0xff]
  %v249 = vld [vmem:[%s1 + $0xb8] sm:$0xff]
  %v250 = vld [vmem:[%s1 + $0xc0] sm:$0xff]
  %v251 = vld [vmem:[%s1 + $0xc8] sm:$0xff]
  %v252 = vld [vmem:[%s1 + $0xd0] sm:$0xff]
  %v253 = vld [vmem:[%s1 + $0xd8] sm:$0xff]
  %v254 = vld [vmem:[%s1 + $0xe0] sm:$0xff]
  %v255 = vld [vmem:[%s1 + $0xe8] sm:$0xff]
  %v256 = vld [vmem:[%s1 + $0xf0] sm:$0xff]
  %v257 = vld [vmem:[%s1 + $0xf8] sm:$0xff]
  %v258 = vld [vmem:[%s1 + $0x100] sm:$0xff]
  %v259 = vld [vmem:[%s1 + $0x108] sm:$0xff]
  %v260 = vld [vmem:[%s1 + $0x110] sm:$0xff]
  %v261 = vld [vmem:[%s1 + $0x118] sm:$0xff]
  %s262 = scalar_lea.vmem %s2, 1
  %v263 = vld [vmem:[%s262] ss:$8 sm:$0x3]
  %v264 = vld [vmem:[#allocation2] sm:$0x3]
  %v265 = vld [vmem:[#allocation2 + $0x8] sm:$0x3]
  %vm266 = vcmask 523264
  %v268 = vsel %vm266, 0.0, 0
  %270 = vmatprep.subr.mxu0 %v231
  %271 = vmatpush1.msra.mxu0 %v230
  %272 = vmatprep.subr.mxu0 %v233
  %273 = vmatpush1.msra.mxu0 %v232
  %274 = vmatprep.subr.mxu0 %v235
  %275 = vmatpush1.msra.mxu0 %v234
  %276 = vmatprep.subr.mxu0 %v237
  %277 = vmatpush1.msra.mxu0 %v236
  %278 = vmatprep.subr.mxu0 %v239
  %279 = vmatpush1.msra.mxu0 %v238
  %280 = vmatprep.subr.mxu0 %v241
  %281 = vmatpush1.msra.mxu0 %v240
  %282 = vmatprep.subr.mxu0 %v243
  %283 = vmatpush1.msra.mxu0 %v242
  %284 = vmatprep.subr.mxu0 %v245
  %285 = vmatpush1.msra.mxu0 %v244
  %286 = vmatprep.subr.mxu0 0.0
  %287 = vmatpush1.msra.mxu0 0.0
  %288 = vmatprep.subr.mxu0 0.0
  %289 = vmatpush1.msra.mxu0 0.0
  %290 = vmatprep.subr.mxu0 0.0
  %291 = vmatpush1.msra.mxu0 0.0
  %292 = vmatprep.subr.mxu0 0.0
  %293 = vmatpush1.msra.mxu0 0.0
  %294 = vmatprep.subr.mxu0 0.0
  %295 = vmatpush1.msra.mxu0 0.0
  %296 = vmatprep.subr.mxu0 0.0
  %297 = vmatpush1.msra.mxu0 0.0
  %298 = vmatprep.subr.mxu0 0.0
  %299 = vmatpush1.msra.mxu0 0.0
  %300 = vmatprep.subr.mxu0 0.0
  %301 = vmatpush1.msra.mxu0 0.0
  %302 = vmatprep.subr.mxu0 0.0
  %303 = vmatpush1.msra.mxu0 0.0
  %304 = vmatprep.subr.mxu0 0.0
  %305 = vmatpush1.msra.mxu0 0.0
  %306 = vmatprep.subr.mxu0 0.0
  %307 = vmatpush1.msra.mxu0 0.0
  %308 = vmatprep.subr.mxu0 0.0
  %309 = vmatpush1.msra.mxu0 0.0
  %310 = vmatprep.subr.mxu0 0.0
  %311 = vmatpush1.msra.mxu0 0.0
  %312 = vmatprep.subr.mxu0 0.0
  %313 = vmatpush1.msra.mxu0 0.0
  %314 = vmatprep.subr.mxu0 0.0
  %315 = vmatpush1.msra.mxu0 0.0
  %316 = vmatprep.subr.mxu0 0.0
  %317 = vmatpush1.msra.mxu0 0.0
  %318 = vmatprep.subr.mxu0 0.0
  %319 = vmatpush1.msra.mxu0 0.0
  %320 = vmatprep.subr.mxu0 0.0
  %321 = vmatpush1.msra.mxu0 0.0
  %322 = vmatprep.subr.mxu0 0.0
  %323 = vmatpush1.msra.mxu0 0.0
  %324 = vmatprep.subr.mxu0 0.0
  %325 = vmatpush1.msra.mxu0 0.0
  %326 = vmatprep.subr.mxu0 0.0
  %327 = vmatpush1.msra.mxu0 0.0
  %328 = vmatprep.subr.mxu0 0.0
  %329 = vmatpush1.msra.mxu0 0.0
  %330 = vmatprep.subr.mxu0 0.0
  %331 = vmatpush1.msra.mxu0 0.0
  %332 = vmatprep.subr.mxu0 0.0
  %333 = vmatpush1.msra.mxu0 0.0
  %334 = vmatprep.mubr.f32.mxu0 0.0
  %335 = vmatmul.mubr.f32.gmra.mrb[0].mxu0 %v268
  %v336 = vpop.f32.mrb[0].mxu0
  %v337 = vadd.f32 0.0, %v336
  %v338 = vpop.f32.mrb[0].mxu0
  %v339 = vadd.f32 0.0, %v338
  %340 = vdwg.mxu0
  %v341 = vadd.f32 %v264, %v337
  %v342 = vadd.f32 %v265, %v339
  %v343 = vtanh.pop %v341
  %v344 = vmul.f32 %v343, 0.5
  %v345 = vadd.f32 %v344, 0.5
  %vm346 = vcmp.gt.f32.partialorder %v342, 0.0
  %v347 = vsel %vm346, 1, 0
  %v348 = vcvt.s32.f32 %v347
  %350 = vrot.lane.b32.xlu0 %v343, 64
  %v351 = vpop.permute.xlu0 %350
  %v353 = vmul.f32 %v345, %v351
  %v354 = vmul.f32 %v353, 0.0
  %v355 = vmul.f32 %v345, 0.0
  %357 = vrot.lane.b32.xlu0 %v353, 96
  %v358 = vpop.permute.xlu0 %357
  %v360 = vadd.f32 %v355, %v358
  %362 = vrot.lane.b32.xlu0 %v360, 32
  %v363 = vpop.permute.xlu0 %362
  %v365 = vadd.f32 %v354, %v363
  %v366 = vtanh.pop %v365
  %368 = vrot.lane.b32.xlu0 %v366, 32
  %v369 = vpop.permute.xlu0 %368
  %v371 = vmul.f32 %v345, %v369
  %373 = vset.pattern.permute.xlu0 0
  %374 = vperm.xlu0 %373, %v348
  %v375 = vpop.permute.xlu0 %374
  %v377 = vmul.f32 %v375, 0.0
  %379 = vrot.lane.b32.xlu0 %v371, 64
  %v380 = vpop.permute.xlu0 %379
  %vm382 = vcmask 261120
  %v383 = vsel %vm382, %v380, %v377
  %v385 = vlaneseq
  %v386 = vshrl.u32 %v385, 7
  %v387 = vsub.s32 0, %v386
  %v388 = vrot.slane %v263, %v387
  %v389 = vlaneseq
  %v390 = vshrl.u32 %v389, 7
  %v391 = vsub.s32 1, %v390
  %v392 = vrot.slane %v263, %v391
  %v396 = vsel %vm266, %v383, 0
  %398 = vmatprep.subr.mxu0 %v247
  %399 = vmatpush1.msra.mxu0 %v246
  %400 = vmatprep.subr.mxu0 %v249
  %401 = vmatpush1.msra.mxu0 %v248
  %402 = vmatprep.subr.mxu0 %v251
  %403 = vmatpush1.msra.mxu0 %v250
  %404 = vmatprep.subr.mxu0 %v253
  %405 = vmatpush1.msra.mxu0 %v252
  %406 = vmatprep.subr.mxu0 %v255
  %407 = vmatpush1.msra.mxu0 %v254
  %408 = vmatprep.subr.mxu0 %v257
  %409 = vmatpush1.msra.mxu0 %v256
  %410 = vmatprep.subr.mxu0 %v259
  %411 = vmatpush1.msra.mxu0 %v258
  %412 = vmatprep.subr.mxu0 %v261
  %413 = vmatpush1.msra.mxu0 %v260
  %414 = vmatprep.subr.mxu0 0.0
  %415 = vmatpush1.msra.mxu0 0.0
  %416 = vmatprep.subr.mxu0 0.0
  %417 = vmatpush1.msra.mxu0 0.0
  %418 = vmatprep.subr.mxu0 0.0
  %419 = vmatpush1.msra.mxu0 0.0
  %420 = vmatprep.subr.mxu0 0.0
  %421 = vmatpush1.msra.mxu0 0.0
  %422 = vmatprep.subr.mxu0 0.0
  %423 = vmatpush1.msra.mxu0 0.0
  %424 = vmatprep.subr.mxu0 0.0
  %425 = vmatpush1.msra.mxu0 0.0
  %426 = vmatprep.subr.mxu0 0.0
  %427 = vmatpush1.msra.mxu0 0.0
  %428 = vmatprep.subr.mxu0 0.0
  %429 = vmatpush1.msra.mxu0 0.0
  %430 = vmatprep.subr.mxu0 0.0
  %431 = vmatpush1.msra.mxu0 0.0
  %432 = vmatprep.subr.mxu0 0.0
  %433 = vmatpush1.msra.mxu0 0.0
  %434 = vmatprep.subr.mxu0 0.0
  %435 = vmatpush1.msra.mxu0 0.0
  %436 = vmatprep.subr.mxu0 0.0
  %437 = vmatpush1.msra.mxu0 0.0
  %438 = vmatprep.subr.mxu0 0.0
  %439 = vmatpush1.msra.mxu0 0.0
  %440 = vmatprep.subr.mxu0 0.0
  %441 = vmatpush1.msra.mxu0 0.0
  %442 = vmatprep.subr.mxu0 0.0
  %443 = vmatpush1.msra.mxu0 0.0
  %444 = vmatprep.subr.mxu0 0.0
  %445 = vmatpush1.msra.mxu0 0.0
  %446 = vmatprep.subr.mxu0 0.0
  %447 = vmatpush1.msra.mxu0 0.0
  %448 = vmatprep.subr.mxu0 0.0
  %449 = vmatpush1.msra.mxu0 0.0
  %450 = vmatprep.subr.mxu0 0.0
  %451 = vmatpush1.msra.mxu0 0.0
  %452 = vmatprep.subr.mxu0 0.0
  %453 = vmatpush1.msra.mxu0 0.0
  %454 = vmatprep.subr.mxu0 0.0
  %455 = vmatpush1.msra.mxu0 0.0
  %456 = vmatprep.subr.mxu0 0.0
  %457 = vmatpush1.msra.mxu0 0.0
  %458 = vmatprep.subr.mxu0 0.0
  %459 = vmatpush1.msra.mxu0 0.0
  %460 = vmatprep.subr.mxu0 0.0
  %461 = vmatpush1.msra.mxu0 0.0
  %462 = vmatprep.mubr.f32.mxu0 0.0
  %463 = vmatmul.mubr.f32.gmra.mrb[0].mxu0 %v396
  %v464 = vpop.f32.mrb[0].mxu0
  %v465 = vadd.f32 %v388, %v464
  %v466 = vpop.f32.mrb[0].mxu0
  %v467 = vadd.f32 %v392, %v466
  %468 = vdwg.mxu0
  %v469 = vtanh.pop %v465
  %v470 = vmul.f32 %v469, 0.5
  %v471 = vadd.f32 %v470, 0.5
  %vm472 = vcmp.gt.f32.partialorder %v467, 0.0
  %v473 = vsel %vm472, 1, 0
  %v474 = vcvt.s32.f32 %v473
  %476 = vrot.lane.b32.xlu0 %v469, 64
  %v477 = vpop.permute.xlu0 %476
  %v479 = vmul.f32 %v471, %v477
  %v480 = vmul.f32 %v479, 0.0
  %v481 = vsub.f32 1.0, %v348
  %483 = vset.pattern.permute.xlu0 0
  %484 = vperm.xlu0 %483, %v481
  %v485 = vpop.permute.xlu0 %484
  %v487 = vmul.f32 %v485, 0.0
  %v488 = vadd.f32 %v480, %v487
  %v489 = vmul.f32 %v471, 0.0
  %491 = vrot.lane.b32.xlu0 %v479, 96
  %v492 = vpop.permute.xlu0 %491
  %v494 = vadd.f32 %v489, %v492
  %v495 = vmul.f32 %v375, %v494
  %497 = vrot.lane.b32.xlu0 %v495, 32
  %v498 = vpop.permute.xlu0 %497
  %v500 = vadd.f32 %v488, %v498
  %v501 = vtanh.pop %v500
  %503 = vrot.lane.b32.xlu0 %v501, 32
  %v504 = vpop.permute.xlu0 %503
  %v506 = vmul.f32 %v471, %v504
  %v507 = vmul.f32 %v506, 0.0
  %v508 = vadd.f32 %v507, %v487
  %v509 = vmul.f32 %v375, %v506
  %v510 = vadd.f32 %v508, %v509
  %512 = vrot.lane.b32.xlu0 %v510, 96
  %v513 = vpop.permute.xlu0 %512
  %v515 = vsel %vm382, %v380, %v513
  %vm516 = vcmask 517120
  %517 = vst.msk [vmem:[#allocation3] sm:$0x3] %vm516, %v515
  %v518 = vmul.f32 %v375, %v510
  %520 = vrot.lane.b32.xlu0 %v518, 96
  %v521 = vpop.permute.xlu0 %520
  %v523 = vsel %vm382, %v380, %v521
  %v524 = vld [vmem:[#allocation2] sm:$0xc]
  %v525 = vld [vmem:[#allocation2 + $0x8] sm:$0xc]
  %v527 = vsel %vm266, %v523, 0
  %529 = vmatprep.subr.mxu0 %v231
  %530 = vmatpush1.msra.mxu0 %v230
  %531 = vmatprep.subr.mxu0 %v233
  %532 = vmatpush1.msra.mxu0 %v232
  %533 = vmatprep.subr.mxu0 %v235
  %534 = vmatpush1.msra.mxu0 %v234
  %535 = vmatprep.subr.mxu0 %v237
  %536 = vmatpush1.msra.mxu0 %v236
  %537 = vmatprep.subr.mxu0 %v239
  %538 = vmatpush1.msra.mxu0 %v238
  %539 = vmatprep.subr.mxu0 %v241
  %540 = vmatpush1.msra.mxu0 %v240
  %541 = vmatprep.subr.mxu0 %v243
  %542 = vmatpush1.msra.mxu0 %v242
  %543 = vmatprep.subr.mxu0 %v245
  %544 = vmatpush1.msra.mxu0 %v244
  %545 = vmatprep.subr.mxu0 0.0
  %546 = vmatpush1.msra.mxu0 0.0
  %547 = vmatprep.subr.mxu0 0.0
  %548 = vmatpush1.msra.mxu0 0.0
  %549 = vmatprep.subr.mxu0 0.0
  %550 = vmatpush1.msra.mxu0 0.0
  %551 = vmatprep.subr.mxu0 0.0
  %552 = vmatpush1.msra.mxu0 0.0
  %553 = vmatprep.subr.mxu0 0.0
  %554 = vmatpush1.msra.mxu0 0.0
  %555 = vmatprep.subr.mxu0 0.0
  %556 = vmatpush1.msra.mxu0 0.0
  %557 = vmatprep.subr.mxu0 0.0
  %558 = vmatpush1.msra.mxu0 0.0
  %559 = vmatprep.subr.mxu0 0.0
  %560 = vmatpush1.msra.mxu0 0.0
  %561 = vmatprep.subr.mxu0 0.0
  %562 = vmatpush1.msra.mxu0 0.0
  %563 = vmatprep.subr.mxu0 0.0
  %564 = vmatpush1.msra.mxu0 0.0
  %565 = vmatprep.subr.mxu0 0.0
  %566 = vmatpush1.msra.mxu0 0.0
  %567 = vmatprep.subr.mxu0 0.0
  %568 = vmatpush1.msra.mxu0 0.0
  %569 = vmatprep.subr.mxu0 0.0
  %570 = vmatpush1.msra.mxu0 0.0
  %571 = vmatprep.subr.mxu0 0.0
  %572 = vmatpush1.msra.mxu0 0.0
  %573 = vmatprep.subr.mxu0 0.0
  %574 = vmatpush1.msra.mxu0 0.0
  %575 = vmatprep.subr.mxu0 0.0
  %576 = vmatpush1.msra.mxu0 0.0
  %577 = vmatprep.subr.mxu0 0.0
  %578 = vmatpush1.msra.mxu0 0.0
  %579 = vmatprep.subr.mxu0 0.0
  %580 = vmatpush1.msra.mxu0 0.0
  %581 = vmatprep.subr.mxu0 0.0
  %582 = vmatpush1.msra.mxu0 0.0
  %583 = vmatprep.subr.mxu0 0.0
  %584 = vmatpush1.msra.mxu0 0.0
  %585 = vmatprep.subr.mxu0 0.0
  %586 = vmatpush1.msra.mxu0 0.0
  %587 = vmatprep.subr.mxu0 0.0
  %588 = vmatpush1.msra.mxu0 0.0
  %589 = vmatprep.subr.mxu0 0.0
  %590 = vmatpush1.msra.mxu0 0.0
  %591 = vmatprep.subr.mxu0 0.0
  %592 = vmatpush1.msra.mxu0 0.0
  %593 = vmatprep.mubr.f32.mxu0 0.0
  %594 = vmatmul.mubr.f32.gmra.mrb[0].mxu0 %v527
  %v595 = vpop.f32.mrb[0].mxu0
  %v596 = vadd.f32 0.0, %v595
  %v597 = vpop.f32.mrb[0].mxu0
  %v598 = vadd.f32 0.0, %v597
  %599 = vdwg.mxu0
  %v602 = vrot.slane %v596, 6
  %v603 = vrot.slane %v598, 6
  %v606 = vadd.f32 %v524, %v602
  %v607 = vadd.f32 %v525, %v603
  %v608 = vtanh.pop %v606
  %v609 = vmul.f32 %v608, 0.5
  %v610 = vadd.f32 %v609, 0.5
  %vm611 = vcmp.gt.f32.partialorder %v607, 0.0
  %v612 = vsel %vm611, 1, 0
  %v613 = vcvt.s32.f32 %v612
  %615 = vrot.lane.b32.xlu0 %v608, 64
  %v616 = vpop.permute.xlu0 %615
  %v618 = vmul.f32 %v610, %v616
  %v620 = vrot.slane %v618, 2
  %621 = vrot.lane.b32.xlu0 %v620, 96
  %v622 = vpop.permute.xlu0 %621
  %v624 = vmul.f32 %v375, %v622
  %v626 = vrot.slane %v365, 6
  %627 = vrot.lane.b32.xlu0 %v626, 96
  %v628 = vpop.permute.xlu0 %627
  %v630 = vmul.f32 %v610, %v628
  %631 = vrot.lane.b32.xlu0 %v618, 96
  %v632 = vpop.permute.xlu0 %631
  %v634 = vadd.f32 %v630, %v632
  %v636 = vrot.slane %v634, 2
  %v638 = vmul.f32 %v485, %v636
  %v639 = vadd.f32 %v624, %v638
  %v640 = vtanh.pop %v639
  %v642 = vrot.slane %v640, 6
  %643 = vrot.lane.b32.xlu0 %v642, 64
  %v644 = vpop.permute.xlu0 %643
  %v646 = vmul.f32 %v610, %v644
  %648 = vset.pattern.permute.xlu0 0
  %649 = vperm.xlu0 %648, %v613
  %v650 = vpop.permute.xlu0 %649
  %v652 = vrot.slane %v510, 6
  %653 = vrot.lane.b32.xlu0 %v652, 64
  %v654 = vpop.permute.xlu0 %653
  %v656 = vmul.f32 %v650, %v654
  %658 = vrot.lane.b32.xlu0 %v646, 64
  %v659 = vpop.permute.xlu0 %658
  %662 = vrot.lane.b32.xlu0 %v656, 32
  %v663 = vpop.permute.xlu0 %662
  %v665 = vsel %vm382, %v659, %v663
  %v667 = vrot.slane %v665, 2
  %v668 = vsel %vm266, %v667, 0
  %670 = vmatprep.subr.mxu0 %v247
  %671 = vmatpush1.msra.mxu0 %v246
  %672 = vmatprep.subr.mxu0 %v249
  %673 = vmatpush1.msra.mxu0 %v248
  %674 = vmatprep.subr.mxu0 %v251
  %675 = vmatpush1.msra.mxu0 %v250
  %676 = vmatprep.subr.mxu0 %v253
  %677 = vmatpush1.msra.mxu0 %v252
  %678 = vmatprep.subr.mxu0 %v255
  %679 = vmatpush1.msra.mxu0 %v254
  %680 = vmatprep.subr.mxu0 %v257
  %681 = vmatpush1.msra.mxu0 %v256
  %682 = vmatprep.subr.mxu0 %v259
  %683 = vmatpush1.msra.mxu0 %v258
  %684 = vmatprep.subr.mxu0 %v261
  %685 = vmatpush1.msra.mxu0 %v260
  %686 = vmatprep.subr.mxu0 0.0
  %687 = vmatpush1.msra.mxu0 0.0
  %688 = vmatprep.subr.mxu0 0.0
  %689 = vmatpush1.msra.mxu0 0.0
  %690 = vmatprep.subr.mxu0 0.0
  %691 = vmatpush1.msra.mxu0 0.0
  %692 = vmatprep.subr.mxu0 0.0
  %693 = vmatpush1.msra.mxu0 0.0
  %694 = vmatprep.subr.mxu0 0.0
  %695 = vmatpush1.msra.mxu0 0.0
  %696 = vmatprep.subr.mxu0 0.0
  %697 = vmatpush1.msra.mxu0 0.0
  %698 = vmatprep.subr.mxu0 0.0
  %699 = vmatpush1.msra.mxu0 0.0
  %700 = vmatprep.subr.mxu0 0.0
  %701 = vmatpush1.msra.mxu0 0.0
  %702 = vmatprep.subr.mxu0 0.0
  %703 = vmatpush1.msra.mxu0 0.0
  %704 = vmatprep.subr.mxu0 0.0
  %705 = vmatpush1.msra.mxu0 0.0
  %706 = vmatprep.subr.mxu0 0.0
  %707 = vmatpush1.msra.mxu0 0.0
  %708 = vmatprep.subr.mxu0 0.0
  %709 = vmatpush1.msra.mxu0 0.0
  %710 = vmatprep.subr.mxu0 0.0
  %711 = vmatpush1.msra.mxu0 0.0
  %712 = vmatprep.subr.mxu0 0.0
  %713 = vmatpush1.msra.mxu0 0.0
  %714 = vmatprep.subr.mxu0 0.0
  %715 = vmatpush1.msra.mxu0 0.0
  %716 = vmatprep.subr.mxu0 0.0
  %717 = vmatpush1.msra.mxu0 0.0
  %718 = vmatprep.subr.mxu0 0.0
  %719 = vmatpush1.msra.mxu0 0.0
  %720 = vmatprep.subr.mxu0 0.0
  %721 = vmatpush1.msra.mxu0 0.0
  %722 = vmatprep.subr.mxu0 0.0
  %723 = vmatpush1.msra.mxu0 0.0
  %724 = vmatprep.subr.mxu0 0.0
  %725 = vmatpush1.msra.mxu0 0.0
  %726 = vmatprep.subr.mxu0 0.0
  %727 = vmatpush1.msra.mxu0 0.0
  %728 = vmatprep.subr.mxu0 0.0
  %729 = vmatpush1.msra.mxu0 0.0
  %730 = vmatprep.subr.mxu0 0.0
  %731 = vmatpush1.msra.mxu0 0.0
  %732 = vmatprep.subr.mxu0 0.0
  %733 = vmatpush1.msra.mxu0 0.0
  %734 = vmatprep.mubr.f32.mxu0 0.0
  %735 = vmatmul.mubr.f32.gmra.mrb[0].mxu0 %v668
  %v736 = vpop.f32.mrb[0].mxu0
  %v737 = vadd.f32 %v388, %v736
  %v738 = vpop.f32.mrb[0].mxu0
  %v739 = vadd.f32 %v392, %v738
  %740 = vdwg.mxu0
  %v741 = vtanh.pop %v737
  %v742 = vmul.f32 %v741, 0.5
  %v743 = vadd.f32 %v742, 0.5
  %vm744 = vcmp.gt.f32.partialorder %v739, 0.0
  %v745 = vsel %vm744, 1, 0
  %v746 = vcvt.s32.f32 %v745
  %748 = vrot.lane.b32.xlu0 %v741, 64
  %v749 = vpop.permute.xlu0 %748
  %v751 = vmul.f32 %v743, %v749
  %753 = vset.pattern.permute.xlu0 0
  %754 = vperm.xlu0 %753, %v474
  %v755 = vpop.permute.xlu0 %754
  %v757 = vmul.f32 %v755, %v751
  %v758 = vsub.f32 1.0, %v474
  %v759 = vsub.f32 1.0, %v613
  %v761 = vrot.slane %v759, 2
  %v763 = vmul.f32 %v758, %v761
  %765 = vset.pattern.permute.xlu0 0
  %766 = vperm.xlu0 %765, %v763
  %v767 = vpop.permute.xlu0 %766
  %v769 = vmul.f32 %v767, %v500
  %v770 = vadd.f32 %v757, %v769
  %v771 = vrot.slane %v613, 2
  %v773 = vmul.f32 %v758, %v771
  %775 = vrot.lane.b32.xlu0 %v500, 96
  %v776 = vpop.permute.xlu0 %775
  %v778 = vmul.f32 %v743, %v776
  %780 = vrot.lane.b32.xlu0 %v751, 96
  %v781 = vpop.permute.xlu0 %780
  %v783 = vadd.f32 %v778, %v781
  %785 = vset.pattern.permute.xlu0 0
  %786 = vperm.xlu0 %785, %v773
  %v787 = vpop.permute.xlu0 %786
  %v789 = vmul.f32 %v787, %v783
  %791 = vrot.lane.b32.xlu0 %v789, 32
  %v792 = vpop.permute.xlu0 %791
  %v794 = vadd.f32 %v770, %v792
  %v795 = vtanh.pop %v794
  %797 = vrot.lane.b32.xlu0 %v795, 32
  %v798 = vpop.permute.xlu0 %797
  %v800 = vmul.f32 %v743, %v798
  %v801 = vmul.f32 %v755, %v800
  %v802 = vmul.f32 %v767, %v510
  %v803 = vadd.f32 %v801, %v802
  %v804 = vmul.f32 %v787, %v800
  %v805 = vadd.f32 %v803, %v804
  %v807 = vrot.slane %v805, 6
  %808 = vrot.lane.b32.xlu0 %v807, 96
  %v809 = vpop.permute.xlu0 %808
  %v811 = vsel %vm382, %v659, %v809
  %vm812 = vcmask 519170
  %813 = vst.msk [vmem:[#allocation3] sm:$0xc] %vm812, %v811
  %814 = vrot.lane.b32.xlu0 %v807, 64
  %v815 = vpop.permute.xlu0 %814
  %v817 = vmul.f32 %v650, %v815
  %819 = vrot.lane.b32.xlu0 %v817, 32
  %v820 = vpop.permute.xlu0 %819
  %v822 = vsel %vm382, %v659, %v820
  %v823 = vld [vmem:[#allocation2] sm:$0x30]
  %v824 = vld [vmem:[#allocation2 + $0x8] sm:$0x30]
  %v826 = vrot.slane %v822, 2
  %v827 = vsel %vm266, %v826, 0
  %829 = vmatprep.subr.mxu0 %v231
  %830 = vmatpush1.msra.mxu0 %v230
  %831 = vmatprep.subr.mxu0 %v233
  %832 = vmatpush1.msra.mxu0 %v232
  %833 = vmatprep.subr.mxu0 %v235
  %834 = vmatpush1.msra.mxu0 %v234
  %835 = vmatprep.subr.mxu0 %v237
  %836 = vmatpush1.msra.mxu0 %v236
  %837 = vmatprep.subr.mxu0 %v239
  %838 = vmatpush1.msra.mxu0 %v238
  %839 = vmatprep.subr.mxu0 %v241
  %840 = vmatpush1.msra.mxu0 %v240
  %841 = vmatprep.subr.mxu0 %v243
  %842 = vmatpush1.msra.mxu0 %v242
  %843 = vmatprep.subr.mxu0 %v245
  %844 = vmatpush1.msra.mxu0 %v244
  %845 = vmatprep.subr.mxu0 0.0
  %846 = vmatpush1.msra.mxu0 0.0
  %847 = vmatprep.subr.mxu0 0.0
  %848 = vmatpush1.msra.mxu0 0.0
  %849 = vmatprep.subr.mxu0 0.0
  %850 = vmatpush1.msra.mxu0 0.0
  %851 = vmatprep.subr.mxu0 0.0
  %852 = vmatpush1.msra.mxu0 0.0
  %853 = vmatprep.subr.mxu0 0.0
  %854 = vmatpush1.msra.mxu0 0.0
  %855 = vmatprep.subr.mxu0 0.0
  %856 = vmatpush1.msra.mxu0 0.0
  %857 = vmatprep.subr.mxu0 0.0
  %858 = vmatpush1.msra.mxu0 0.0
  %859 = vmatprep.subr.mxu0 0.0
  %860 = vmatpush1.msra.mxu0 0.0
  %861 = vmatprep.subr.mxu0 0.0
  %862 = vmatpush1.msra.mxu0 0.0
  %863 = vmatprep.subr.mxu0 0.0
  %864 = vmatpush1.msra.mxu0 0.0
  %865 = vmatprep.subr.mxu0 0.0
  %866 = vmatpush1.msra.mxu0 0.0
  %867 = vmatprep.subr.mxu0 0.0
  %868 = vmatpush1.msra.mxu0 0.0
  %869 = vmatprep.subr.mxu0 0.0
  %870 = vmatpush1.msra.mxu0 0.0
  %871 = vmatprep.subr.mxu0 0.0
  %872 = vmatpush1.msra.mxu0 0.0
  %873 = vmatprep.subr.mxu0 0.0
  %874 = vmatpush1.msra.mxu0 0.0
  %875 = vmatprep.subr.mxu0 0.0
  %876 = vmatpush1.msra.mxu0 0.0
  %877 = vmatprep.subr.mxu0 0.0
  %878 = vmatpush1.msra.mxu0 0.0
  %879 = vmatprep.subr.mxu0 0.0
  %880 = vmatpush1.msra.mxu0 0.0
  %881 = vmatprep.subr.mxu0 0.0
  %882 = vmatpush1.msra.mxu0 0.0
  %883 = vmatprep.subr.mxu0 0.0
  %884 = vmatpush1.msra.mxu0 0.0
  %885 = vmatprep.subr.mxu0 0.0
  %886 = vmatpush1.msra.mxu0 0.0
  %887 = vmatprep.subr.mxu0 0.0
  %888 = vmatpush1.msra.mxu0 0.0
  %889 = vmatprep.subr.mxu0 0.0
  %890 = vmatpush1.msra.mxu0 0.0
  %891 = vmatprep.subr.mxu0 0.0
  %892 = vmatpush1.msra.mxu0 0.0
  %893 = vmatprep.mubr.f32.mxu0 0.0
  %894 = vmatmul.mubr.f32.gmra.mrb[0].mxu0 %v827
  %v895 = vpop.f32.mrb[0].mxu0
  %v896 = vadd.f32 0.0, %v895
  %v897 = vpop.f32.mrb[0].mxu0
  %v898 = vadd.f32 0.0, %v897
  %899 = vdwg.mxu0
  %v902 = vrot.slane %v896, 4
  %v903 = vrot.slane %v898, 4
  %v906 = vadd.f32 %v823, %v902
  %v907 = vadd.f32 %v824, %v903
  %v908 = vtanh.pop %v906
  %v909 = vmul.f32 %v908, 0.5
  %v910 = vadd.f32 %v909, 0.5
  %vm911 = vcmp.gt.f32.partialorder %v907, 0.0
  %v912 = vsel %vm911, 1, 0
  %v913 = vcvt.s32.f32 %v912
  %915 = vrot.lane.b32.xlu0 %v908, 64
  %v916 = vpop.permute.xlu0 %915
  %v918 = vmul.f32 %v910, %v916
  %v920 = vrot.slane %v918, 2
  %921 = vrot.lane.b32.xlu0 %v920, 96
  %v922 = vpop.permute.xlu0 %921
  %v924 = vmul.f32 %v650, %v922
  %v926 = vrot.slane %v639, 4
  %v928 = vmul.f32 %v910, %v926
  %929 = vrot.lane.b32.xlu0 %v918, 96
  %v930 = vpop.permute.xlu0 %929
  %v932 = vadd.f32 %v928, %v930
  %933 = vset.pattern.permute.xlu0 0
  %934 = vperm.xlu0 %933, %v759
  %v935 = vpop.permute.xlu0 %934
  %v938 = vrot.slane %v932, 2
  %v940 = vmul.f32 %v935, %v938
  %v941 = vadd.f32 %v924, %v940
  %v942 = vtanh.pop %v941
  %v944 = vrot.slane %v942, 6
  %945 = vrot.lane.b32.xlu0 %v944, 64
  %v946 = vpop.permute.xlu0 %945
  %v948 = vmul.f32 %v910, %v946
  %950 = vset.pattern.permute.xlu0 0
  %951 = vperm.xlu0 %950, %v913
  %v952 = vpop.permute.xlu0 %951
  %v954 = vrot.slane %v805, 4
  %955 = vrot.lane.b32.xlu0 %v954, 64
  %v956 = vpop.permute.xlu0 %955
  %v958 = vmul.f32 %v952, %v956
  %960 = vrot.lane.b32.xlu0 %v948, 64
  %v961 = vpop.permute.xlu0 %960
  %964 = vrot.lane.b32.xlu0 %v958, 32
  %v965 = vpop.permute.xlu0 %964
  %v967 = vsel %vm382, %v961, %v965
  %v969 = vrot.slane %v967, 4
  %v970 = vsel %vm266, %v969, 0
  %972 = vmatprep.subr.mxu0 %v247
  %973 = vmatpush1.msra.mxu0 %v246
  %974 = vmatprep.subr.mxu0 %v249
  %975 = vmatpush1.msra.mxu0 %v248
  %976 = vmatprep.subr.mxu0 %v251
  %977 = vmatpush1.msra.mxu0 %v250
  %978 = vmatprep.subr.mxu0 %v253
  %979 = vmatpush1.msra.mxu0 %v252
  %980 = vmatprep.subr.mxu0 %v255
  %981 = vmatpush1.msra.mxu0 %v254
  %982 = vmatprep.subr.mxu0 %v257
  %983 = vmatpush1.msra.mxu0 %v256
  %984 = vmatprep.subr.mxu0 %v259
  %985 = vmatpush1.msra.mxu0 %v258
  %986 = vmatprep.subr.mxu0 %v261
  %987 = vmatpush1.msra.mxu0 %v260
  %988 = vmatprep.subr.mxu0 0.0
  %989 = vmatpush1.msra.mxu0 0.0
  %990 = vmatprep.subr.mxu0 0.0
  %991 = vmatpush1.msra.mxu0 0.0
  %992 = vmatprep.subr.mxu0 0.0
  %993 = vmatpush1.msra.mxu0 0.0
  %994 = vmatprep.subr.mxu0 0.0
  %995 = vmatpush1.msra.mxu0 0.0
  %996 = vmatprep.subr.mxu0 0.0
  %997 = vmatpush1.msra.mxu0 0.0
  %998 = vmatprep.subr.mxu0 0.0
  %999 = vmatpush1.msra.mxu0 0.0
  %1000 = vmatprep.subr.mxu0 0.0
  %1001 = vmatpush1.msra.mxu0 0.0
  %1002 = vmatprep.subr.mxu0 0.0
  %1003 = vmatpush1.msra.mxu0 0.0
  %1004 = vmatprep.subr.mxu0 0.0
  %1005 = vmatpush1.msra.mxu0 0.0
  %1006 = vmatprep.subr.mxu0 0.0
  %1007 = vmatpush1.msra.mxu0 0.0
  %1008 = vmatprep.subr.mxu0 0.0
  %1009 = vmatpush1.msra.mxu0 0.0
  %1010 = vmatprep.subr.mxu0 0.0
  %1011 = vmatpush1.msra.mxu0 0.0
  %1012 = vmatprep.subr.mxu0 0.0
  %1013 = vmatpush1.msra.mxu0 0.0
  %1014 = vmatprep.subr.mxu0 0.0
  %1015 = vmatpush1.msra.mxu0 0.0
  %1016 = vmatprep.subr.mxu0 0.0
  %1017 = vmatpush1.msra.mxu0 0.0
  %1018 = vmatprep.subr.mxu0 0.0
  %1019 = vmatpush1.msra.mxu0 0.0
  %1020 = vmatprep.subr.mxu0 0.0
  %1021 = vmatpush1.msra.mxu0 0.0
  %1022 = vmatprep.subr.mxu0 0.0
  %1023 = vmatpush1.msra.mxu0 0.0
  %1024 = vmatprep.subr.mxu0 0.0
  %1025 = vmatpush1.msra.mxu0 0.0
  %1026 = vmatprep.subr.mxu0 0.0
  %1027 = vmatpush1.msra.mxu0 0.0
  %1028 = vmatprep.subr.mxu0 0.0
  %1029 = vmatpush1.msra.mxu0 0.0
  %1030 = vmatprep.subr.mxu0 0.0
  %1031 = vmatpush1.msra.mxu0 0.0
  %1032 = vmatprep.subr.mxu0 0.0
  %1033 = vmatpush1.msra.mxu0 0.0
  %1034 = vmatprep.subr.mxu0 0.0
  %1035 = vmatpush1.msra.mxu0 0.0
  %1036 = vmatprep.mubr.f32.mxu0 0.0
  %1037 = vmatmul.mubr.f32.gmra.mrb[0].mxu0 %v970
  %v1038 = vpop.f32.mrb[0].mxu0
  %v1039 = vadd.f32 %v388, %v1038
  %v1040 = vpop.f32.mrb[0].mxu0
  %v1041 = vadd.f32 %v392, %v1040
  %1042 = vdwg.mxu0
  %v1043 = vtanh.pop %v1039
  %v1044 = vmul.f32 %v1043, 0.5
  %v1045 = vadd.f32 %v1044, 0.5
  %vm1046 = vcmp.gt.f32.partialorder %v1041, 0.0
  %v1047 = vsel %vm1046, 1, 0
  %v1048 = vcvt.s32.f32 %v1047
  %1050 = vrot.lane.b32.xlu0 %v1043, 64
  %v1051 = vpop.permute.xlu0 %1050
  %v1053 = vmul.f32 %v1045, %v1051
  %1055 = vset.pattern.permute.xlu0 0
  %1056 = vperm.xlu0 %1055, %v746
  %v1057 = vpop.permute.xlu0 %1056
  %v1059 = vmul.f32 %v1057, %v1053
  %v1060 = vsub.f32 1.0, %v746
  %v1061 = vsub.f32 1.0, %v913
  %v1063 = vrot.slane %v1061, 4
  %v1065 = vmul.f32 %v1060, %v1063
  %1067 = vset.pattern.permute.xlu0 0
  %1068 = vperm.xlu0 %1067, %v1065
  %v1069 = vpop.permute.xlu0 %1068
  %v1071 = vmul.f32 %v1069, %v794
  %v1072 = vadd.f32 %v1059, %v1071
  %v1073 = vrot.slane %v913, 4
  %v1075 = vmul.f32 %v1060, %v1073
  %1077 = vrot.lane.b32.xlu0 %v794, 96
  %v1078 = vpop.permute.xlu0 %1077
  %v1080 = vmul.f32 %v1045, %v1078
  %1082 = vrot.lane.b32.xlu0 %v1053, 96
  %v1083 = vpop.permute.xlu0 %1082
  %v1085 = vadd.f32 %v1080, %v1083
  %1087 = vset.pattern.permute.xlu0 0
  %1088 = vperm.xlu0 %1087, %v1075
  %v1089 = vpop.permute.xlu0 %1088
  %v1091 = vmul.f32 %v1089, %v1085
  %1093 = vrot.lane.b32.xlu0 %v1091, 32
  %v1094 = vpop.permute.xlu0 %1093
  %v1096 = vadd.f32 %v1072, %v1094
  %v1097 = vtanh.pop %v1096
  %1099 = vrot.lane.b32.xlu0 %v1097, 32
  %v1100 = vpop.permute.xlu0 %1099
  %v1102 = vmul.f32 %v1045, %v1100
  %v1103 = vmul.f32 %v1057, %v1102
  %v1104 = vmul.f32 %v1069, %v805
  %v1105 = vadd.f32 %v1103, %v1104
  %v1106 = vmul.f32 %v1089, %v1102
  %v1107 = vadd.f32 %v1105, %v1106
  %v1109 = vrot.slane %v1107, 4
  %1110 = vrot.lane.b32.xlu0 %v1109, 96
  %v1111 = vpop.permute.xlu0 %1110
  %v1113 = vsel %vm382, %v961, %v1111
  %vm1114 = vcmask 521220
  %1115 = vst.msk [vmem:[#allocation3] sm:$0x30] %vm1114, %v1113
  %1116 = vrot.lane.b32.xlu0 %v1109, 64
  %v1117 = vpop.permute.xlu0 %1116
  %v1119 = vmul.f32 %v952, %v1117
  %1121 = vrot.lane.b32.xlu0 %v1119, 32
  %v1122 = vpop.permute.xlu0 %1121
  %v1124 = vsel %vm382, %v961, %v1122
  %v1125 = vld [vmem:[#allocation2] sm:$0xc0]
  %v1126 = vld [vmem:[#allocation2 + $0x8] sm:$0xc0]
  %v1128 = vrot.slane %v1124, 4
  %v1129 = vsel %vm266, %v1128, 0
  %1131 = vmatprep.subr.mxu0 %v231
  %1132 = vmatpush1.msra.mxu0 %v230
  %1133 = vmatprep.subr.mxu0 %v233
  %1134 = vmatpush1.msra.mxu0 %v232
  %1135 = vmatprep.subr.mxu0 %v235
  %1136 = vmatpush1.msra.mxu0 %v234
  %1137 = vmatprep.subr.mxu0 %v237
  %1138 = vmatpush1.msra.mxu0 %v236
  %1139 = vmatprep.subr.mxu0 %v239
  %1140 = vmatpush1.msra.mxu0 %v238
  %1141 = vmatprep.subr.mxu0 %v241
  %1142 = vmatpush1.msra.mxu0 %v240
  %1143 = vmatprep.subr.mxu0 %v243
  %1144 = vmatpush1.msra.mxu0 %v242
  %1145 = vmatprep.subr.mxu0 %v245
  %1146 = vmatpush1.msra.mxu0 %v244
  %1147 = vmatprep.subr.mxu0 0.0
  %1148 = vmatpush1.msra.mxu0 0.0
  %1149 = vmatprep.subr.mxu0 0.0
  %1150 = vmatpush1.msra.mxu0 0.0
  %1151 = vmatprep.subr.mxu0 0.0
  %1152 = vmatpush1.msra.mxu0 0.0
  %1153 = vmatprep.subr.mxu0 0.0
  %1154 = vmatpush1.msra.mxu0 0.0
  %1155 = vmatprep.subr.mxu0 0.0
  %1156 = vmatpush1.msra.mxu0 0.0
  %1157 = vmatprep.subr.mxu0 0.0
  %1158 = vmatpush1.msra.mxu0 0.0
  %1159 = vmatprep.subr.mxu0 0.0
  %1160 = vmatpush1.msra.mxu0 0.0
  %1161 = vmatprep.subr.mxu0 0.0
  %1162 = vmatpush1.msra.mxu0 0.0
  %1163 = vmatprep.subr.mxu0 0.0
  %1164 = vmatpush1.msra.mxu0 0.0
  %1165 = vmatprep.subr.mxu0 0.0
  %1166 = vmatpush1.msra.mxu0 0.0
  %1167 = vmatprep.subr.mxu0 0.0
  %1168 = vmatpush1.msra.mxu0 0.0
  %1169 = vmatprep.subr.mxu0 0.0
  %1170 = vmatpush1.msra.mxu0 0.0
  %1171 = vmatprep.subr.mxu0 0.0
  %1172 = vmatpush1.msra.mxu0 0.0
  %1173 = vmatprep.subr.mxu0 0.0
  %1174 = vmatpush1.msra.mxu0 0.0
  %1175 = vmatprep.subr.mxu0 0.0
  %1176 = vmatpush1.msra.mxu0 0.0
  %1177 = vmatprep.subr.mxu0 0.0
  %1178 = vmatpush1.msra.mxu0 0.0
  %1179 = vmatprep.subr.mxu0 0.0
  %1180 = vmatpush1.msra.mxu0 0.0
  %1181 = vmatprep.subr.mxu0 0.0
  %1182 = vmatpush1.msra.mxu0 0.0
  %1183 = vmatprep.subr.mxu0 0.0
  %1184 = vmatpush1.msra.mxu0 0.0
  %1185 = vmatprep.subr.mxu0 0.0
  %1186 = vmatpush1.msra.mxu0 0.0
  %1187 = vmatprep.subr.mxu0 0.0
  %1188 = vmatpush1.msra.mxu0 0.0
  %1189 = vmatprep.subr.mxu0 0.0
  %1190 = vmatpush1.msra.mxu0 0.0
  %1191 = vmatprep.subr.mxu0 0.0
  %1192 = vmatpush1.msra.mxu0 0.0
  %1193 = vmatprep.subr.mxu0 0.0
  %1194 = vmatpush1.msra.mxu0 0.0
  %1195 = vmatprep.mubr.f32.mxu0 0.0
  %1196 = vmatmul.mubr.f32.gmra.mrb[0].mxu0 %v1129
  %v1197 = vpop.f32.mrb[0].mxu0
  %v1198 = vadd.f32 0.0, %v1197
  %v1199 = vpop.f32.mrb[0].mxu0
  %v1200 = vadd.f32 0.0, %v1199
  %1201 = vdwg.mxu0
  %v1204 = vrot.slane %v1198, 2
  %v1205 = vrot.slane %v1200, 2
  %v1208 = vadd.f32 %v1125, %v1204
  %v1209 = vadd.f32 %v1126, %v1205
  %v1210 = vtanh.pop %v1208
  %v1211 = vmul.f32 %v1210, 0.5
  %v1212 = vadd.f32 %v1211, 0.5
  %vm1213 = vcmp.gt.f32.partialorder %v1209, 0.0
  %v1214 = vsel %vm1213, 1, 0
  %v1215 = vcvt.s32.f32 %v1214
  %1217 = vrot.lane.b32.xlu0 %v1210, 64
  %v1218 = vpop.permute.xlu0 %1217
  %v1220 = vmul.f32 %v1212, %v1218
  %v1222 = vrot.slane %v1220, 2
  %1223 = vrot.lane.b32.xlu0 %v1222, 96
  %v1224 = vpop.permute.xlu0 %1223
  %v1226 = vmul.f32 %v952, %v1224
  %v1228 = vrot.slane %v941, 4
  %v1230 = vmul.f32 %v1212, %v1228
  %1231 = vrot.lane.b32.xlu0 %v1220, 96
  %v1232 = vpop.permute.xlu0 %1231
  %v1234 = vadd.f32 %v1230, %v1232
  %1235 = vset.pattern.permute.xlu0 0
  %1236 = vperm.xlu0 %1235, %v1061
  %v1237 = vpop.permute.xlu0 %1236
  %v1240 = vrot.slane %v1234, 2
  %v1242 = vmul.f32 %v1237, %v1240
  %v1243 = vadd.f32 %v1226, %v1242
  %v1244 = vtanh.pop %v1243
  %v1246 = vrot.slane %v1244, 6
  %1247 = vrot.lane.b32.xlu0 %v1246, 64
  %v1248 = vpop.permute.xlu0 %1247
  %v1250 = vmul.f32 %v1212, %v1248
  %1252 = vset.pattern.permute.xlu0 0
  %1253 = vperm.xlu0 %1252, %v1215
  %v1254 = vpop.permute.xlu0 %1253
  %v1256 = vrot.slane %v1107, 2
  %1257 = vrot.lane.b32.xlu0 %v1256, 64
  %v1258 = vpop.permute.xlu0 %1257
  %v1260 = vmul.f32 %v1254, %v1258
  %1262 = vrot.lane.b32.xlu0 %v1250, 64
  %v1263 = vpop.permute.xlu0 %1262
  %1266 = vrot.lane.b32.xlu0 %v1260, 32
  %v1267 = vpop.permute.xlu0 %1266
  %v1269 = vsel %vm382, %v1263, %v1267
  %v1271 = vrot.slane %v1269, 6
  %v1272 = vsel %vm266, %v1271, 0
  %1274 = vmatprep.subr.mxu0 %v247
  %1275 = vmatpush1.msra.mxu0 %v246
  %1276 = vmatprep.subr.mxu0 %v249
  %1277 = vmatpush1.msra.mxu0 %v248
  %1278 = vmatprep.subr.mxu0 %v251
  %1279 = vmatpush1.msra.mxu0 %v250
  %1280 = vmatprep.subr.mxu0 %v253
  %1281 = vmatpush1.msra.mxu0 %v252
  %1282 = vmatprep.subr.mxu0 %v255
  %1283 = vmatpush1.msra.mxu0 %v254
  %1284 = vmatprep.subr.mxu0 %v257
  %1285 = vmatpush1.msra.mxu0 %v256
  %1286 = vmatprep.subr.mxu0 %v259
  %1287 = vmatpush1.msra.mxu0 %v258
  %1288 = vmatprep.subr.mxu0 %v261
  %1289 = vmatpush1.msra.mxu0 %v260
  %1290 = vmatprep.subr.mxu0 0.0
  %1291 = vmatpush1.msra.mxu0 0.0
  %1292 = vmatprep.subr.mxu0 0.0
  %1293 = vmatpush1.msra.mxu0 0.0
  %1294 = vmatprep.subr.mxu0 0.0
  %1295 = vmatpush1.msra.mxu0 0.0
  %1296 = vmatprep.subr.mxu0 0.0
  %1297 = vmatpush1.msra.mxu0 0.0
  %1298 = vmatprep.subr.mxu0 0.0
  %1299 = vmatpush1.msra.mxu0 0.0
  %1300 = vmatprep.subr.mxu0 0.0
  %1301 = vmatpush1.msra.mxu0 0.0
  %1302 = vmatprep.subr.mxu0 0.0
  %1303 = vmatpush1.msra.mxu0 0.0
  %1304 = vmatprep.subr.mxu0 0.0
  %1305 = vmatpush1.msra.mxu0 0.0
  %1306 = vmatprep.subr.mxu0 0.0
  %1307 = vmatpush1.msra.mxu0 0.0
  %1308 = vmatprep.subr.mxu0 0.0
  %1309 = vmatpush1.msra.mxu0 0.0
  %1310 = vmatprep.subr.mxu0 0.0
  %1311 = vmatpush1.msra.mxu0 0.0
  %1312 = vmatprep.subr.mxu0 0.0
  %1313 = vmatpush1.msra.mxu0 0.0
  %1314 = vmatprep.subr.mxu0 0.0
  %1315 = vmatpush1.msra.mxu0 0.0
  %1316 = vmatprep.subr.mxu0 0.0
  %1317 = vmatpush1.msra.mxu0 0.0
  %1318 = vmatprep.subr.mxu0 0.0
  %1319 = vmatpush1.msra.mxu0 0.0
  %1320 = vmatprep.subr.mxu0 0.0
  %1321 = vmatpush1.msra.mxu0 0.0
  %1322 = vmatprep.subr.mxu0 0.0
  %1323 = vmatpush1.msra.mxu0 0.0
  %1324 = vmatprep.subr.mxu0 0.0
  %1325 = vmatpush1.msra.mxu0 0.0
  %1326 = vmatprep.subr.mxu0 0.0
  %1327 = vmatpush1.msra.mxu0 0.0
  %1328 = vmatprep.subr.mxu0 0.0
  %1329 = vmatpush1.msra.mxu0 0.0
  %1330 = vmatprep.subr.mxu0 0.0
  %1331 = vmatpush1.msra.mxu0 0.0
  %1332 = vmatprep.subr.mxu0 0.0
  %1333 = vmatpush1.msra.mxu0 0.0
  %1334 = vmatprep.subr.mxu0 0.0
  %1335 = vmatpush1.msra.mxu0 0.0
  %1336 = vmatprep.subr.mxu0 0.0
  %1337 = vmatpush1.msra.mxu0 0.0
  %1338 = vmatprep.mubr.f32.mxu0 0.0
  %1339 = vmatmul.mubr.f32.gmra.mrb[0].mxu0 %v1272
  %v1340 = vpop.f32.mrb[0].mxu0
  %v1341 = vadd.f32 %v388, %v1340
  %v1342 = vpop.f32.mrb[0].mxu0
  %v1343 = vadd.f32 %v392, %v1342
  %1344 = vdwg.mxu0
  %v1345 = vtanh.pop %v1341
  %v1346 = vmul.f32 %v1345, 0.5
  %v1347 = vadd.f32 %v1346, 0.5
  %vm1348 = vcmp.gt.f32.partialorder %v1343, 0.0
  %v1349 = vsel %vm1348, 1, 0
  %v1350 = vcvt.s32.f32 %v1349
  %1352 = vrot.lane.b32.xlu0 %v1345, 64
  %v1353 = vpop.permute.xlu0 %1352
  %v1355 = vmul.f32 %v1347, %v1353
  %1357 = vset.pattern.permute.xlu0 0
  %1358 = vperm.xlu0 %1357, %v1048
  %v1359 = vpop.permute.xlu0 %1358
  %v1361 = vmul.f32 %v1359, %v1355
  %v1362 = vsub.f32 1.0, %v1048
  %v1363 = vsub.f32 1.0, %v1215
  %v1365 = vrot.slane %v1363, 6
  %v1367 = vmul.f32 %v1362, %v1365
  %1369 = vset.pattern.permute.xlu0 0
  %1370 = vperm.xlu0 %1369, %v1367
  %v1371 = vpop.permute.xlu0 %1370
  %v1373 = vmul.f32 %v1371, %v1096
  %v1374 = vadd.f32 %v1361, %v1373
  %v1375 = vrot.slane %v1215, 6
  %v1377 = vmul.f32 %v1362, %v1375
  %1379 = vrot.lane.b32.xlu0 %v1096, 96
  %v1380 = vpop.permute.xlu0 %1379
  %v1382 = vmul.f32 %v1347, %v1380
  %1384 = vrot.lane.b32.xlu0 %v1355, 96
  %v1385 = vpop.permute.xlu0 %1384
  %v1387 = vadd.f32 %v1382, %v1385
  %1389 = vset.pattern.permute.xlu0 0
  %1390 = vperm.xlu0 %1389, %v1377
  %v1391 = vpop.permute.xlu0 %1390
  %v1393 = vmul.f32 %v1391, %v1387
  %1395 = vrot.lane.b32.xlu0 %v1393, 32
  %v1396 = vpop.permute.xlu0 %1395
  %v1398 = vadd.f32 %v1374, %v1396
  %v1399 = vtanh.pop %v1398
  %1401 = vrot.lane.b32.xlu0 %v1399, 32
  %v1402 = vpop.permute.xlu0 %1401
  %v1404 = vmul.f32 %v1347, %v1402
  %v1405 = vmul.f32 %v1359, %v1404
  %v1406 = vmul.f32 %v1371, %v1107
  %v1407 = vadd.f32 %v1405, %v1406
  %v1408 = vmul.f32 %v1391, %v1404
  %v1409 = vadd.f32 %v1407, %v1408
  %v1411 = vrot.slane %v1409, 2
  %1412 = vrot.lane.b32.xlu0 %v1411, 96
  %v1413 = vpop.permute.xlu0 %1412
  %v1415 = vsel %vm382, %v1263, %v1413
  %vm1416 = vcmask 523270
  %1417 = vst.msk [vmem:[#allocation3] sm:$0xc0] %vm1416, %v1415
  %1418 = vrot.lane.b32.xlu0 %v1411, 64
  %v1419 = vpop.permute.xlu0 %1418
  %v1421 = vmul.f32 %v1254, %v1419
  %1423 = vrot.lane.b32.xlu0 %v1421, 32
  %v1424 = vpop.permute.xlu0 %1423
  %v1426 = vsel %vm382, %v1263, %v1424
  %v1427 = vld [vmem:[#allocation2 + $0x10] sm:$0x3]
  %v1428 = vld [vmem:[#allocation2 + $0x18] sm:$0x3]
  %v1430 = vrot.slane %v1426, 6
  %v1431 = vsel %vm266, %v1430, 0
  %1433 = vmatprep.subr.mxu0 %v231
  %1434 = vmatpush1.msra.mxu0 %v230
  %1435 = vmatprep.subr.mxu0 %v233
  %1436 = vmatpush1.msra.mxu0 %v232
  %1437 = vmatprep.subr.mxu0 %v235
  %1438 = vmatpush1.msra.mxu0 %v234
  %1439 = vmatprep.subr.mxu0 %v237
  %1440 = vmatpush1.msra.mxu0 %v236
  %1441 = vmatprep.subr.mxu0 %v239
  %1442 = vmatpush1.msra.mxu0 %v238
  %1443 = vmatprep.subr.mxu0 %v241
  %1444 = vmatpush1.msra.mxu0 %v240
  %1445 = vmatprep.subr.mxu0 %v243
  %1446 = vmatpush1.msra.mxu0 %v242
  %1447 = vmatprep.subr.mxu0 %v245
  %1448 = vmatpush1.msra.mxu0 %v244
  %1449 = vmatprep.subr.mxu0 0.0
  %1450 = vmatpush1.msra.mxu0 0.0
  %1451 = vmatprep.subr.mxu0 0.0
  %1452 = vmatpush1.msra.mxu0 0.0
  %1453 = vmatprep.subr.mxu0 0.0
  %1454 = vmatpush1.msra.mxu0 0.0
  %1455 = vmatprep.subr.mxu0 0.0
  %1456 = vmatpush1.msra.mxu0 0.0
  %1457 = vmatprep.subr.mxu0 0.0
  %1458 = vmatpush1.msra.mxu0 0.0
  %1459 = vmatprep.subr.mxu0 0.0
  %1460 = vmatpush1.msra.mxu0 0.0
  %1461 = vmatprep.subr.mxu0 0.0
  %1462 = vmatpush1.msra.mxu0 0.0
  %1463 = vmatprep.subr.mxu0 0.0
  %1464 = vmatpush1.msra.mxu0 0.0
  %1465 = vmatprep.subr.mxu0 0.0
  %1466 = vmatpush1.msra.mxu0 0.0
  %1467 = vmatprep.subr.mxu0 0.0
  %1468 = vmatpush1.msra.mxu0 0.0
  %1469 = vmatprep.subr.mxu0 0.0
  %1470 = vmatpush1.msra.mxu0 0.0
  %1471 = vmatprep.subr.mxu0 0.0
  %1472 = vmatpush1.msra.mxu0 0.0
  %1473 = vmatprep.subr.mxu0 0.0
  %1474 = vmatpush1.msra.mxu0 0.0
  %1475 = vmatprep.subr.mxu0 0.0
  %1476 = vmatpush1.msra.mxu0 0.0
  %1477 = vmatprep.subr.mxu0 0.0
  %1478 = vmatpush1.msra.mxu0 0.0
  %1479 = vmatprep.subr.mxu0 0.0
  %1480 = vmatpush1.msra.mxu0 0.0
  %1481 = vmatprep.subr.mxu0 0.0
  %1482 = vmatpush1.msra.mxu0 0.0
  %1483 = vmatprep.subr.mxu0 0.0
  %1484 = vmatpush1.msra.mxu0 0.0
  %1485 = vmatprep.subr.mxu0 0.0
  %1486 = vmatpush1.msra.mxu0 0.0
  %1487 = vmatprep.subr.mxu0 0.0
  %1488 = vmatpush1.msra.mxu0 0.0
  %1489 = vmatprep.subr.mxu0 0.0
  %1490 = vmatpush1.msra.mxu0 0.0
  %1491 = vmatprep.subr.mxu0 0.0
  %1492 = vmatpush1.msra.mxu0 0.0
  %1493 = vmatprep.subr.mxu0 0.0
  %1494 = vmatpush1.msra.mxu0 0.0
  %1495 = vmatprep.subr.mxu0 0.0
  %1496 = vmatpush1.msra.mxu0 0.0
  %1497 = vmatprep.mubr.f32.mxu0 0.0
  %1498 = vmatmul.mubr.f32.gmra.mrb[0].mxu0 %v1431
  %v1499 = vpop.f32.mrb[0].mxu0
  %v1500 = vadd.f32 0.0, %v1499
  %v1501 = vpop.f32.mrb[0].mxu0
  %v1502 = vadd.f32 0.0, %v1501
  %1503 = vdwg.mxu0
  %v1504 = vadd.f32 %v1427, %v1500
  %v1505 = vadd.f32 %v1428, %v1502
  %v1506 = vtanh.pop %v1504
  %v1507 = vmul.f32 %v1506, 0.5
  %v1508 = vadd.f32 %v1507, 0.5
  %vm1509 = vcmp.gt.f32.partialorder %v1505, 0.0
  %v1510 = vsel %vm1509, 1, 0
  %v1511 = vcvt.s32.f32 %v1510
  %1513 = vrot.lane.b32.xlu0 %v1506, 64
  %v1514 = vpop.permute.xlu0 %1513
  %v1516 = vmul.f32 %v1508, %v1514
  %v1518 = vrot.slane %v1516, 2
  %1519 = vrot.lane.b32.xlu0 %v1518, 96
  %v1520 = vpop.permute.xlu0 %1519
  %v1522 = vmul.f32 %v1254, %v1520
  %v1524 = vrot.slane %v1243, 4
  %v1526 = vmul.f32 %v1508, %v1524
  %1527 = vrot.lane.b32.xlu0 %v1516, 96
  %v1528 = vpop.permute.xlu0 %1527
  %v1530 = vadd.f32 %v1526, %v1528
  %1531 = vset.pattern.permute.xlu0 0
  %1532 = vperm.xlu0 %1531, %v1363
  %v1533 = vpop.permute.xlu0 %1532
  %v1536 = vrot.slane %v1530, 2
  %v1538 = vmul.f32 %v1533, %v1536
  %v1539 = vadd.f32 %v1522, %v1538
  %v1540 = vtanh.pop %v1539
  %v1542 = vrot.slane %v1540, 6
  %1543 = vrot.lane.b32.xlu0 %v1542, 64
  %v1544 = vpop.permute.xlu0 %1543
  %v1546 = vmul.f32 %v1508, %v1544
  %1548 = vset.pattern.permute.xlu0 0
  %1549 = vperm.xlu0 %1548, %v1511
  %v1550 = vpop.permute.xlu0 %1549
  %v1552 = vmul.f32 %v1550, %v1409
  %1554 = vrot.lane.b32.xlu0 %v1546, 64
  %v1555 = vpop.permute.xlu0 %1554
  %1558 = vrot.lane.b32.xlu0 %v1552, 96
  %v1559 = vpop.permute.xlu0 %1558
  %v1561 = vsel %vm382, %v1555, %v1559
  %v1563 = vsel %vm266, %v1561, 0
  %1565 = vmatprep.subr.mxu0 %v247
  %1566 = vmatpush1.msra.mxu0 %v246
  %1567 = vmatprep.subr.mxu0 %v249
  %1568 = vmatpush1.msra.mxu0 %v248
  %1569 = vmatprep.subr.mxu0 %v251
  %1570 = vmatpush1.msra.mxu0 %v250
  %1571 = vmatprep.subr.mxu0 %v253
  %1572 = vmatpush1.msra.mxu0 %v252
  %1573 = vmatprep.subr.mxu0 %v255
  %1574 = vmatpush1.msra.mxu0 %v254
  %1575 = vmatprep.subr.mxu0 %v257
  %1576 = vmatpush1.msra.mxu0 %v256
  %1577 = vmatprep.subr.mxu0 %v259
  %1578 = vmatpush1.msra.mxu0 %v258
  %1579 = vmatprep.subr.mxu0 %v261
  %1580 = vmatpush1.msra.mxu0 %v260
  %1581 = vmatprep.subr.mxu0 0.0
  %1582 = vmatpush1.msra.mxu0 0.0
  %1583 = vmatprep.subr.mxu0 0.0
  %1584 = vmatpush1.msra.mxu0 0.0
  %1585 = vmatprep.subr.mxu0 0.0
  %1586 = vmatpush1.msra.mxu0 0.0
  %1587 = vmatprep.subr.mxu0 0.0
  %1588 = vmatpush1.msra.mxu0 0.0
  %1589 = vmatprep.subr.mxu0 0.0
  %1590 = vmatpush1.msra.mxu0 0.0
  %1591 = vmatprep.subr.mxu0 0.0
  %1592 = vmatpush1.msra.mxu0 0.0
  %1593 = vmatprep.subr.mxu0 0.0
  %1594 = vmatpush1.msra.mxu0 0.0
  %1595 = vmatprep.subr.mxu0 0.0
  %1596 = vmatpush1.msra.mxu0 0.0
  %1597 = vmatprep.subr.mxu0 0.0
  %1598 = vmatpush1.msra.mxu0 0.0
  %1599 = vmatprep.subr.mxu0 0.0
  %1600 = vmatpush1.msra.mxu0 0.0
  %1601 = vmatprep.subr.mxu0 0.0
  %1602 = vmatpush1.msra.mxu0 0.0
  %1603 = vmatprep.subr.mxu0 0.0
  %1604 = vmatpush1.msra.mxu0 0.0
  %1605 = vmatprep.subr.mxu0 0.0
  %1606 = vmatpush1.msra.mxu0 0.0
  %1607 = vmatprep.subr.mxu0 0.0
  %1608 = vmatpush1.msra.mxu0 0.0
  %1609 = vmatprep.subr.mxu0 0.0
  %1610 = vmatpush1.msra.mxu0 0.0
  %1611 = vmatprep.subr.mxu0 0.0
  %1612 = vmatpush1.msra.mxu0 0.0
  %1613 = vmatprep.subr.mxu0 0.0
  %1614 = vmatpush1.msra.mxu0 0.0
  %1615 = vmatprep.subr.mxu0 0.0
  %1616 = vmatpush1.msra.mxu0 0.0
  %1617 = vmatprep.subr.mxu0 0.0
  %1618 = vmatpush1.msra.mxu0 0.0
  %1619 = vmatprep.subr.mxu0 0.0
  %1620 = vmatpush1.msra.mxu0 0.0
  %1621 = vmatprep.subr.mxu0 0.0
  %1622 = vmatpush1.msra.mxu0 0.0
  %1623 = vmatprep.subr.mxu0 0.0
  %1624 = vmatpush1.msra.mxu0 0.0
  %1625 = vmatprep.subr.mxu0 0.0
  %1626 = vmatpush1.msra.mxu0 0.0
  %1627 = vmatprep.subr.mxu0 0.0
  %1628 = vmatpush1.msra.mxu0 0.0
  %1629 = vmatprep.mubr.f32.mxu0 0.0
  %1630 = vmatmul.mubr.f32.gmra.mrb[0].mxu0 %v1563
  %v1631 = vpop.f32.mrb[0].mxu0
  %v1632 = vadd.f32 %v388, %v1631
  %v1633 = vpop.f32.mrb[0].mxu0
  %v1634 = vadd.f32 %v392, %v1633
  %1635 = vdwg.mxu0
  %v1636 = vtanh.pop %v1632
  %v1637 = vmul.f32 %v1636, 0.5
  %v1638 = vadd.f32 %v1637, 0.5
  %vm1639 = vcmp.gt.f32.partialorder %v1634, 0.0
  %v1640 = vsel %vm1639, 1, 0
  %v1641 = vcvt.s32.f32 %v1640
  %1643 = vrot.lane.b32.xlu0 %v1636, 64
  %v1644 = vpop.permute.xlu0 %1643
  %v1646 = vmul.f32 %v1638, %v1644
  %1648 = vset.pattern.permute.xlu0 0
  %1649 = vperm.xlu0 %1648, %v1350
  %v1650 = vpop.permute.xlu0 %1649
  %v1652 = vmul.f32 %v1650, %v1646
  %v1653 = vsub.f32 1.0, %v1350
  %v1654 = vsub.f32 1.0, %v1511
  %v1655 = vmul.f32 %v1653, %v1654
  %1657 = vset.pattern.permute.xlu0 0
  %1658 = vperm.xlu0 %1657, %v1655
  %v1659 = vpop.permute.xlu0 %1658
  %v1661 = vmul.f32 %v1659, %v1398
  %v1662 = vadd.f32 %v1652, %v1661
  %v1663 = vmul.f32 %v1653, %v1511
  %1665 = vrot.lane.b32.xlu0 %v1398, 96
  %v1666 = vpop.permute.xlu0 %1665
  %v1668 = vmul.f32 %v1638, %v1666
  %1670 = vrot.lane.b32.xlu0 %v1646, 96
  %v1671 = vpop.permute.xlu0 %1670
  %v1673 = vadd.f32 %v1668, %v1671
  %1675 = vset.pattern.permute.xlu0 0
  %1676 = vperm.xlu0 %1675, %v1663
  %v1677 = vpop.permute.xlu0 %1676
  %v1679 = vmul.f32 %v1677, %v1673
  %1681 = vrot.lane.b32.xlu0 %v1679, 32
  %v1682 = vpop.permute.xlu0 %1681
  %v1684 = vadd.f32 %v1662, %v1682
  %v1685 = vtanh.pop %v1684
  %1687 = vrot.lane.b32.xlu0 %v1685, 32
  %v1688 = vpop.permute.xlu0 %1687
  %v1690 = vmul.f32 %v1638, %v1688
  %v1691 = vmul.f32 %v1650, %v1690
  %v1692 = vmul.f32 %v1659, %v1409
  %v1693 = vadd.f32 %v1691, %v1692
  %v1694 = vmul.f32 %v1677, %v1690
  %v1695 = vadd.f32 %v1693, %v1694
  %1697 = vrot.lane.b32.xlu0 %v1695, 96
  %v1698 = vpop.permute.xlu0 %1697
  %v1700 = vsel %vm382, %v1555, %v1698
  %1701 = vst.msk [vmem:[#allocation3 + $0x8] sm:$0x3] %vm516, %v1700
  %v1702 = vmul.f32 %v1550, %v1695
  %1704 = vrot.lane.b32.xlu0 %v1702, 96
  %v1705 = vpop.permute.xlu0 %1704
  %v1707 = vsel %vm382, %v1555, %v1705
  %v1708 = vld [vmem:[#allocation2 + $0x10] sm:$0xc]
  %v1709 = vld [vmem:[#allocation2 + $0x18] sm:$0xc]
  %v1711 = vsel %vm266, %v1707, 0
  %1713 = vmatprep.subr.mxu0 %v231
  %1714 = vmatpush1.msra.mxu0 %v230
  %1715 = vmatprep.subr.mxu0 %v233
  %1716 = vmatpush1.msra.mxu0 %v232
  %1717 = vmatprep.subr.mxu0 %v235
  %1718 = vmatpush1.msra.mxu0 %v234
  %1719 = vmatprep.subr.mxu0 %v237
  %1720 = vmatpush1.msra.mxu0 %v236
  %1721 = vmatprep.subr.mxu0 %v239
  %1722 = vmatpush1.msra.mxu0 %v238
  %1723 = vmatprep.subr.mxu0 %v241
  %1724 = vmatpush1.msra.mxu0 %v240
  %1725 = vmatprep.subr.mxu0 %v243
  %1726 = vmatpush1.msra.mxu0 %v242
  %1727 = vmatprep.subr.mxu0 %v245
  %1728 = vmatpush1.msra.mxu0 %v244
  %1729 = vmatprep.subr.mxu0 0.0
  %1730 = vmatpush1.msra.mxu0 0.0
  %1731 = vmatprep.subr.mxu0 0.0
  %1732 = vmatpush1.msra.mxu0 0.0
  %1733 = vmatprep.subr.mxu0 0.0
  %1734 = vmatpush1.msra.mxu0 0.0
  %1735 = vmatprep.subr.mxu0 0.0
  %1736 = vmatpush1.msra.mxu0 0.0
  %1737 = vmatprep.subr.mxu0 0.0
  %1738 = vmatpush1.msra.mxu0 0.0
  %1739 = vmatprep.subr.mxu0 0.0
  %1740 = vmatpush1.msra.mxu0 0.0
  %1741 = vmatprep.subr.mxu0 0.0
  %1742 = vmatpush1.msra.mxu0 0.0
  %1743 = vmatprep.subr.mxu0 0.0
  %1744 = vmatpush1.msra.mxu0 0.0
  %1745 = vmatprep.subr.mxu0 0.0
  %1746 = vmatpush1.msra.mxu0 0.0
  %1747 = vmatprep.subr.mxu0 0.0
  %1748 = vmatpush1.msra.mxu0 0.0
  %1749 = vmatprep.subr.mxu0 0.0
  %1750 = vmatpush1.msra.mxu0 0.0
  %1751 = vmatprep.subr.mxu0 0.0
  %1752 = vmatpush1.msra.mxu0 0.0
  %1753 = vmatprep.subr.mxu0 0.0
  %1754 = vmatpush1.msra.mxu0 0.0
  %1755 = vmatprep.subr.mxu0 0.0
  %1756 = vmatpush1.msra.mxu0 0.0
  %1757 = vmatprep.subr.mxu0 0.0
  %1758 = vmatpush1.msra.mxu0 0.0
  %1759 = vmatprep.subr.mxu0 0.0
  %1760 = vmatpush1.msra.mxu0 0.0
  %1761 = vmatprep.subr.mxu0 0.0
  %1762 = vmatpush1.msra.mxu0 0.0
  %1763 = vmatprep.subr.mxu0 0.0
  %1764 = vmatpush1.msra.mxu0 0.0
  %1765 = vmatprep.subr.mxu0 0.0
  %1766 = vmatpush1.msra.mxu0 0.0
  %1767 = vmatprep.subr.mxu0 0.0
  %1768 = vmatpush1.msra.mxu0 0.0
  %1769 = vmatprep.subr.mxu0 0.0
  %1770 = vmatpush1.msra.mxu0 0.0
  %1771 = vmatprep.subr.mxu0 0.0
  %1772 = vmatpush1.msra.mxu0 0.0
  %1773 = vmatprep.subr.mxu0 0.0
  %1774 = vmatpush1.msra.mxu0 0.0
  %1775 = vmatprep.subr.mxu0 0.0
  %1776 = vmatpush1.msra.mxu0 0.0
  %1777 = vmatprep.mubr.f32.mxu0 0.0
  %1778 = vmatmul.mubr.f32.gmra.mrb[0].mxu0 %v1711
  %v1779 = vpop.f32.mrb[0].mxu0
  %v1780 = vadd.f32 0.0, %v1779
  %v1781 = vpop.f32.mrb[0].mxu0
  %v1782 = vadd.f32 0.0, %v1781
  %1783 = vdwg.mxu0
  %v1786 = vrot.slane %v1780, 6
  %v1787 = vrot.slane %v1782, 6
  %v1790 = vadd.f32 %v1708, %v1786
  %v1791 = vadd.f32 %v1709, %v1787
  %v1792 = vtanh.pop %v1790
  %v1793 = vmul.f32 %v1792, 0.5
  %v1794 = vadd.f32 %v1793, 0.5
  %vm1795 = vcmp.gt.f32.partialorder %v1791, 0.0
  %v1796 = vsel %vm1795, 1, 0
  %v1797 = vcvt.s32.f32 %v1796
  %1799 = vrot.lane.b32.xlu0 %v1792, 64
  %v1800 = vpop.permute.xlu0 %1799
  %v1802 = vmul.f32 %v1794, %v1800
  %v1804 = vrot.slane %v1802, 2
  %1805 = vrot.lane.b32.xlu0 %v1804, 96
  %v1806 = vpop.permute.xlu0 %1805
  %v1808 = vmul.f32 %v1550, %v1806
  %v1810 = vrot.slane %v1539, 4
  %v1812 = vmul.f32 %v1794, %v1810
  %1813 = vrot.lane.b32.xlu0 %v1802, 96
  %v1814 = vpop.permute.xlu0 %1813
  %v1816 = vadd.f32 %v1812, %v1814
  %1818 = vset.pattern.permute.xlu0 0
  %1819 = vperm.xlu0 %1818, %v1654
  %v1820 = vpop.permute.xlu0 %1819
  %v1823 = vrot.slane %v1816, 2
  %v1825 = vmul.f32 %v1820, %v1823
  %v1826 = vadd.f32 %v1808, %v1825
  %v1827 = vtanh.pop %v1826
  %v1829 = vrot.slane %v1827, 6
  %1830 = vrot.lane.b32.xlu0 %v1829, 64
  %v1831 = vpop.permute.xlu0 %1830
  %v1833 = vmul.f32 %v1794, %v1831
  %1835 = vset.pattern.permute.xlu0 0
  %1836 = vperm.xlu0 %1835, %v1797
  %v1837 = vpop.permute.xlu0 %1836
  %v1839 = vrot.slane %v1695, 6
  %1840 = vrot.lane.b32.xlu0 %v1839, 64
  %v1841 = vpop.permute.xlu0 %1840
  %v1843 = vmul.f32 %v1837, %v1841
  %1845 = vrot.lane.b32.xlu0 %v1833, 64
  %v1846 = vpop.permute.xlu0 %1845
  %1849 = vrot.lane.b32.xlu0 %v1843, 32
  %v1850 = vpop.permute.xlu0 %1849
  %v1852 = vsel %vm382, %v1846, %v1850
  %v1854 = vrot.slane %v1852, 2
  %v1855 = vsel %vm266, %v1854, 0
  %1857 = vmatprep.subr.mxu0 %v247
  %1858 = vmatpush1.msra.mxu0 %v246
  %1859 = vmatprep.subr.mxu0 %v249
  %1860 = vmatpush1.msra.mxu0 %v248
  %1861 = vmatprep.subr.mxu0 %v251
  %1862 = vmatpush1.msra.mxu0 %v250
  %1863 = vmatprep.subr.mxu0 %v253
  %1864 = vmatpush1.msra.mxu0 %v252
  %1865 = vmatprep.subr.mxu0 %v255
  %1866 = vmatpush1.msra.mxu0 %v254
  %1867 = vmatprep.subr.mxu0 %v257
  %1868 = vmatpush1.msra.mxu0 %v256
  %1869 = vmatprep.subr.mxu0 %v259
  %1870 = vmatpush1.msra.mxu0 %v258
  %1871 = vmatprep.subr.mxu0 %v261
  %1872 = vmatpush1.msra.mxu0 %v260
  %1873 = vmatprep.subr.mxu0 0.0
  %1874 = vmatpush1.msra.mxu0 0.0
  %1875 = vmatprep.subr.mxu0 0.0
  %1876 = vmatpush1.msra.mxu0 0.0
  %1877 = vmatprep.subr.mxu0 0.0
  %1878 = vmatpush1.msra.mxu0 0.0
  %1879 = vmatprep.subr.mxu0 0.0
  %1880 = vmatpush1.msra.mxu0 0.0
  %1881 = vmatprep.subr.mxu0 0.0
  %1882 = vmatpush1.msra.mxu0 0.0
  %1883 = vmatprep.subr.mxu0 0.0
  %1884 = vmatpush1.msra.mxu0 0.0
  %1885 = vmatprep.subr.mxu0 0.0
  %1886 = vmatpush1.msra.mxu0 0.0
  %1887 = vmatprep.subr.mxu0 0.0
  %1888 = vmatpush1.msra.mxu0 0.0
  %1889 = vmatprep.subr.mxu0 0.0
  %1890 = vmatpush1.msra.mxu0 0.0
  %1891 = vmatprep.subr.mxu0 0.0
  %1892 = vmatpush1.msra.mxu0 0.0
  %1893 = vmatprep.subr.mxu0 0.0
  %1894 = vmatpush1.msra.mxu0 0.0
  %1895 = vmatprep.subr.mxu0 0.0
  %1896 = vmatpush1.msra.mxu0 0.0
  %1897 = vmatprep.subr.mxu0 0.0
  %1898 = vmatpush1.msra.mxu0 0.0
  %1899 = vmatprep.subr.mxu0 0.0
  %1900 = vmatpush1.msra.mxu0 0.0
  %1901 = vmatprep.subr.mxu0 0.0
  %1902 = vmatpush1.msra.mxu0 0.0
  %1903 = vmatprep.subr.mxu0 0.0
  %1904 = vmatpush1.msra.mxu0 0.0
  %1905 = vmatprep.subr.mxu0 0.0
  %1906 = vmatpush1.msra.mxu0 0.0
  %1907 = vmatprep.subr.mxu0 0.0
  %1908 = vmatpush1.msra.mxu0 0.0
  %1909 = vmatprep.subr.mxu0 0.0
  %1910 = vmatpush1.msra.mxu0 0.0
  %1911 = vmatprep.subr.mxu0 0.0
  %1912 = vmatpush1.msra.mxu0 0.0
  %1913 = vmatprep.subr.mxu0 0.0
  %1914 = vmatpush1.msra.mxu0 0.0
  %1915 = vmatprep.subr.mxu0 0.0
  %1916 = vmatpush1.msra.mxu0 0.0
  %1917 = vmatprep.subr.mxu0 0.0
  %1918 = vmatpush1.msra.mxu0 0.0
  %1919 = vmatprep.subr.mxu0 0.0
  %1920 = vmatpush1.msra.mxu0 0.0
  %1921 = vmatprep.mubr.f32.mxu0 0.0
  %1922 = vmatmul.mubr.f32.gmra.mrb[0].mxu0 %v1855
  %v1923 = vpop.f32.mrb[0].mxu0
  %v1924 = vadd.f32 %v388, %v1923
  %v1925 = vpop.f32.mrb[0].mxu0
  %v1926 = vadd.f32 %v392, %v1925
  %1927 = vdwg.mxu0
  %v1928 = vtanh.pop %v1924
  %v1929 = vmul.f32 %v1928, 0.5
  %v1930 = vadd.f32 %v1929, 0.5
  %vm1931 = vcmp.gt.f32.partialorder %v1926, 0.0
  %v1932 = vsel %vm1931, 1, 0
  %v1933 = vcvt.s32.f32 %v1932
  %1935 = vrot.lane.b32.xlu0 %v1928, 64
  %v1936 = vpop.permute.xlu0 %1935
  %v1938 = vmul.f32 %v1930, %v1936
  %1940 = vset.pattern.permute.xlu0 0
  %1941 = vperm.xlu0 %1940, %v1641
  %v1942 = vpop.permute.xlu0 %1941
  %v1944 = vmul.f32 %v1942, %v1938
  %v1945 = vsub.f32 1.0, %v1641
  %v1946 = vsub.f32 1.0, %v1797
  %v1948 = vrot.slane %v1946, 2
  %v1950 = vmul.f32 %v1945, %v1948
  %1952 = vset.pattern.permute.xlu0 0
  %1953 = vperm.xlu0 %1952, %v1950
  %v1954 = vpop.permute.xlu0 %1953
  %v1956 = vmul.f32 %v1954, %v1684
  %v1957 = vadd.f32 %v1944, %v1956
  %v1958 = vrot.slane %v1797, 2
  %v1960 = vmul.f32 %v1945, %v1958
  %1962 = vrot.lane.b32.xlu0 %v1684, 96
  %v1963 = vpop.permute.xlu0 %1962
  %v1965 = vmul.f32 %v1930, %v1963
  %1967 = vrot.lane.b32.xlu0 %v1938, 96
  %v1968 = vpop.permute.xlu0 %1967
  %v1970 = vadd.f32 %v1965, %v1968
  %1972 = vset.pattern.permute.xlu0 0
  %1973 = vperm.xlu0 %1972, %v1960
  %v1974 = vpop.permute.xlu0 %1973
  %v1976 = vmul.f32 %v1974, %v1970
  %1978 = vrot.lane.b32.xlu0 %v1976, 32
  %v1979 = vpop.permute.xlu0 %1978
  %v1981 = vadd.f32 %v1957, %v1979
  %v1982 = vtanh.pop %v1981
  %1984 = vrot.lane.b32.xlu0 %v1982, 32
  %v1985 = vpop.permute.xlu0 %1984
  %v1987 = vmul.f32 %v1930, %v1985
  %v1988 = vmul.f32 %v1942, %v1987
  %v1989 = vmul.f32 %v1954, %v1695
  %v1990 = vadd.f32 %v1988, %v1989
  %v1991 = vmul.f32 %v1974, %v1987
  %v1992 = vadd.f32 %v1990, %v1991
  %v1994 = vrot.slane %v1992, 6
  %1995 = vrot.lane.b32.xlu0 %v1994, 96
  %v1996 = vpop.permute.xlu0 %1995
  %v1998 = vsel %vm382, %v1846, %v1996
  %1999 = vst.msk [vmem:[#allocation3 + $0x8] sm:$0xc] %vm812, %v1998
  %2000 = vrot.lane.b32.xlu0 %v1994, 64
  %v2001 = vpop.permute.xlu0 %2000
  %v2003 = vmul.f32 %v1837, %v2001
  %2005 = vrot.lane.b32.xlu0 %v2003, 32
  %v2006 = vpop.permute.xlu0 %2005
  %v2008 = vsel %vm382, %v1846, %v2006
  %v2009 = vld [vmem:[#allocation2 + $0x10] sm:$0x30]
  %v2010 = vld [vmem:[#allocation2 + $0x18] sm:$0x30]
  %v2012 = vrot.slane %v2008, 2
  %v2013 = vsel %vm266, %v2012, 0
  %2015 = vmatprep.subr.mxu0 %v231
  %2016 = vmatpush1.msra.mxu0 %v230
  %2017 = vmatprep.subr.mxu0 %v233
  %2018 = vmatpush1.msra.mxu0 %v232
  %2019 = vmatprep.subr.mxu0 %v235
  %2020 = vmatpush1.msra.mxu0 %v234
  %2021 = vmatprep.subr.mxu0 %v237
  %2022 = vmatpush1.msra.mxu0 %v236
  %2023 = vmatprep.subr.mxu0 %v239
  %2024 = vmatpush1.msra.mxu0 %v238
  %2025 = vmatprep.subr.mxu0 %v241
  %2026 = vmatpush1.msra.mxu0 %v240
  %2027 = vmatprep.subr.mxu0 %v243
  %2028 = vmatpush1.msra.mxu0 %v242
  %2029 = vmatprep.subr.mxu0 %v245
  %2030 = vmatpush1.msra.mxu0 %v244
  %2031 = vmatprep.subr.mxu0 0.0
  %2032 = vmatpush1.msra.mxu0 0.0
  %2033 = vmatprep.subr.mxu0 0.0
  %2034 = vmatpush1.msra.mxu0 0.0
  %2035 = vmatprep.subr.mxu0 0.0
  %2036 = vmatpush1.msra.mxu0 0.0
  %2037 = vmatprep.subr.mxu0 0.0
  %2038 = vmatpush1.msra.mxu0 0.0
  %2039 = vmatprep.subr.mxu0 0.0
  %2040 = vmatpush1.msra.mxu0 0.0
  %2041 = vmatprep.subr.mxu0 0.0
  %2042 = vmatpush1.msra.mxu0 0.0
  %2043 = vmatprep.subr.mxu0 0.0
  %2044 = vmatpush1.msra.mxu0 0.0
  %2045 = vmatprep.subr.mxu0 0.0
  %2046 = vmatpush1.msra.mxu0 0.0
  %2047 = vmatprep.subr.mxu0 0.0
  %2048 = vmatpush1.msra.mxu0 0.0
  %2049 = vmatprep.subr.mxu0 0.0
  %2050 = vmatpush1.msra.mxu0 0.0
  %2051 = vmatprep.subr.mxu0 0.0
  %2052 = vmatpush1.msra.mxu0 0.0
  %2053 = vmatprep.subr.mxu0 0.0
  %2054 = vmatpush1.msra.mxu0 0.0
  %2055 = vmatprep.subr.mxu0 0.0
  %2056 = vmatpush1.msra.mxu0 0.0
  %2057 = vmatprep.subr.mxu0 0.0
  %2058 = vmatpush1.msra.mxu0 0.0
  %2059 = vmatprep.subr.mxu0 0.0
  %2060 = vmatpush1.msra.mxu0 0.0
  %2061 = vmatprep.subr.mxu0 0.0
  %2062 = vmatpush1.msra.mxu0 0.0
  %2063 = vmatprep.subr.mxu0 0.0
  %2064 = vmatpush1.msra.mxu0 0.0
  %2065 = vmatprep.subr.mxu0 0.0
  %2066 = vmatpush1.msra.mxu0 0.0
  %2067 = vmatprep.subr.mxu0 0.0
  %2068 = vmatpush1.msra.mxu0 0.0
  %2069 = vmatprep.subr.mxu0 0.0
  %2070 = vmatpush1.msra.mxu0 0.0
  %2071 = vmatprep.subr.mxu0 0.0
  %2072 = vmatpush1.msra.mxu0 0.0
  %2073 = vmatprep.subr.mxu0 0.0
  %2074 = vmatpush1.msra.mxu0 0.0
  %2075 = vmatprep.subr.mxu0 0.0
  %2076 = vmatpush1.msra.mxu0 0.0
  %2077 = vmatprep.subr.mxu0 0.0
  %2078 = vmatpush1.msra.mxu0 0.0
  %2079 = vmatprep.mubr.f32.mxu0 0.0
  %2080 = vmatmul.mubr.f32.gmra.mrb[0].mxu0 %v2013
  %v2081 = vpop.f32.mrb[0].mxu0
  %v2082 = vadd.f32 0.0, %v2081
  %v2083 = vpop.f32.mrb[0].mxu0
  %v2084 = vadd.f32 0.0, %v2083
  %2085 = vdwg.mxu0
  %v2088 = vrot.slane %v2082, 4
  %v2089 = vrot.slane %v2084, 4
  %v2092 = vadd.f32 %v2009, %v2088
  %v2093 = vadd.f32 %v2010, %v2089
  %v2094 = vtanh.pop %v2092
  %v2095 = vmul.f32 %v2094, 0.5
  %v2096 = vadd.f32 %v2095, 0.5
  %vm2097 = vcmp.gt.f32.partialorder %v2093, 0.0
  %v2098 = vsel %vm2097, 1, 0
  %v2099 = vcvt.s32.f32 %v2098
  %2101 = vrot.lane.b32.xlu0 %v2094, 64
  %v2102 = vpop.permute.xlu0 %2101
  %v2104 = vmul.f32 %v2096, %v2102
  %v2106 = vrot.slane %v2104, 2
  %2107 = vrot.lane.b32.xlu0 %v2106, 96
  %v2108 = vpop.permute.xlu0 %2107
  %v2110 = vmul.f32 %v1837, %v2108
  %v2112 = vrot.slane %v1826, 4
  %v2114 = vmul.f32 %v2096, %v2112
  %2115 = vrot.lane.b32.xlu0 %v2104, 96
  %v2116 = vpop.permute.xlu0 %2115
  %v2118 = vadd.f32 %v2114, %v2116
  %2119 = vset.pattern.permute.xlu0 0
  %2120 = vperm.xlu0 %2119, %v1946
  %v2121 = vpop.permute.xlu0 %2120
  %v2124 = vrot.slane %v2118, 2
  %v2126 = vmul.f32 %v2121, %v2124
  %v2127 = vadd.f32 %v2110, %v2126
  %v2128 = vtanh.pop %v2127
  %v2130 = vrot.slane %v2128, 6
  %2131 = vrot.lane.b32.xlu0 %v2130, 64
  %v2132 = vpop.permute.xlu0 %2131
  %v2134 = vmul.f32 %v2096, %v2132
  %2136 = vset.pattern.permute.xlu0 0
  %2137 = vperm.xlu0 %2136, %v2099
  %v2138 = vpop.permute.xlu0 %2137
  %v2140 = vrot.slane %v1992, 4
  %2141 = vrot.lane.b32.xlu0 %v2140, 64
  %v2142 = vpop.permute.xlu0 %2141
  %v2144 = vmul.f32 %v2138, %v2142
  %2146 = vrot.lane.b32.xlu0 %v2134, 64
  %v2147 = vpop.permute.xlu0 %2146
  %2150 = vrot.lane.b32.xlu0 %v2144, 32
  %v2151 = vpop.permute.xlu0 %2150
  %v2153 = vsel %vm382, %v2147, %v2151
  %v2155 = vrot.slane %v2153, 4
  %v2156 = vsel %vm266, %v2155, 0
  %2158 = vmatprep.subr.mxu0 %v247
  %2159 = vmatpush1.msra.mxu0 %v246
  %2160 = vmatprep.subr.mxu0 %v249
  %2161 = vmatpush1.msra.mxu0 %v248
  %2162 = vmatprep.subr.mxu0 %v251
  %2163 = vmatpush1.msra.mxu0 %v250
  %2164 = vmatprep.subr.mxu0 %v253
  %2165 = vmatpush1.msra.mxu0 %v252
  %2166 = vmatprep.subr.mxu0 %v255
  %2167 = vmatpush1.msra.mxu0 %v254
  %2168 = vmatprep.subr.mxu0 %v257
  %2169 = vmatpush1.msra.mxu0 %v256
  %2170 = vmatprep.subr.mxu0 %v259
  %2171 = vmatpush1.msra.mxu0 %v258
  %2172 = vmatprep.subr.mxu0 %v261
  %2173 = vmatpush1.msra.mxu0 %v260
  %2174 = vmatprep.subr.mxu0 0.0
  %2175 = vmatpush1.msra.mxu0 0.0
  %2176 = vmatprep.subr.mxu0 0.0
  %2177 = vmatpush1.msra.mxu0 0.0
  %2178 = vmatprep.subr.mxu0 0.0
  %2179 = vmatpush1.msra.mxu0 0.0
  %2180 = vmatprep.subr.mxu0 0.0
  %2181 = vmatpush1.msra.mxu0 0.0
  %2182 = vmatprep.subr.mxu0 0.0
  %2183 = vmatpush1.msra.mxu0 0.0
  %2184 = vmatprep.subr.mxu0 0.0
  %2185 = vmatpush1.msra.mxu0 0.0
  %2186 = vmatprep.subr.mxu0 0.0
  %2187 = vmatpush1.msra.mxu0 0.0
  %2188 = vmatprep.subr.mxu0 0.0
  %2189 = vmatpush1.msra.mxu0 0.0
  %2190 = vmatprep.subr.mxu0 0.0
  %2191 = vmatpush1.msra.mxu0 0.0
  %2192 = vmatprep.subr.mxu0 0.0
  %2193 = vmatpush1.msra.mxu0 0.0
  %2194 = vmatprep.subr.mxu0 0.0
  %2195 = vmatpush1.msra.mxu0 0.0
  %2196 = vmatprep.subr.mxu0 0.0
  %2197 = vmatpush1.msra.mxu0 0.0
  %2198 = vmatprep.subr.mxu0 0.0
  %2199 = vmatpush1.msra.mxu0 0.0
  %2200 = vmatprep.subr.mxu0 0.0
  %2201 = vmatpush1.msra.mxu0 0.0
  %2202 = vmatprep.subr.mxu0 0.0
  %2203 = vmatpush1.msra.mxu0 0.0
  %2204 = vmatprep.subr.mxu0 0.0
  %2205 = vmatpush1.msra.mxu0 0.0
  %2206 = vmatprep.subr.mxu0 0.0
  %2207 = vmatpush1.msra.mxu0 0.0
  %2208 = vmatprep.subr.mxu0 0.0
  %2209 = vmatpush1.msra.mxu0 0.0
  %2210 = vmatprep.subr.mxu0 0.0
  %2211 = vmatpush1.msra.mxu0 0.0
  %2212 = vmatprep.subr.mxu0 0.0
  %2213 = vmatpush1.msra.mxu0 0.0
  %2214 = vmatprep.subr.mxu0 0.0
  %2215 = vmatpush1.msra.mxu0 0.0
  %2216 = vmatprep.subr.mxu0 0.0
  %2217 = vmatpush1.msra.mxu0 0.0
  %2218 = vmatprep.subr.mxu0 0.0
  %2219 = vmatpush1.msra.mxu0 0.0
  %2220 = vmatprep.subr.mxu0 0.0
  %2221 = vmatpush1.msra.mxu0 0.0
  %2222 = vmatprep.mubr.f32.mxu0 0.0
  %2223 = vmatmul.mubr.f32.gmra.mrb[0].mxu0 %v2156
  %v2224 = vpop.f32.mrb[0].mxu0
  %v2225 = vadd.f32 %v388, %v2224
  %v2226 = vpop.f32.mrb[0].mxu0
  %v2227 = vadd.f32 %v392, %v2226
  %2228 = vdwg.mxu0
  %v2229 = vtanh.pop %v2225
  %v2230 = vmul.f32 %v2229, 0.5
  %v2231 = vadd.f32 %v2230, 0.5
  %vm2232 = vcmp.gt.f32.partialorder %v2227, 0.0
  %v2233 = vsel %vm2232, 1, 0
  %v2234 = vcvt.s32.f32 %v2233
  %2236 = vrot.lane.b32.xlu0 %v2229, 64
  %v2237 = vpop.permute.xlu0 %2236
  %v2239 = vmul.f32 %v2231, %v2237
  %2241 = vset.pattern.permute.xlu0 0
  %2242 = vperm.xlu0 %2241, %v1933
  %v2243 = vpop.permute.xlu0 %2242
  %v2245 = vmul.f32 %v2243, %v2239
  %v2246 = vsub.f32 1.0, %v1933
  %v2247 = vsub.f32 1.0, %v2099
  %v2249 = vrot.slane %v2247, 4
  %v2251 = vmul.f32 %v2246, %v2249
  %2253 = vset.pattern.permute.xlu0 0
  %2254 = vperm.xlu0 %2253, %v2251
  %v2255 = vpop.permute.xlu0 %2254
  %v2257 = vmul.f32 %v2255, %v1981
  %v2258 = vadd.f32 %v2245, %v2257
  %v2259 = vrot.slane %v2099, 4
  %v2261 = vmul.f32 %v2246, %v2259
  %2263 = vrot.lane.b32.xlu0 %v1981, 96
  %v2264 = vpop.permute.xlu0 %2263
  %v2266 = vmul.f32 %v2231, %v2264
  %2268 = vrot.lane.b32.xlu0 %v2239, 96
  %v2269 = vpop.permute.xlu0 %2268
  %v2271 = vadd.f32 %v2266, %v2269
  %2273 = vset.pattern.permute.xlu0 0
  %2274 = vperm.xlu0 %2273, %v2261
  %v2275 = vpop.permute.xlu0 %2274
  %v2277 = vmul.f32 %v2275, %v2271
  %2279 = vrot.lane.b32.xlu0 %v2277, 32
  %v2280 = vpop.permute.xlu0 %2279
  %v2282 = vadd.f32 %v2258, %v2280
  %v2283 = vtanh.pop %v2282
  %2285 = vrot.lane.b32.xlu0 %v2283, 32
  %v2286 = vpop.permute.xlu0 %2285
  %v2288 = vmul.f32 %v2231, %v2286
  %v2289 = vmul.f32 %v2243, %v2288
  %v2290 = vmul.f32 %v2255, %v1992
  %v2291 = vadd.f32 %v2289, %v2290
  %v2292 = vmul.f32 %v2275, %v2288
  %v2293 = vadd.f32 %v2291, %v2292
  %v2295 = vrot.slane %v2293, 4
  %2296 = vrot.lane.b32.xlu0 %v2295, 96
  %v2297 = vpop.permute.xlu0 %2296
  %v2299 = vsel %vm382, %v2147, %v2297
  %2300 = vst.msk [vmem:[#allocation3 + $0x8] sm:$0x30] %vm1114, %v2299
  %2301 = vrot.lane.b32.xlu0 %v2295, 64
  %v2302 = vpop.permute.xlu0 %2301
  %v2304 = vmul.f32 %v2138, %v2302
  %2306 = vrot.lane.b32.xlu0 %v2304, 32
  %v2307 = vpop.permute.xlu0 %2306
  %v2309 = vsel %vm382, %v2147, %v2307
  %v2310 = vld [vmem:[#allocation2 + $0x10] sm:$0xc0]
  %v2311 = vld [vmem:[#allocation2 + $0x18] sm:$0xc0]
  %v2313 = vrot.slane %v2309, 4
  %v2314 = vsel %vm266, %v2313, 0
  %2316 = vmatprep.subr.mxu0 %v231
  %2317 = vmatpush1.msra.mxu0 %v230
  %2318 = vmatprep.subr.mxu0 %v233
  %2319 = vmatpush1.msra.mxu0 %v232
  %2320 = vmatprep.subr.mxu0 %v235
  %2321 = vmatpush1.msra.mxu0 %v234
  %2322 = vmatprep.subr.mxu0 %v237
  %2323 = vmatpush1.msra.mxu0 %v236
  %2324 = vmatprep.subr.mxu0 %v239
  %2325 = vmatpush1.msra.mxu0 %v238
  %2326 = vmatprep.subr.mxu0 %v241
  %2327 = vmatpush1.msra.mxu0 %v240
  %2328 = vmatprep.subr.mxu0 %v243
  %2329 = vmatpush1.msra.mxu0 %v242
  %2330 = vmatprep.subr.mxu0 %v245
  %2331 = vmatpush1.msra.mxu0 %v244
  %2332 = vmatprep.subr.mxu0 0.0
  %2333 = vmatpush1.msra.mxu0 0.0
  %2334 = vmatprep.subr.mxu0 0.0
  %2335 = vmatpush1.msra.mxu0 0.0
  %2336 = vmatprep.subr.mxu0 0.0
  %2337 = vmatpush1.msra.mxu0 0.0
  %2338 = vmatprep.subr.mxu0 0.0
  %2339 = vmatpush1.msra.mxu0 0.0
  %2340 = vmatprep.subr.mxu0 0.0
  %2341 = vmatpush1.msra.mxu0 0.0
  %2342 = vmatprep.subr.mxu0 0.0
  %2343 = vmatpush1.msra.mxu0 0.0
  %2344 = vmatprep.subr.mxu0 0.0
  %2345 = vmatpush1.msra.mxu0 0.0
  %2346 = vmatprep.subr.mxu0 0.0
  %2347 = vmatpush1.msra.mxu0 0.0
  %2348 = vmatprep.subr.mxu0 0.0
  %2349 = vmatpush1.msra.mxu0 0.0
  %2350 = vmatprep.subr.mxu0 0.0
  %2351 = vmatpush1.msra.mxu0 0.0
  %2352 = vmatprep.subr.mxu0 0.0
  %2353 = vmatpush1.msra.mxu0 0.0
  %2354 = vmatprep.subr.mxu0 0.0
  %2355 = vmatpush1.msra.mxu0 0.0
  %2356 = vmatprep.subr.mxu0 0.0
  %2357 = vmatpush1.msra.mxu0 0.0
  %2358 = vmatprep.subr.mxu0 0.0
  %2359 = vmatpush1.msra.mxu0 0.0
  %2360 = vmatprep.subr.mxu0 0.0
  %2361 = vmatpush1.msra.mxu0 0.0
  %2362 = vmatprep.subr.mxu0 0.0
  %2363 = vmatpush1.msra.mxu0 0.0
  %2364 = vmatprep.subr.mxu0 0.0
  %2365 = vmatpush1.msra.mxu0 0.0
  %2366 = vmatprep.subr.mxu0 0.0
  %2367 = vmatpush1.msra.mxu0 0.0
  %2368 = vmatprep.subr.mxu0 0.0
  %2369 = vmatpush1.msra.mxu0 0.0
  %2370 = vmatprep.subr.mxu0 0.0
  %2371 = vmatpush1.msra.mxu0 0.0
  %2372 = vmatprep.subr.mxu0 0.0
  %2373 = vmatpush1.msra.mxu0 0.0
  %2374 = vmatprep.subr.mxu0 0.0
  %2375 = vmatpush1.msra.mxu0 0.0
  %2376 = vmatprep.subr.mxu0 0.0
  %2377 = vmatpush1.msra.mxu0 0.0
  %2378 = vmatprep.subr.mxu0 0.0
  %2379 = vmatpush1.msra.mxu0 0.0
  %2380 = vmatprep.mubr.f32.mxu0 0.0
  %2381 = vmatmul.mubr.f32.gmra.mrb[0].mxu0 %v2314
  %v2382 = vpop.f32.mrb[0].mxu0
  %v2383 = vadd.f32 0.0, %v2382
  %v2384 = vpop.f32.mrb[0].mxu0
  %v2385 = vadd.f32 0.0, %v2384
  %2386 = vdwg.mxu0
  %v2389 = vrot.slane %v2383, 2
  %v2390 = vrot.slane %v2385, 2
  %v2393 = vadd.f32 %v2310, %v2389
  %v2394 = vadd.f32 %v2311, %v2390
  %v2395 = vtanh.pop %v2393
  %v2396 = vmul.f32 %v2395, 0.5
  %v2397 = vadd.f32 %v2396, 0.5
  %vm2398 = vcmp.gt.f32.partialorder %v2394, 0.0
  %v2399 = vsel %vm2398, 1, 0
  %v2400 = vcvt.s32.f32 %v2399
  %2402 = vrot.lane.b32.xlu0 %v2395, 64
  %v2403 = vpop.permute.xlu0 %2402
  %v2405 = vmul.f32 %v2397, %v2403
  %v2407 = vrot.slane %v2405, 2
  %2408 = vrot.lane.b32.xlu0 %v2407, 96
  %v2409 = vpop.permute.xlu0 %2408
  %v2411 = vmul.f32 %v2138, %v2409
  %v2413 = vrot.slane %v2127, 4
  %v2415 = vmul.f32 %v2397, %v2413
  %2416 = vrot.lane.b32.xlu0 %v2405, 96
  %v2417 = vpop.permute.xlu0 %2416
  %v2419 = vadd.f32 %v2415, %v2417
  %2420 = vset.pattern.permute.xlu0 0
  %2421 = vperm.xlu0 %2420, %v2247
  %v2422 = vpop.permute.xlu0 %2421
  %v2425 = vrot.slane %v2419, 2
  %v2427 = vmul.f32 %v2422, %v2425
  %v2428 = vadd.f32 %v2411, %v2427
  %v2429 = vtanh.pop %v2428
  %v2431 = vrot.slane %v2429, 6
  %2432 = vrot.lane.b32.xlu0 %v2431, 64
  %v2433 = vpop.permute.xlu0 %2432
  %v2435 = vmul.f32 %v2397, %v2433
  %2437 = vset.pattern.permute.xlu0 0
  %2438 = vperm.xlu0 %2437, %v2400
  %v2439 = vpop.permute.xlu0 %2438
  %v2441 = vrot.slane %v2293, 2
  %2442 = vrot.lane.b32.xlu0 %v2441, 64
  %v2443 = vpop.permute.xlu0 %2442
  %v2445 = vmul.f32 %v2439, %v2443
  %2447 = vrot.lane.b32.xlu0 %v2435, 64
  %v2448 = vpop.permute.xlu0 %2447
  %2451 = vrot.lane.b32.xlu0 %v2445, 32
  %v2452 = vpop.permute.xlu0 %2451
  %v2454 = vsel %vm382, %v2448, %v2452
  %v2456 = vrot.slane %v2454, 6
  %v2457 = vsel %vm266, %v2456, 0
  %2459 = vmatprep.subr.mxu0 %v247
  %2460 = vmatpush1.msra.mxu0 %v246
  %2461 = vmatprep.subr.mxu0 %v249
  %2462 = vmatpush1.msra.mxu0 %v248
  %2463 = vmatprep.subr.mxu0 %v251
  %2464 = vmatpush1.msra.mxu0 %v250
  %2465 = vmatprep.subr.mxu0 %v253
  %2466 = vmatpush1.msra.mxu0 %v252
  %2467 = vmatprep.subr.mxu0 %v255
  %2468 = vmatpush1.msra.mxu0 %v254
  %2469 = vmatprep.subr.mxu0 %v257
  %2470 = vmatpush1.msra.mxu0 %v256
  %2471 = vmatprep.subr.mxu0 %v259
  %2472 = vmatpush1.msra.mxu0 %v258
  %2473 = vmatprep.subr.mxu0 %v261
  %2474 = vmatpush1.msra.mxu0 %v260
  %2475 = vmatprep.subr.mxu0 0.0
  %2476 = vmatpush1.msra.mxu0 0.0
  %2477 = vmatprep.subr.mxu0 0.0
  %2478 = vmatpush1.msra.mxu0 0.0
  %2479 = vmatprep.subr.mxu0 0.0
  %2480 = vmatpush1.msra.mxu0 0.0
  %2481 = vmatprep.subr.mxu0 0.0
  %2482 = vmatpush1.msra.mxu0 0.0
  %2483 = vmatprep.subr.mxu0 0.0
  %2484 = vmatpush1.msra.mxu0 0.0
  %2485 = vmatprep.subr.mxu0 0.0
  %2486 = vmatpush1.msra.mxu0 0.0
  %2487 = vmatprep.subr.mxu0 0.0
  %2488 = vmatpush1.msra.mxu0 0.0
  %2489 = vmatprep.subr.mxu0 0.0
  %2490 = vmatpush1.msra.mxu0 0.0
  %2491 = vmatprep.subr.mxu0 0.0
  %2492 = vmatpush1.msra.mxu0 0.0
  %2493 = vmatprep.subr.mxu0 0.0
  %2494 = vmatpush1.msra.mxu0 0.0
  %2495 = vmatprep.subr.mxu0 0.0
  %2496 = vmatpush1.msra.mxu0 0.0
  %2497 = vmatprep.subr.mxu0 0.0
  %2498 = vmatpush1.msra.mxu0 0.0
  %2499 = vmatprep.subr.mxu0 0.0
  %2500 = vmatpush1.msra.mxu0 0.0
  %2501 = vmatprep.subr.mxu0 0.0
  %2502 = vmatpush1.msra.mxu0 0.0
  %2503 = vmatprep.subr.mxu0 0.0
  %2504 = vmatpush1.msra.mxu0 0.0
  %2505 = vmatprep.subr.mxu0 0.0
  %2506 = vmatpush1.msra.mxu0 0.0
  %2507 = vmatprep.subr.mxu0 0.0
  %2508 = vmatpush1.msra.mxu0 0.0
  %2509 = vmatprep.subr.mxu0 0.0
  %2510 = vmatpush1.msra.mxu0 0.0
  %2511 = vmatprep.subr.mxu0 0.0
  %2512 = vmatpush1.msra.mxu0 0.0
  %2513 = vmatprep.subr.mxu0 0.0
  %2514 = vmatpush1.msra.mxu0 0.0
  %2515 = vmatprep.subr.mxu0 0.0
  %2516 = vmatpush1.msra.mxu0 0.0
  %2517 = vmatprep.subr.mxu0 0.0
  %2518 = vmatpush1.msra.mxu0 0.0
  %2519 = vmatprep.subr.mxu0 0.0
  %2520 = vmatpush1.msra.mxu0 0.0
  %2521 = vmatprep.subr.mxu0 0.0
  %2522 = vmatpush1.msra.mxu0 0.0
  %2523 = vmatprep.mubr.f32.mxu0 0.0
  %2524 = vmatmul.mubr.f32.gmra.mrb[0].mxu0 %v2457
  %v2525 = vpop.f32.mrb[0].mxu0
  %v2526 = vadd.f32 %v388, %v2525
  %v2527 = vpop.f32.mrb[0].mxu0
  %v2528 = vadd.f32 %v392, %v2527
  %2529 = vdwg.mxu0
  %v2530 = vtanh.pop %v2526
  %v2531 = vmul.f32 %v2530, 0.5
  %v2532 = vadd.f32 %v2531, 0.5
  %vm2533 = vcmp.gt.f32.partialorder %v2528, 0.0
  %v2534 = vsel %vm2533, 1, 0
  %v2535 = vcvt.s32.f32 %v2534
  %2537 = vrot.lane.b32.xlu0 %v2530, 64
  %v2538 = vpop.permute.xlu0 %2537
  %v2540 = vmul.f32 %v2532, %v2538
  %2542 = vset.pattern.permute.xlu0 0
  %2543 = vperm.xlu0 %2542, %v2234
  %v2544 = vpop.permute.xlu0 %2543
  %v2546 = vmul.f32 %v2544, %v2540
  %v2547 = vsub.f32 1.0, %v2234
  %v2548 = vsub.f32 1.0, %v2400
  %v2550 = vrot.slane %v2548, 6
  %v2552 = vmul.f32 %v2547, %v2550
  %2554 = vset.pattern.permute.xlu0 0
  %2555 = vperm.xlu0 %2554, %v2552
  %v2556 = vpop.permute.xlu0 %2555
  %v2558 = vmul.f32 %v2556, %v2282
  %v2559 = vadd.f32 %v2546, %v2558
  %v2560 = vrot.slane %v2400, 6
  %v2562 = vmul.f32 %v2547, %v2560
  %2564 = vrot.lane.b32.xlu0 %v2282, 96
  %v2565 = vpop.permute.xlu0 %2564
  %v2567 = vmul.f32 %v2532, %v2565
  %2569 = vrot.lane.b32.xlu0 %v2540, 96
  %v2570 = vpop.permute.xlu0 %2569
  %v2572 = vadd.f32 %v2567, %v2570
  %2574 = vset.pattern.permute.xlu0 0
  %2575 = vperm.xlu0 %2574, %v2562
  %v2576 = vpop.permute.xlu0 %2575
  %v2578 = vmul.f32 %v2576, %v2572
  %2580 = vrot.lane.b32.xlu0 %v2578, 32
  %v2581 = vpop.permute.xlu0 %2580
  %v2583 = vadd.f32 %v2559, %v2581
  %v2584 = vtanh.pop %v2583
  %2586 = vrot.lane.b32.xlu0 %v2584, 32
  %v2587 = vpop.permute.xlu0 %2586
  %v2589 = vmul.f32 %v2532, %v2587
  %v2590 = vmul.f32 %v2544, %v2589
  %v2591 = vmul.f32 %v2556, %v2293
  %v2592 = vadd.f32 %v2590, %v2591
  %v2593 = vmul.f32 %v2576, %v2589
  %v2594 = vadd.f32 %v2592, %v2593
  %v2596 = vrot.slane %v2594, 2
  %2597 = vrot.lane.b32.xlu0 %v2596, 96
  %v2598 = vpop.permute.xlu0 %2597
  %v2600 = vsel %vm382, %v2448, %v2598
  %2601 = vst.msk [vmem:[#allocation3 + $0x8] sm:$0xc0] %vm1416, %v2600
  %v2602 = vld [vmem:[%s2 + $0x10] sm:$0xff]
  %v2603 = vld [vmem:[%s2 + $0x20] sm:$0xff]
  %v2604 = vld [vmem:[%s2 + $0x30] sm:$0xff]
  %v2605 = vld [vmem:[%s2 + $0x40] sm:$0xff]
  %v2606 = vld [vmem:[%s2 + $0x50] sm:$0xff]
  %v2607 = vld [vmem:[%s2 + $0x60] sm:$0xff]
  %v2608 = vld [vmem:[%s2 + $0x70] sm:$0xff]
  %v2609 = vld [vmem:[%s2 + $0x80] sm:$0xff]
  %v2610 = vld [vmem:[%s2 + $0x2] ss:$0 sm:$0xff]
  %v2611 = vld [vmem:[#allocation3] sm:$0xff]
  %v2612 = vld [vmem:[#allocation3 + $0x8] sm:$0xff]
  %v2614 = vsel %vm266, %v2611, 0
  %v2617 = vsel %vm266, %v2612, 0
  %2619 = vmatprep.subr.mxu0 0.0
  %2620 = vmatpush1.msra.mxu0 %v2602
  %2621 = vmatprep.subr.mxu0 0.0
  %2622 = vmatpush1.msra.mxu0 %v2603
  %2623 = vmatprep.subr.mxu0 0.0
  %2624 = vmatpush1.msra.mxu0 %v2604
  %2625 = vmatprep.subr.mxu0 0.0
  %2626 = vmatpush1.msra.mxu0 %v2605
  %2627 = vmatprep.subr.mxu0 0.0
  %2628 = vmatpush1.msra.mxu0 %v2606
  %2629 = vmatprep.subr.mxu0 0.0
  %2630 = vmatpush1.msra.mxu0 %v2607
  %2631 = vmatprep.subr.mxu0 0.0
  %2632 = vmatpush1.msra.mxu0 %v2608
  %2633 = vmatprep.subr.mxu0 0.0
  %2634 = vmatpush1.msra.mxu0 %v2609
  %2635 = vmatprep.subr.mxu0 0.0
  %2636 = vmatpush1.msra.mxu0 0.0
  %2637 = vmatprep.subr.mxu0 0.0
  %2638 = vmatpush1.msra.mxu0 0.0
  %2639 = vmatprep.subr.mxu0 0.0
  %2640 = vmatpush1.msra.mxu0 0.0
  %2641 = vmatprep.subr.mxu0 0.0
  %2642 = vmatpush1.msra.mxu0 0.0
  %2643 = vmatprep.subr.mxu0 0.0
  %2644 = vmatpush1.msra.mxu0 0.0
  %2645 = vmatprep.subr.mxu0 0.0
  %2646 = vmatpush1.msra.mxu0 0.0
  %2647 = vmatprep.subr.mxu0 0.0
  %2648 = vmatpush1.msra.mxu0 0.0
  %2649 = vmatprep.subr.mxu0 0.0
  %2650 = vmatpush1.msra.mxu0 0.0
  %2651 = vmatprep.subr.mxu0 0.0
  %2652 = vmatpush1.msra.mxu0 0.0
  %2653 = vmatprep.subr.mxu0 0.0
  %2654 = vmatpush1.msra.mxu0 0.0
  %2655 = vmatprep.subr.mxu0 0.0
  %2656 = vmatpush1.msra.mxu0 0.0
  %2657 = vmatprep.subr.mxu0 0.0
  %2658 = vmatpush1.msra.mxu0 0.0
  %2659 = vmatprep.subr.mxu0 0.0
  %2660 = vmatpush1.msra.mxu0 0.0
  %2661 = vmatprep.subr.mxu0 0.0
  %2662 = vmatpush1.msra.mxu0 0.0
  %2663 = vmatprep.subr.mxu0 0.0
  %2664 = vmatpush1.msra.mxu0 0.0
  %2665 = vmatprep.subr.mxu0 0.0
  %2666 = vmatpush1.msra.mxu0 0.0
  %2667 = vmatprep.subr.mxu0 0.0
  %2668 = vmatpush1.msra.mxu0 0.0
  %2669 = vmatprep.subr.mxu0 0.0
  %2670 = vmatpush1.msra.mxu0 0.0
  %2671 = vmatprep.subr.mxu0 0.0
  %2672 = vmatpush1.msra.mxu0 0.0
  %2673 = vmatprep.subr.mxu0 0.0
  %2674 = vmatpush1.msra.mxu0 0.0
  %2675 = vmatprep.subr.mxu0 0.0
  %2676 = vmatpush1.msra.mxu0 0.0
  %2677 = vmatprep.subr.mxu0 0.0
  %2678 = vmatpush1.msra.mxu0 0.0
  %2679 = vmatprep.subr.mxu0 0.0
  %2680 = vmatpush1.msra.mxu0 0.0
  %2681 = vmatprep.subr.mxu0 0.0
  %2682 = vmatpush1.msra.mxu0 0.0
  %2683 = vmatprep.mubr.f32.mxu0 0.0
  %2684 = vmatmul.mubr.f32.gmra.mrb[0].mxu0 %v2614
  %v2685 = vpop.f32.mrb[0].mxu0
  %v2686 = vadd.f32 %v2610, %v2685
  %v2687 = vpop.f32.mrb[0].mxu0
  %2688 = vmatprep.mubr.f32.mxu0 0.0
  %2689 = vmatmul.mubr.f32.gmra.mrb[0].mxu0 %v2617
  %v2690 = vpop.f32.mrb[0].mxu0
  %v2691 = vadd.f32 %v2610, %v2690
  %v2692 = vpop.f32.mrb[0].mxu0
  %2693 = vdwg.mxu0
  %v2694 = vxor.u32 %v2686, 2147483648
  %v2695 = vxor.u32 %v2691, 2147483648
  %v2696 = vmul.f32 %v2694, 1.442695
  %v2697 = vpow.pop %v2696
  %v2698 = vmul.f32 %v2695, 1.442695
  %v2699 = vpow.pop %v2698
  %v2700 = vadd.f32 %v2697, 1.0
  %v2701 = vadd.f32 %v2699, 1.0
  %v2702 = vrcp.pop %v2700
  %v2703 = vmul.f32 1.0, %v2702
  %v2704 = vrcp.pop %v2701
  %v2705 = vmul.f32 1.0, %v2704
  %vm2706 = vcmask 15360
  %2707 = vst.msk [vmem:[%s3] sm:$0xff] %vm2706, %v2703
  %2708 = vst.msk [vmem:[%s3 + $0x8] sm:$0xff] %vm2706, %v2705
  %v2710 = vrot.slane %v2428, 6
  %2711 = vrot.lane.b32.xlu0 %v2710, 32
  %v2712 = vpop.permute.xlu0 %2711
  %v2716 = vrot.slane %v2583, 2
  %2717 = vrot.lane.b32.xlu0 %v2716, 64
  %v2718 = vpop.permute.xlu0 %2717
  %v2721 = vrot.slane %v2535, 2
  %2722 = vrot.lane.b32.xlu0 %v2721, 1
  %v2723 = vpop.permute.xlu0 %2722
  %v2725 = vsel %vm382, %v2448, %v2712
  %v2726 = vsel %vm266, %v2725, %v2596
  %vm2727 = vcmask 785408
  %v2728 = vsel %vm2727, %v2726, %v2718
  %v2729 = vsel %vm226, %v2400, %v2723
  %v2732 = vcombine.high %v2728, %v2729
  %v2734 = vunpack.c.l.s4 1983009808
  %v2735 = vunpack.c.0.s8 %v2734
  %v2736 = vlaneseq
  %v2737 = vshrl.u32 %v2736, 7
  %v2738 = vsub.s32 %v2735, %v2737
  %v2739 = vrot.slane %v2732, %v2738
  %v2740 = vcombine.high %v2739, %v2739
  %vm2742 = vcmask 11266
  %vm2743 = vmor %vm2742, %vm117
  %2744 = vst.msk [vmem:[%s4] sm:$0xf] %vm2743, %v2740
  // Predicated region
  $region14: #{hm_net_forward.1} parent=0 // pred_check
    _
  $region15: #{hm_net_forward.1} parent=0 // pred_check_branch
    %2746 = sbr.rel (0) target = $region17
  $region16: #{hm_net_forward.1} parent=0 // pred_region
    _
  $region17: #{hm_net_forward.1} parent=0 // pred_fallthru
    _
  // Predicated region
  $region18: #{hm_net_forward.1} parent=0 // pred_check
    _
  $region19: #{hm_net_forward.1} parent=0 // pred_check_branch
    %2748 = sbr.rel (0) target = $region21
  $region20: #{hm_net_forward.1} parent=0 // pred_region
    _
  $region21: #{hm_net_forward.1} parent=0 // pred_fallthru
    _
  // Predicated region
  $region22: #{hm_net_forward.1} parent=0 // pred_check
    _
  $region23: #{hm_net_forward.1} parent=0 // pred_check_branch
    %2750 = sbr.rel (0) target = $region25
  $region24: #{hm_net_forward.1} parent=0 // pred_region
    _
  $region25: #{hm_net_forward.1} parent=0 // pred_fallthru
    _
  // Predicated region
  $region26: #{hm_net_forward.1} parent=0 // pred_check
    _
  $region27: #{hm_net_forward.1} parent=0 // pred_check_branch
    %2752 = sbr.rel (0) target = $region29
  $region28: #{hm_net_forward.1} parent=0 // pred_region
    _
  $region29: #{hm_net_forward.1} parent=0 // pred_fallthru
    _

</llo_original>
